<compile_context>
chip_gen: v6e
topology: v6e:2x2x1
jax: 0.10.0
libtpu: 0.0.40
codegen_flags: <defaults>
</compile_context>

<pallas_src>
import functools

import jax
import jax.numpy as jnp
import numpy as np
from jax import lax
from jax.experimental import pallas as pl
from jax.experimental.pallas import tpu as pltpu

LANE = 128


def _round_up(x, m):
    return ((x + m - 1) // m) * m


# --------------------------------------------------------------------------
# Fused kernel: degrees + source norm + (optional @W) + A^T @ h + finalize.
# grid = (src row-strip i,)
# --------------------------------------------------------------------------
def _gcn_fused_kernel(a_ref, x_ref, w_ref, b_ref, o_ref, acc_ref, indeg_ref,
                      *, mult_w_first):
    i = pl.program_id(0)

    @pl.when(i == 0)
    def _():
        acc_ref[...] = jnp.zeros_like(acc_ref)
        indeg_ref[...] = jnp.zeros_like(indeg_ref)

    # int8 {0,1} adjacency strip -> bf16 once (exact); feeds the MXU directly.
    a = a_ref[...].astype(jnp.bfloat16)               # (tile_src, n_pad)
    tile_src, n_pad = a.shape

    # Source (out-) degree of this strip's rows: ones-column mat-vec with f32
    # accumulation (exact integer counts).             (tile_src, 1)
    ones_dst = jnp.ones((n_pad, 1), dtype=jnp.bfloat16)
    out_deg = lax.dot_general(a, ones_dst, (((1,), (0,)), ((), ())),
                              preferred_element_type=jnp.float32)
    norm_src = lax.rsqrt(jnp.maximum(out_deg, 1.0))    # EUP

    h = x_ref[...] * norm_src                          # (tile_src, fin_pad) f32
    if mult_w_first:
        # in_feats > out_feats: transform before aggregation (narrower f_mid).
        h = jnp.dot(h, w_ref[...], preferred_element_type=jnp.float32)
    h = h.astype(jnp.bfloat16)                         # (tile_src, f_mid)

    # acc += A_strip^T @ h : contract the shared *source* axis of both
    # operands -- consumed natively by the MXU, no transpose materialised.
    contract_src = (((0,), (0,)), ((), ()))
    acc_ref[...] += lax.dot_general(a, h, contract_src,
                                    preferred_element_type=jnp.float32)

    # Partial destination (in-) degree, directly in column orientation.
    ones_src = jnp.ones((tile_src, 1), dtype=jnp.bfloat16)
    indeg_ref[...] += lax.dot_general(a, ones_src, contract_src,
                                      preferred_element_type=jnp.float32)

    @pl.when(i == pl.num_programs(0) - 1)
    def _():
        rst = acc_ref[...]                             # (n_pad, f_mid) f32
        if not mult_w_first:
            rst = jnp.dot(rst, w_ref[...], preferred_element_type=jnp.float32)
        norm_dst = lax.rsqrt(jnp.maximum(indeg_ref[...], 1.0))  # (n_pad, 1)
        o_ref[...] = (rst * norm_dst + b_ref[...]).astype(o_ref.dtype)


# --------------------------------------------------------------------------
# Wrapper
# --------------------------------------------------------------------------
def graph_conv(adj, feat, weight, bias, *, node_tile=512,
               vmem_limit_bytes=48 * 1024 * 1024):
    """GraphConv forward (norm='both', weight=True, bias=True).

    adj:    [N, N] dense 0/1 adjacency (A[u, v] = edge u -> v)
    feat:   [N, Fin] node features
    weight: [Fin, Fout]
    bias:   [Fout]
    """
    n, fin = feat.shape
    fout = weight.shape[1]

    # DGL chooses the matmul order on the *unpadded* feature sizes.
    mult_w_first = fin > fout

    fin_pad = _round_up(fin, LANE)
    fout_pad = _round_up(fout, LANE)
    f_mid = fout_pad if mult_w_first else fin_pad
    n_lane = _round_up(n, LANE)

    # ---- VMEM budgeting (v7x has only 64 MiB physical; stay <= ~48 MiB). ----
    def _footprint(ts):
        npad = _round_up(n, ts)
        resident = (npad * f_mid * 4 * 2            # acc scratch + dot temp
                    + npad * fout_pad * 4 * 2       # resident output (+ temp)
                    + npad * 4                      # in-degree column
                    + 2 * fin_pad * fout_pad * 4)   # weight (+ headroom)
        streamed = (2 * ts * npad                   # int8 strip, double-buffered
                    + ts * npad * 2                 # bf16 upcast of live strip
                    + 2 * ts * fin_pad * 4)         # feature strip, double-buffered
        return resident + streamed

    tile_src = min(node_tile, n_lane)
    while tile_src > LANE and _footprint(tile_src) > vmem_limit_bytes * 0.85:
        tile_src = max(LANE, tile_src // 2)
    if _footprint(tile_src) > vmem_limit_bytes * 0.85:
        # TODO(synk): two-pass fallback for graphs whose resident accumulator
        # / output do not fit the VMEM budget.
        raise ValueError(
            f"graph with N={n}, f_mid={f_mid} exceeds the fused kernel's "
            f"VMEM budget ({vmem_limit_bytes} bytes)")

    n_pad = _round_up(n, tile_src)
    n_strips = n_pad // tile_src

    # Pad to tile / lane multiples; adjacency travels as int8 (0/1 exact).
    adj_p = jnp.pad(adj.astype(jnp.int8), ((0, n_pad - n), (0, n_pad - n)))
    feat_p = jnp.pad(feat.astype(jnp.float32),
                     ((0, n_pad - n), (0, fin_pad - fin)))
    w_p = jnp.pad(weight.astype(jnp.float32),
                  ((0, fin_pad - fin), (0, fout_pad - fout)))
    b_p = jnp.pad(bias.astype(jnp.float32).reshape(1, fout),
                  ((0, 0), (0, fout_pad - fout)))

    cost = pl.CostEstimate(
        flops=(2 * n_pad * n_pad * f_mid            # aggregation matmul
               + 2 * n_pad * fin_pad * fout_pad     # feature transform
               + 4 * n_pad * n_pad),                # two degree mat-vecs
        transcendentals=2 * n_pad,
        bytes_accessed=(n_pad * n_pad               # int8 adjacency, one pass
                        + n_pad * fin_pad * 4       # features
                        + fin_pad * fout_pad * 4    # weight
                        + fout_pad * 4              # bias
                        + n_pad * fout_pad * 4))    # output

    out_p = pl.pallas_call(
        functools.partial(_gcn_fused_kernel, mult_w_first=mult_w_first),
        out_shape=jax.ShapeDtypeStruct((n_pad, fout_pad), jnp.float32),
        grid_spec=pltpu.PrefetchScalarGridSpec(
            num_scalar_prefetch=0,
            grid=(n_strips,),
            in_specs=[
                pl.BlockSpec((tile_src, n_pad), lambda i: (i, 0)),    # A strip
                pl.BlockSpec((tile_src, fin_pad), lambda i: (i, 0)),  # X strip
                pl.BlockSpec((fin_pad, fout_pad), lambda i: (0, 0)),  # W
                pl.BlockSpec((1, fout_pad), lambda i: (0, 0)),        # bias
            ],
            out_specs=pl.BlockSpec((n_pad, fout_pad), lambda i: (0, 0)),
            scratch_shapes=[pltpu.VMEM((n_pad, f_mid), jnp.float32),
                            pltpu.VMEM((n_pad, 1), jnp.float32)]),
        compiler_params=pltpu.CompilerParams(
            # Reduction over source strips into the resident accumulator.
            dimension_semantics=("arbitrary",),
            vmem_limit_bytes=vmem_limit_bytes),
        cost_estimate=cost,
    )(adj_p, feat_p, w_p, b_p)

    return out_p[:n, :fout]


# --------------------------------------------------------------------------
# Pure-JAX reference (mirrors the PyTorch module's forward)
# --------------------------------------------------------------------------
def _reference(adj, feat, weight, bias):
    out_deg = jnp.maximum(jnp.sum(adj, axis=1), 1.0)
    in_deg = jnp.maximum(jnp.sum(adj, axis=0), 1.0)
    h = feat * (out_deg ** -0.5)[:, None]
    if feat.shape[1] > weight.shape[1]:
        h = h @ weight
        rst = adj.T @ h
    else:
        rst = adj.T @ h
        rst = rst @ weight
    rst = rst * (in_deg ** -0.5)[:, None]
    return rst + bias[None, :]


if __name__ == "__main__":
    def run_case(n, in_feats, out_feats, key, *, density=0.05,
                 zero_bias=True, node_tile=512):
        k_adj, k_feat, k_w, k_b = jax.random.split(key, 4)
        # Random directed graph with self loops (guarantees in_degree > 0,
        # matching the module's allow_zero_in_degree check).
        adj = (jax.random.uniform(k_adj, (n, n)) < density).astype(jnp.float32)
        adj = jnp.maximum(adj, jnp.eye(n, dtype=jnp.float32))
        feat = jax.random.normal(k_feat, (n, in_feats), dtype=jnp.float32)
        bound = float(np.sqrt(6.0 / (in_feats + out_feats)))
        weight = jax.random.uniform(k_w, (in_feats, out_feats),
                                    minval=-bound, maxval=bound,
                                    dtype=jnp.float32)
        if zero_bias:   # module init: init.zeros_(bias)
            bias = jnp.zeros((out_feats,), dtype=jnp.float32)
        else:           # non-zero bias to exercise the bias-add path
            bias = 0.1 * jax.random.normal(k_b, (out_feats,),
                                           dtype=jnp.float32)

        out = jax.block_until_ready(
            graph_conv(adj, feat, weight, bias, node_tile=node_tile))
        ref = _reference(adj, feat, weight, bias)
        # bf16 MXU operands (f32 accumulation) -> ~1e-3 relative error budget.
        np.testing.assert_allclose(np.asarray(out), np.asarray(ref),
                                   rtol=2e-2, atol=2e-2)

    key = jax.random.PRNGKey(0)
    k1, k2, k3 = jax.random.split(key, 3)
    # Case 1: aggregate-then-W path (Fin <= Fout), 500 -> 512 pad, 2 strips.
    run_case(500, 16, 32, k1, zero_bias=True, node_tile=256)
    # Case 2: W-before-aggregation path (Fin > Fout), single strip.
    run_case(130, 256, 16, k2, zero_bias=False)
    # Case 3: W-first path with 3 strips and a non-zero bias.
    run_case(300, 64, 8, k3, zero_bias=False, node_tile=128)

    print("KERNEL_OK")
</pallas_src>

<mosaic_0001>
module attributes {stable_mosaic.version = 11 : i64} {
  func.func @_gcn_fused_kernel(%arg0: i32, %arg1: memref<256x512xi8, #tpu.memory_space<vmem>>, %arg2: memref<256x128xf32, #tpu.memory_space<vmem>>, %arg3: memref<128x128xf32, #tpu.memory_space<vmem>>, %arg4: memref<1x128xf32, #tpu.memory_space<vmem>>, %arg5: memref<512x128xf32, #tpu.memory_space<vmem>>, %arg6: memref<512x128xf32, #tpu.memory_space<vmem>>, %arg7: memref<512x1xf32, #tpu.memory_space<vmem>>) attributes {dimension_semantics = [#tpu.dimension_semantics<arbitrary>], iteration_bounds = array<i64: 2>, scalar_prefetch = 0 : i64, scratch_operands = 2 : i64, tpu.core_type = #tpu.core_type<tc>, window_params = [{transform_indices = @transform_0, window_bounds = array<i64: 256, 512>}, {transform_indices = @transform_1, window_bounds = array<i64: 256, 128>}, {pipeline_mode = #tpu.pipeline_mode<synchronous>, transform_indices = @transform_2, window_bounds = array<i64: 128, 128>}, {pipeline_mode = #tpu.pipeline_mode<synchronous>, transform_indices = @transform_3, window_bounds = array<i64: 1, 128>}, {pipeline_mode = #tpu.pipeline_mode<synchronous>, transform_indices = @transform_4, window_bounds = array<i64: 512, 128>}]} {
    %c0_i32 = arith.constant 0 : i32
    %0 = arith.cmpi eq, %arg0, %c0_i32 : i32
    %1 = arith.extui %0 : i1 to i32
    %c0_i32_0 = arith.constant 0 : i32
    %2 = arith.cmpi ne, %1, %c0_i32_0 : i32
    scf.if %2 {
      %cst_18 = arith.constant 0.000000e+00 : f32
      %26 = vector.broadcast %cst_18 : f32 to vector<512x128xf32>
      %c0_19 = arith.constant 0 : index
      %c0_20 = arith.constant 0 : index
      %27 = vector.load %arg6[%c0_19, %c0_20] : memref<512x128xf32, #tpu.memory_space<vmem>>, vector<512x128xf32>
      tpu.vector_store %arg6[%c0_19, %c0_20], %26 {strides = array<i32>} : memref<512x128xf32, #tpu.memory_space<vmem>>, vector<512x128xf32>,
      %cst_21 = arith.constant 0.000000e+00 : f32
      %28 = vector.broadcast %cst_21 : f32 to vector<512x1xf32>
      %c0_22 = arith.constant 0 : index
      %c0_23 = arith.constant 0 : index
      %29 = vector.load %arg7[%c0_22, %c0_23] : memref<512x1xf32, #tpu.memory_space<vmem>>, vector<512x1xf32>
      tpu.vector_store %arg7[%c0_22, %c0_23], %28 {strides = array<i32>} : memref<512x1xf32, #tpu.memory_space<vmem>>, vector<512x1xf32>,
    } else {
    }
    %c0 = arith.constant 0 : index
    %c0_1 = arith.constant 0 : index
    %3 = vector.load %arg1[%c0, %c0_1] : memref<256x512xi8, #tpu.memory_space<vmem>>, vector<256x512xi8>
    %4 = arith.sitofp %3 : vector<256x512xi8> to vector<256x512xbf16>
    %cst = arith.constant 1.000000e+00 : bf16
    %5 = vector.broadcast %cst : bf16 to vector<512x1xbf16>
    %cst_2 = arith.constant dense<0.000000e+00> : vector<256x1xf32>
    %6 = tpu.matmul %4, %5, %cst_2 {dimension_numbers = #tpu.dot_dimension_numbers<[1], [0], [0], [1], [0, 0, 1, 1], [], []>} : vector<256x512xbf16>, vector<512x1xbf16>, vector<256x1xf32> -> vector<256x1xf32>
    %cst_3 = arith.constant 1.000000e+00 : f32
    %7 = vector.broadcast %cst_3 : f32 to vector<256x1xf32>
    %8 = arith.maximumf %6, %7 : vector<256x1xf32>
    %9 = math.rsqrt %8 : vector<256x1xf32>
    %c0_4 = arith.constant 0 : index
    %c0_5 = arith.constant 0 : index
    %10 = vector.load %arg2[%c0_4, %c0_5] : memref<256x128xf32, #tpu.memory_space<vmem>>, vector<256x128xf32>
    %11 = vector.broadcast %9 : vector<256x1xf32> to vector<256x128xf32>
    %12 = arith.mulf %10, %11 : vector<256x128xf32>
    %13 = arith.truncf %12 : vector<256x128xf32> to vector<256x128xbf16>
    %c0_6 = arith.constant 0 : index
    %c0_7 = arith.constant 0 : index
    %14 = vector.load %arg6[%c0_6, %c0_7] : memref<512x128xf32, #tpu.memory_space<vmem>>, vector<512x128xf32>
    %cst_8 = arith.constant dense<0.000000e+00> : vector<512x128xf32>
    %15 = tpu.matmul %4, %13, %cst_8 {dimension_numbers = #tpu.dot_dimension_numbers<[0], [0], [1], [1], [0, 1, 1, 1], [], []>} : vector<256x512xbf16>, vector<256x128xbf16>, vector<512x128xf32> -> vector<512x128xf32>
    %16 = arith.addf %14, %15 : vector<512x128xf32>
    %c0_9 = arith.constant 0 : index
    %c0_10 = arith.constant 0 : index
    %17 = vector.load %arg6[%c0_9, %c0_10] : memref<512x128xf32, #tpu.memory_space<vmem>>, vector<512x128xf32>
    tpu.vector_store %arg6[%c0_9, %c0_10], %16 {strides = array<i32>} : memref<512x128xf32, #tpu.memory_space<vmem>>, vector<512x128xf32>,
    %cst_11 = arith.constant 1.000000e+00 : bf16
    %18 = vector.broadcast %cst_11 : bf16 to vector<256x1xbf16>
    %c0_12 = arith.constant 0 : index
    %c0_13 = arith.constant 0 : index
    %19 = vector.load %arg7[%c0_12, %c0_13] : memref<512x1xf32, #tpu.memory_space<vmem>>, vector<512x1xf32>
    %cst_14 = arith.constant dense<0.000000e+00> : vector<512x1xf32>
    %20 = tpu.matmul %4, %18, %cst_14 {dimension_numbers = #tpu.dot_dimension_numbers<[0], [0], [1], [1], [0, 1, 1, 1], [], []>} : vector<256x512xbf16>, vector<256x1xbf16>, vector<512x1xf32> -> vector<512x1xf32>
    %21 = arith.addf %19, %20 : vector<512x1xf32>
    %c0_15 = arith.constant 0 : index
    %c0_16 = arith.constant 0 : index
    %22 = vector.load %arg7[%c0_15, %c0_16] : memref<512x1xf32, #tpu.memory_space<vmem>>, vector<512x1xf32>
    tpu.vector_store %arg7[%c0_15, %c0_16], %21 {strides = array<i32>} : memref<512x1xf32, #tpu.memory_space<vmem>>, vector<512x1xf32>,
    %c1_i32 = arith.constant 1 : i32
    %23 = arith.cmpi eq, %arg0, %c1_i32 : i32
    %24 = arith.extui %23 : i1 to i32
    %c0_i32_17 = arith.constant 0 : i32
    %25 = arith.cmpi ne, %24, %c0_i32_17 : i32
    scf.if %25 {
      %c0_18 = arith.constant 0 : index
      %c0_19 = arith.constant 0 : index
      %26 = vector.load %arg6[%c0_18, %c0_19] : memref<512x128xf32, #tpu.memory_space<vmem>>, vector<512x128xf32>
      %c0_20 = arith.constant 0 : index
      %c0_21 = arith.constant 0 : index
      %27 = vector.load %arg3[%c0_20, %c0_21] : memref<128x128xf32, #tpu.memory_space<vmem>>, vector<128x128xf32>
      %cst_22 = arith.constant dense<0.000000e+00> : vector<512x128xf32>
      %28 = tpu.matmul %26, %27, %cst_22 {dimension_numbers = #tpu.dot_dimension_numbers<[1], [0], [0], [1], [0, 0, 1, 1], [], []>} : vector<512x128xf32>, vector<128x128xf32>, vector<512x128xf32> -> vector<512x128xf32>
      %c0_23 = arith.constant 0 : index
      %c0_24 = arith.constant 0 : index
      %29 = vector.load %arg7[%c0_23, %c0_24] : memref<512x1xf32, #tpu.memory_space<vmem>>, vector<512x1xf32>
      %cst_25 = arith.constant 1.000000e+00 : f32
      %30 = vector.broadcast %cst_25 : f32 to vector<512x1xf32>
      %31 = arith.maximumf %29, %30 : vector<512x1xf32>
      %32 = math.rsqrt %31 : vector<512x1xf32>
      %33 = vector.broadcast %32 : vector<512x1xf32> to vector<512x128xf32>
      %34 = arith.mulf %28, %33 : vector<512x128xf32>
      %c0_26 = arith.constant 0 : index
      %c0_27 = arith.constant 0 : index
      %35 = vector.load %arg4[%c0_26, %c0_27] : memref<1x128xf32, #tpu.memory_space<vmem>>, vector<1x128xf32>
      %36 = vector.broadcast %35 : vector<1x128xf32> to vector<512x128xf32>
      %37 = arith.addf %34, %36 : vector<512x128xf32>
      %c0_28 = arith.constant 0 : index
      %c0_29 = arith.constant 0 : index
      %38 = vector.load %arg5[%c0_28, %c0_29] : memref<512x128xf32, #tpu.memory_space<vmem>>, vector<512x128xf32>
      tpu.vector_store %arg5[%c0_28, %c0_29], %37 {strides = array<i32>} : memref<512x128xf32, #tpu.memory_space<vmem>>, vector<512x128xf32>,
    } else {
    }
    return
  }
  func.func @transform_0(%arg0: i32) -> (i32, i32) {
    %c0_i32 = arith.constant 0 : i32
    %c0_i32_0 = arith.constant 0 : i32
    return %arg0, %c0_i32 : i32, i32
  }
  func.func @transform_1(%arg0: i32) -> (i32, i32) {
    %c0_i32 = arith.constant 0 : i32
    %c0_i32_0 = arith.constant 0 : i32
    return %arg0, %c0_i32 : i32, i32
  }
  func.func @transform_2(%arg0: i32) -> (i32, i32) {
    %c0_i32 = arith.constant 0 : i32
    %c0_i32_0 = arith.constant 0 : i32
    %c0_i32_1 = arith.constant 0 : i32
    return %c0_i32, %c0_i32_0 : i32, i32
  }
  func.func @transform_3(%arg0: i32) -> (i32, i32) {
    %c0_i32 = arith.constant 0 : i32
    %c0_i32_0 = arith.constant 0 : i32
    %c0_i32_1 = arith.constant 0 : i32
    return %c0_i32, %c0_i32_0 : i32, i32
  }
  func.func @transform_4(%arg0: i32) -> (i32, i32) {
    %c0_i32 = arith.constant 0 : i32
    %c0_i32_0 = arith.constant 0 : i32
    %c0_i32_1 = arith.constant 0 : i32
    return %c0_i32, %c0_i32_0 : i32, i32
  }
}

</mosaic_0001>

<llo_original>
// kernel: tpu_custom_call.1
$region0: #{tpu_custom_call.1}
  #allocation0 [shape = 'u32[]', space=smem, size = 0x4, offset = 0x4, fixed_abs, tag = 'smem constant byte address 0x4 - core index']
  #allocation1 [shape = 'u32[144,128]{1,0:T(1,128)}', space=vmem, size = 0x12000, scoped, tag = 'internal scratch']
  #allocation2 [shape = 'f32[512,128]{1,0:T(8,128)}', space=vmem, size = 0x40000, scoped, tag = 'scratch operand']
  #allocation3 [shape = 'f32[512,1]{1,0:T(8,128)}', space=vmem, size = 0x40000, scoped, tag = 'scratch operand']
  %s0 = inlined_call_operand.hbm [shape: s8[512,512], index: 0, kind: input, shape index: {}]
  %s1 = inlined_call_operand.hbm [shape: f32[512,128], index: 1, kind: input, shape index: {}]
  %s2 = inlined_call_operand.hbm [shape: f32[128,128], index: 2, kind: input, shape index: {}]
  %s3 = inlined_call_operand.vmem [shape: f32[1,128], index: 3, kind: input, shape index: {}]
  %s4 = inlined_call_operand.hbm [shape: f32[512,128], index: 4, kind: output, shape index: {}]
  %s5 = sld [smem:[#allocation0]]
  $region69: #{tpu_custom_call.1} parent=0
    _
  %s7 = ssub.s32 1, %s5
  %s8 = scalar_select 0, %s7, %s5
  $region1: #{tpu_custom_call.1} parent=0
    #allocation4 [shape = 'u8[262144]{0}', space=vmem, size = 0x40000, scoped, tag = 'input window, operand 0']
    #allocation5 [shape = 's32[2]{0}', space=sflag, size = 0x8, scoped, tag = 'scoped memory for tpu_custom_call.1']
    #allocation6 [shape = 's32[2]{0}', space=sflag, size = 0x8, scoped, tag = 'scoped memory for tpu_custom_call.1']
    #allocation7 [shape = 'u8[262144]{0}', space=vmem, size = 0x40000, scoped, tag = 'input window, operand 1']
    #allocation8 [shape = 's32[2]{0}', space=sflag, size = 0x8, scoped, tag = 'scoped memory for tpu_custom_call.1']
    #allocation9 [shape = 'u8[65536]{0}', space=vmem, size = 0x10000, scoped, tag = 'input window, operand 2, single buffered']
    #allocation10 [shape = 'u8[262144]{0}', space=vmem, size = 0x40000, scoped, tag = 'output window, operand 0, single buffered']
    %9 = vsyncpa [#allocation5], 0
    %s10 = scalar_lea.sflag [#allocation5], 1
    %11 = vsyncpa %s10, 0
    %12 = vsyncpa [#allocation8], 0
    %s13 = scalar_lea.sflag [#allocation8], 1
    %14 = vsyncpa %s13, 0
    %15 = vsyncpa [#allocation6], 0
    loop: start=0, step=1, limit=4
    $region2: #{tpu_custom_call.1} parent=1 // loop_pre_header
      _
    $region3: #{tpu_custom_call.1} parent=1 // loop_header
      %s17 = sphi 0, %s21
      %p18 = scmp.ge.s32.totalorder %s17, 4
      %s27 = sphi 0, %s29
      %s30 = sphi 0, %s27
      %s31 = sphi 0, %s30
      %s47 = sphi 0, %s31
      %s53 = sphi 0, %s55
      %s56 = sphi 0, %s53
      %s57 = sphi 0, %s56
      %s73 = sphi 0, %s57
      %s77 = sphi 0, %s77
      %s79 = sphi 0, %s77
      %s80 = sphi 0, %s79
      %s94 = sphi 0, %s80
      %s98 = sphi 0, %s98
      %s100 = sphi 0, %s98
      %s101 = sphi 0, %s100
      %s115 = sphi 0, %s101
      %s119 = sphi 0, %s119
      %s121 = sphi 0, %s119
      %s122 = sphi 0, %s121
      %s136 = sphi 0, %s122
    $region4: #{tpu_custom_call.1} parent=1 // loop_header_branch
      %20 = sbr.rel (%p18) target = $region8
    $region5: #{tpu_custom_call.1} parent=1 // loop_body
      %s22 = ssub.s32 %s17, 1
      %s23 = ssub.s32 %s17, 2
      %s24 = sadd.s32 %s17, 1
      %s25 = ssub.s32 %s17, %s24
      %p26 = scmp.eq.s32.totalorder %s25, 0
      %s28 = sadd.s32 %s27, 1
      %s29 = scalar_select %p26, %s27, %s28
      %p32 = pneg %p26
      %p33 = scmp.eq.s32.totalorder %s17, 1
      %p34 = por %p32, %p33
      %p35 = scmp.ne.s32.totalorder %s27, %s30
      %p36 = scmp.eq.s32.totalorder %s17, 0
      %p37 = por %p35, %p36
      %p38 = scmp.ne.s32.totalorder %s27, %s30
      %p39 = scmp.eq.s32.totalorder %s22, 1
      %p40 = por %p38, %p39
      %p41 = scmp.ne.s32.totalorder %s30, %s31
      %p42 = scmp.eq.s32.totalorder %s22, 0
      %p43 = por %p41, %p42
      %p44 = scmp.ne.s32.totalorder %s30, %s31
      %p45 = scmp.eq.s32.totalorder %s23, 1
      %p46 = por %p44, %p45
      %p48 = scmp.ne.s32.totalorder %s31, %s47
      %p49 = scmp.eq.s32.totalorder %s23, 0
      %p50 = por %p48, %p49
      %s51 = ssub.s32 %s17, %s24
      %p52 = scmp.eq.s32.totalorder %s51, 0
      %s54 = sadd.s32 %s53, 1
      %s55 = scalar_select %p52, %s53, %s54
      %p58 = pneg %p52
      %p59 = scmp.eq.s32.totalorder %s17, 1
      %p60 = por %p58, %p59
      %p61 = scmp.ne.s32.totalorder %s53, %s56
      %p62 = scmp.eq.s32.totalorder %s17, 0
      %p63 = por %p61, %p62
      %p64 = scmp.ne.s32.totalorder %s53, %s56
      %p65 = scmp.eq.s32.totalorder %s22, 1
      %p66 = por %p64, %p65
      %p67 = scmp.ne.s32.totalorder %s56, %s57
      %p68 = scmp.eq.s32.totalorder %s22, 0
      %p69 = por %p67, %p68
      %p70 = scmp.ne.s32.totalorder %s56, %s57
      %p71 = scmp.eq.s32.totalorder %s23, 1
      %p72 = por %p70, %p71
      %p74 = scmp.ne.s32.totalorder %s57, %s73
      %p75 = scmp.eq.s32.totalorder %s23, 0
      %p76 = por %p74, %p75
      %s78 = sadd.s32 %s77, 1
      %p81 = scmp.eq.s32.totalorder %s17, 1
      %p82 = scmp.ne.s32.totalorder %s77, %s79
      %p83 = scmp.eq.s32.totalorder %s17, 0
      %p84 = por %p82, %p83
      %p85 = scmp.ne.s32.totalorder %s77, %s79
      %p86 = scmp.eq.s32.totalorder %s22, 1
      %p87 = por %p85, %p86
      %p88 = scmp.ne.s32.totalorder %s79, %s80
      %p89 = scmp.eq.s32.totalorder %s22, 0
      %p90 = por %p88, %p89
      %p91 = scmp.ne.s32.totalorder %s79, %s80
      %p92 = scmp.eq.s32.totalorder %s23, 1
      %p93 = por %p91, %p92
      %p95 = scmp.ne.s32.totalorder %s80, %s94
      %p96 = scmp.eq.s32.totalorder %s23, 0
      %p97 = por %p95, %p96
      %s99 = sadd.s32 %s98, 1
      %p102 = scmp.eq.s32.totalorder %s17, 1
      %p103 = scmp.ne.s32.totalorder %s98, %s100
      %p104 = scmp.eq.s32.totalorder %s17, 0
      %p105 = por %p103, %p104
      %p106 = scmp.ne.s32.totalorder %s98, %s100
      %p107 = scmp.eq.s32.totalorder %s22, 1
      %p108 = por %p106, %p107
      %p109 = scmp.ne.s32.totalorder %s100, %s101
      %p110 = scmp.eq.s32.totalorder %s22, 0
      %p111 = por %p109, %p110
      %p112 = scmp.ne.s32.totalorder %s100, %s101
      %p113 = scmp.eq.s32.totalorder %s23, 1
      %p114 = por %p112, %p113
      %p116 = scmp.ne.s32.totalorder %s101, %s115
      %p117 = scmp.eq.s32.totalorder %s23, 0
      %p118 = por %p116, %p117
      %s120 = sadd.s32 %s119, 1
      %p123 = scmp.eq.s32.totalorder %s17, 1
      %p124 = scmp.ne.s32.totalorder %s119, %s121
      %p125 = scmp.eq.s32.totalorder %s17, 0
      %p126 = por %p124, %p125
      %p127 = scmp.ne.s32.totalorder %s119, %s121
      %p128 = scmp.eq.s32.totalorder %s22, 1
      %p129 = por %p127, %p128
      %p130 = scmp.ne.s32.totalorder %s121, %s122
      %p131 = scmp.eq.s32.totalorder %s22, 0
      %p132 = por %p130, %p131
      %p133 = scmp.ne.s32.totalorder %s121, %s122
      %p134 = scmp.eq.s32.totalorder %s23, 1
      %p135 = por %p133, %p134
      %p137 = scmp.ne.s32.totalorder %s122, %s136
      %p138 = scmp.eq.s32.totalorder %s23, 0
      %p139 = por %p137, %p138
      %p140 = scmp.le.s32.totalorder 1, %s17
      %p141 = scmp.lt.s32.totalorder %s17, 3
      %p142 = pnand %p140, %p141
      %p143 = pneg %p142
      // Predicated region
      $region9: #{tpu_custom_call.1} parent=5 // pred_check
        _
      $region10: #{tpu_custom_call.1} parent=5 // pred_check_branch
        %145 = sbr.rel (%p142) target = $region12
      $region11: #{tpu_custom_call.1} parent=5 // pred_region
        %s146 = ssub.s32 %s17, 1
        // Predicated region
        $region13: #{tpu_custom_call.1} parent=11 // pred_check
          %p147 = pneg %p90
        $region14: #{tpu_custom_call.1} parent=11 // pred_check_branch
          %149 = sbr.rel (%p147) target = $region16
        $region15: #{tpu_custom_call.1} parent=11 // pred_region
          %s151 = ssub.s32 2048, 2048
          %152 = vsyncadd [#allocation8], %s151
          %s153 = sshll.u32 [#allocation9], 4
          %s154 = int_to_ptr.vmem [resolvable:$true] %s153
          %159 = dma.hbm_to_vmem [thread:$0]  %s2, 2048, %s154, [#allocation8], 128, 128, 8
        $region16: #{tpu_custom_call.1} parent=11 // pred_fallthru
          _
        // Predicated region
        $region17: #{tpu_custom_call.1} parent=11 // pred_check
          %p160 = pneg %p111
        $region18: #{tpu_custom_call.1} parent=11 // pred_check_branch
          %162 = sbr.rel (%p160) target = $region20
        $region19: #{tpu_custom_call.1} parent=11 // pred_region
          _
        $region20: #{tpu_custom_call.1} parent=11 // pred_fallthru
          _
      $region12: #{tpu_custom_call.1} parent=5 // pred_fallthru
        _
      %p163 = scmp.lt.s32.totalorder %s17, 2
      // Predicated region
      $region21: #{tpu_custom_call.1} parent=5 // pred_check
        %p164 = pneg %p163
      $region22: #{tpu_custom_call.1} parent=5 // pred_check_branch
        %166 = sbr.rel (%p164) target = $region24
      $region23: #{tpu_custom_call.1} parent=5 // pred_region
        // Predicated region
        $region25: #{tpu_custom_call.1} parent=23 // pred_check
          %p167 = pneg %p37
        $region26: #{tpu_custom_call.1} parent=23 // pred_check_branch
          %169 = sbr.rel (%p167) target = $region28
        $region27: #{tpu_custom_call.1} parent=23 // pred_region
          %s170 = sand.u32 %s27, 1
          %s171 = scalar_lea.sflag [#allocation5], %s170
          %s172 = sand.u32 %s27, 1
          %s173 = smul.addr %s172, 256
          %s174 = scalar_lea.vmem [#allocation4], %s173
          %s175 = smul.u32 8, %s17
          %s177 = ssub.s32 4096, 4096
          %178 = vsyncadd %s171, %s177
          %s179 = smul.addr %s175, 4
          %s180 = smul.addr %s179, 128
          %s181 = scalar_lea.hbm %s0, %s180
          %s182 = sshll.u32 %s174, 4
          %s183 = int_to_ptr.vmem [resolvable:$true] %s182
          %188 = dma.hbm_to_vmem [thread:$0]  %s181, 4096, %s183, %s171, 512, 512, 32
        $region28: #{tpu_custom_call.1} parent=23 // pred_fallthru
          _
        // Predicated region
        $region29: #{tpu_custom_call.1} parent=23 // pred_check
          %p189 = pneg %p63
        $region30: #{tpu_custom_call.1} parent=23 // pred_check_branch
          %191 = sbr.rel (%p189) target = $region32
        $region31: #{tpu_custom_call.1} parent=23 // pred_region
          %s192 = sand.u32 %s17, 1
          %s193 = scalar_lea.sflag [#allocation8], %s192
          %s194 = sand.u32 %s53, 1
          %s195 = smul.addr %s194, 256
          %s196 = scalar_lea.vmem [#allocation7], %s195
          %s197 = smul.u32 32, %s17
          %s199 = ssub.s32 4096, 4096
          %200 = vsyncadd %s193, %s199
          %s201 = smul.addr %s197, 128
          %s202 = scalar_lea.hbm %s1, %s201
          %s203 = sshll.u32 %s196, 4
          %s204 = int_to_ptr.vmem [resolvable:$true] %s203
          %209 = dma.hbm_to_vmem [thread:$0]  %s202, 4096, %s204, %s193, 128, 128, 8
        $region32: #{tpu_custom_call.1} parent=23 // pred_fallthru
          _
      $region24: #{tpu_custom_call.1} parent=5 // pred_fallthru
        _
      %p210 = scmp.le.s32.totalorder 1, %s17
      %p211 = scmp.lt.s32.totalorder %s17, 3
      %p212 = pnand %p210, %p211
      %p213 = pneg %p212
      // Predicated region
      $region33: #{tpu_custom_call.1} parent=5 // pred_check
        _
      $region34: #{tpu_custom_call.1} parent=5 // pred_check_branch
        %215 = sbr.rel (%p212) target = $region36
      $region35: #{tpu_custom_call.1} parent=5 // pred_region
        %s216 = ssub.s32 %s17, 1
        %s217 = sand.u32 %s30, 1
        %s218 = scalar_lea.sflag [#allocation5], %s217
        %s219 = sand.u32 %s30, 1
        %s220 = smul.addr %s219, 256
        %s221 = scalar_lea.vmem [#allocation4], %s220
        // Predicated region
        $region37: #{tpu_custom_call.1} parent=35 // pred_check
          %p222 = pneg %p43
        $region38: #{tpu_custom_call.1} parent=35 // pred_check_branch
          %224 = sbr.rel (%p222) target = $region40
        $region39: #{tpu_custom_call.1} parent=35 // pred_region
          %225 = dma.done %s218, 4096
        $region40: #{tpu_custom_call.1} parent=35 // pred_fallthru
          _
        %s226 = sand.u32 %s22, 1
        %s227 = scalar_lea.sflag [#allocation8], %s226
        %s228 = sand.u32 %s56, 1
        %s229 = smul.addr %s228, 256
        %s230 = scalar_lea.vmem [#allocation7], %s229
        // Predicated region
        $region41: #{tpu_custom_call.1} parent=35 // pred_check
          %p231 = pneg %p69
        $region42: #{tpu_custom_call.1} parent=35 // pred_check_branch
          %233 = sbr.rel (%p231) target = $region44
        $region43: #{tpu_custom_call.1} parent=35 // pred_region
          %234 = dma.done %s227, 4096
        $region44: #{tpu_custom_call.1} parent=35 // pred_fallthru
          _
        // Predicated region
        $region45: #{tpu_custom_call.1} parent=35 // pred_check
          %p235 = pneg %p90
        $region46: #{tpu_custom_call.1} parent=35 // pred_check_branch
          %237 = sbr.rel (%p235) target = $region48
        $region47: #{tpu_custom_call.1} parent=35 // pred_region
          %238 = dma.done [#allocation8], 2048
        $region48: #{tpu_custom_call.1} parent=35 // pred_fallthru
          _
        %s239 = sand.u32 %s30, 1
        %s240 = scalar_lea.sflag [#allocation5], %s239
        %s241 = sand.u32 %s30, 1
        %s242 = smul.addr %s241, 256
        %s243 = scalar_lea.vmem [#allocation4], %s242
        %p244 = pneg %p43
        %p245 = pneg %p40
        %s246 = sand.u32 %s22, 1
        %s247 = scalar_lea.sflag [#allocation8], %s246
        %s248 = sand.u32 %s56, 1
        %s249 = smul.addr %s248, 256
        %s250 = scalar_lea.vmem [#allocation7], %s249
        %p251 = pneg %p69
        %p252 = pneg %p66
        %p253 = pneg %p90
        %p254 = pneg %p87
        %p255 = pneg %p111
        %p256 = pneg %p108
        %p257 = pneg %p132
        %p258 = pneg %p129
        %s259 = smul.u32 8, %s22
        %s260 = smul.u32 32, %s22
        %p263 = scmp.eq.s32.totalorder %s22, 0
        // Predicated region
        $region49: #{tpu_custom_call.1} parent=35 // pred_check
          %p264 = pneg %p263
        $region50: #{tpu_custom_call.1} parent=35 // pred_check_branch
          %266 = sbr.rel (%p264) target = $region52
        $region51: #{tpu_custom_call.1} parent=35 // pred_region
          %267 = vst [vmem:[#allocation2] sm:$0xff] 0.0
          %268 = vst [vmem:[#allocation2 + $0x8] sm:$0xff] 0.0
          %269 = vst [vmem:[#allocation2 + $0x10] sm:$0xff] 0.0
          %270 = vst [vmem:[#allocation2 + $0x18] sm:$0xff] 0.0
          %271 = vst [vmem:[#allocation2 + $0x20] sm:$0xff] 0.0
          %272 = vst [vmem:[#allocation2 + $0x28] sm:$0xff] 0.0
          %273 = vst [vmem:[#allocation2 + $0x30] sm:$0xff] 0.0
          %274 = vst [vmem:[#allocation2 + $0x38] sm:$0xff] 0.0
          %275 = vst [vmem:[#allocation2 + $0x40] sm:$0xff] 0.0
          %276 = vst [vmem:[#allocation2 + $0x48] sm:$0xff] 0.0
          %277 = vst [vmem:[#allocation2 + $0x50] sm:$0xff] 0.0
          %278 = vst [vmem:[#allocation2 + $0x58] sm:$0xff] 0.0
          %279 = vst [vmem:[#allocation2 + $0x60] sm:$0xff] 0.0
          %280 = vst [vmem:[#allocation2 + $0x68] sm:$0xff] 0.0
          %281 = vst [vmem:[#allocation2 + $0x70] sm:$0xff] 0.0
          %282 = vst [vmem:[#allocation2 + $0x78] sm:$0xff] 0.0
          %283 = vst [vmem:[#allocation2 + $0x80] sm:$0xff] 0.0
          %284 = vst [vmem:[#allocation2 + $0x88] sm:$0xff] 0.0
          %285 = vst [vmem:[#allocation2 + $0x90] sm:$0xff] 0.0
          %286 = vst [vmem:[#allocation2 + $0x98] sm:$0xff] 0.0
          %287 = vst [vmem:[#allocation2 + $0xa0] sm:$0xff] 0.0
          %288 = vst [vmem:[#allocation2 + $0xa8] sm:$0xff] 0.0
          %289 = vst [vmem:[#allocation2 + $0xb0] sm:$0xff] 0.0
          %290 = vst [vmem:[#allocation2 + $0xb8] sm:$0xff] 0.0
          %291 = vst [vmem:[#allocation2 + $0xc0] sm:$0xff] 0.0
          %292 = vst [vmem:[#allocation2 + $0xc8] sm:$0xff] 0.0
          %293 = vst [vmem:[#allocation2 + $0xd0] sm:$0xff] 0.0
          %294 = vst [vmem:[#allocation2 + $0xd8] sm:$0xff] 0.0
          %295 = vst [vmem:[#allocation2 + $0xe0] sm:$0xff] 0.0
          %296 = vst [vmem:[#allocation2 + $0xe8] sm:$0xff] 0.0
          %297 = vst [vmem:[#allocation2 + $0xf0] sm:$0xff] 0.0
          %298 = vst [vmem:[#allocation2 + $0xf8] sm:$0xff] 0.0
          %299 = vst [vmem:[#allocation2 + $0x100] sm:$0xff] 0.0
          %300 = vst [vmem:[#allocation2 + $0x108] sm:$0xff] 0.0
          %301 = vst [vmem:[#allocation2 + $0x110] sm:$0xff] 0.0
          %302 = vst [vmem:[#allocation2 + $0x118] sm:$0xff] 0.0
          %303 = vst [vmem:[#allocation2 + $0x120] sm:$0xff] 0.0
          %304 = vst [vmem:[#allocation2 + $0x128] sm:$0xff] 0.0
          %305 = vst [vmem:[#allocation2 + $0x130] sm:$0xff] 0.0
          %306 = vst [vmem:[#allocation2 + $0x138] sm:$0xff] 0.0
          %307 = vst [vmem:[#allocation2 + $0x140] sm:$0xff] 0.0
          %308 = vst [vmem:[#allocation2 + $0x148] sm:$0xff] 0.0
          %309 = vst [vmem:[#allocation2 + $0x150] sm:$0xff] 0.0
          %310 = vst [vmem:[#allocation2 + $0x158] sm:$0xff] 0.0
          %311 = vst [vmem:[#allocation2 + $0x160] sm:$0xff] 0.0
          %312 = vst [vmem:[#allocation2 + $0x168] sm:$0xff] 0.0
          %313 = vst [vmem:[#allocation2 + $0x170] sm:$0xff] 0.0
          %314 = vst [vmem:[#allocation2 + $0x178] sm:$0xff] 0.0
          %315 = vst [vmem:[#allocation2 + $0x180] sm:$0xff] 0.0
          %316 = vst [vmem:[#allocation2 + $0x188] sm:$0xff] 0.0
          %317 = vst [vmem:[#allocation2 + $0x190] sm:$0xff] 0.0
          %318 = vst [vmem:[#allocation2 + $0x198] sm:$0xff] 0.0
          %319 = vst [vmem:[#allocation2 + $0x1a0] sm:$0xff] 0.0
          %320 = vst [vmem:[#allocation2 + $0x1a8] sm:$0xff] 0.0
          %321 = vst [vmem:[#allocation2 + $0x1b0] sm:$0xff] 0.0
          %322 = vst [vmem:[#allocation2 + $0x1b8] sm:$0xff] 0.0
          %323 = vst [vmem:[#allocation2 + $0x1c0] sm:$0xff] 0.0
          %324 = vst [vmem:[#allocation2 + $0x1c8] sm:$0xff] 0.0
          %325 = vst [vmem:[#allocation2 + $0x1d0] sm:$0xff] 0.0
          %326 = vst [vmem:[#allocation2 + $0x1d8] sm:$0xff] 0.0
          %327 = vst [vmem:[#allocation2 + $0x1e0] sm:$0xff] 0.0
          %328 = vst [vmem:[#allocation2 + $0x1e8] sm:$0xff] 0.0
          %329 = vst [vmem:[#allocation2 + $0x1f0] sm:$0xff] 0.0
          %330 = vst [vmem:[#allocation2 + $0x1f8] sm:$0xff] 0.0
          %vm331 = vcmask 7168
          %332 = vst.msk [vmem:[#allocation3] sm:$0xff] %vm331, 0.0
          %333 = vst.msk [vmem:[#allocation3 + $0x8] sm:$0xff] %vm331, 0.0
          %334 = vst.msk [vmem:[#allocation3 + $0x10] sm:$0xff] %vm331, 0.0
          %335 = vst.msk [vmem:[#allocation3 + $0x18] sm:$0xff] %vm331, 0.0
          %336 = vst.msk [vmem:[#allocation3 + $0x20] sm:$0xff] %vm331, 0.0
          %337 = vst.msk [vmem:[#allocation3 + $0x28] sm:$0xff] %vm331, 0.0
          %338 = vst.msk [vmem:[#allocation3 + $0x30] sm:$0xff] %vm331, 0.0
          %339 = vst.msk [vmem:[#allocation3 + $0x38] sm:$0xff] %vm331, 0.0
          %340 = vst.msk [vmem:[#allocation3 + $0x40] sm:$0xff] %vm331, 0.0
          %341 = vst.msk [vmem:[#allocation3 + $0x48] sm:$0xff] %vm331, 0.0
          %342 = vst.msk [vmem:[#allocation3 + $0x50] sm:$0xff] %vm331, 0.0
          %343 = vst.msk [vmem:[#allocation3 + $0x58] sm:$0xff] %vm331, 0.0
          %344 = vst.msk [vmem:[#allocation3 + $0x60] sm:$0xff] %vm331, 0.0
          %345 = vst.msk [vmem:[#allocation3 + $0x68] sm:$0xff] %vm331, 0.0
          %346 = vst.msk [vmem:[#allocation3 + $0x70] sm:$0xff] %vm331, 0.0
          %347 = vst.msk [vmem:[#allocation3 + $0x78] sm:$0xff] %vm331, 0.0
          %348 = vst.msk [vmem:[#allocation3 + $0x80] sm:$0xff] %vm331, 0.0
          %349 = vst.msk [vmem:[#allocation3 + $0x88] sm:$0xff] %vm331, 0.0
          %350 = vst.msk [vmem:[#allocation3 + $0x90] sm:$0xff] %vm331, 0.0
          %351 = vst.msk [vmem:[#allocation3 + $0x98] sm:$0xff] %vm331, 0.0
          %352 = vst.msk [vmem:[#allocation3 + $0xa0] sm:$0xff] %vm331, 0.0
          %353 = vst.msk [vmem:[#allocation3 + $0xa8] sm:$0xff] %vm331, 0.0
          %354 = vst.msk [vmem:[#allocation3 + $0xb0] sm:$0xff] %vm331, 0.0
          %355 = vst.msk [vmem:[#allocation3 + $0xb8] sm:$0xff] %vm331, 0.0
          %356 = vst.msk [vmem:[#allocation3 + $0xc0] sm:$0xff] %vm331, 0.0
          %357 = vst.msk [vmem:[#allocation3 + $0xc8] sm:$0xff] %vm331, 0.0
          %358 = vst.msk [vmem:[#allocation3 + $0xd0] sm:$0xff] %vm331, 0.0
          %359 = vst.msk [vmem:[#allocation3 + $0xd8] sm:$0xff] %vm331, 0.0
          %360 = vst.msk [vmem:[#allocation3 + $0xe0] sm:$0xff] %vm331, 0.0
          %361 = vst.msk [vmem:[#allocation3 + $0xe8] sm:$0xff] %vm331, 0.0
          %362 = vst.msk [vmem:[#allocation3 + $0xf0] sm:$0xff] %vm331, 0.0
          %363 = vst.msk [vmem:[#allocation3 + $0xf8] sm:$0xff] %vm331, 0.0
          %364 = vst.msk [vmem:[#allocation3 + $0x100] sm:$0xff] %vm331, 0.0
          %365 = vst.msk [vmem:[#allocation3 + $0x108] sm:$0xff] %vm331, 0.0
          %366 = vst.msk [vmem:[#allocation3 + $0x110] sm:$0xff] %vm331, 0.0
          %367 = vst.msk [vmem:[#allocation3 + $0x118] sm:$0xff] %vm331, 0.0
          %368 = vst.msk [vmem:[#allocation3 + $0x120] sm:$0xff] %vm331, 0.0
          %369 = vst.msk [vmem:[#allocation3 + $0x128] sm:$0xff] %vm331, 0.0
          %370 = vst.msk [vmem:[#allocation3 + $0x130] sm:$0xff] %vm331, 0.0
          %371 = vst.msk [vmem:[#allocation3 + $0x138] sm:$0xff] %vm331, 0.0
          %372 = vst.msk [vmem:[#allocation3 + $0x140] sm:$0xff] %vm331, 0.0
          %373 = vst.msk [vmem:[#allocation3 + $0x148] sm:$0xff] %vm331, 0.0
          %374 = vst.msk [vmem:[#allocation3 + $0x150] sm:$0xff] %vm331, 0.0
          %375 = vst.msk [vmem:[#allocation3 + $0x158] sm:$0xff] %vm331, 0.0
          %376 = vst.msk [vmem:[#allocation3 + $0x160] sm:$0xff] %vm331, 0.0
          %377 = vst.msk [vmem:[#allocation3 + $0x168] sm:$0xff] %vm331, 0.0
          %378 = vst.msk [vmem:[#allocation3 + $0x170] sm:$0xff] %vm331, 0.0
          %379 = vst.msk [vmem:[#allocation3 + $0x178] sm:$0xff] %vm331, 0.0
          %380 = vst.msk [vmem:[#allocation3 + $0x180] sm:$0xff] %vm331, 0.0
          %381 = vst.msk [vmem:[#allocation3 + $0x188] sm:$0xff] %vm331, 0.0
          %382 = vst.msk [vmem:[#allocation3 + $0x190] sm:$0xff] %vm331, 0.0
          %383 = vst.msk [vmem:[#allocation3 + $0x198] sm:$0xff] %vm331, 0.0
          %384 = vst.msk [vmem:[#allocation3 + $0x1a0] sm:$0xff] %vm331, 0.0
          %385 = vst.msk [vmem:[#allocation3 + $0x1a8] sm:$0xff] %vm331, 0.0
          %386 = vst.msk [vmem:[#allocation3 + $0x1b0] sm:$0xff] %vm331, 0.0
          %387 = vst.msk [vmem:[#allocation3 + $0x1b8] sm:$0xff] %vm331, 0.0
          %388 = vst.msk [vmem:[#allocation3 + $0x1c0] sm:$0xff] %vm331, 0.0
          %389 = vst.msk [vmem:[#allocation3 + $0x1c8] sm:$0xff] %vm331, 0.0
          %390 = vst.msk [vmem:[#allocation3 + $0x1d0] sm:$0xff] %vm331, 0.0
          %391 = vst.msk [vmem:[#allocation3 + $0x1d8] sm:$0xff] %vm331, 0.0
          %392 = vst.msk [vmem:[#allocation3 + $0x1e0] sm:$0xff] %vm331, 0.0
          %393 = vst.msk [vmem:[#allocation3 + $0x1e8] sm:$0xff] %vm331, 0.0
          %394 = vst.msk [vmem:[#allocation3 + $0x1f0] sm:$0xff] %vm331, 0.0
          %395 = vst.msk [vmem:[#allocation3 + $0x1f8] sm:$0xff] %vm331, 0.0
        $region52: #{tpu_custom_call.1} parent=35 // pred_fallthru
          _
        %v396 = vld [vmem:[%s221] sm:$0xff]
        %v397 = vld [vmem:[%s221 + $0x8] sm:$0xff]
        %v398 = vld [vmem:[%s221 + $0x10] sm:$0xff]
        %v399 = vld [vmem:[%s221 + $0x18] sm:$0xff]
        %v400 = vld [vmem:[%s221 + $0x20] sm:$0xff]
        %v401 = vld [vmem:[%s221 + $0x28] sm:$0xff]
        %v402 = vld [vmem:[%s221 + $0x30] sm:$0xff]
        %v403 = vld [vmem:[%s221 + $0x38] sm:$0xff]
        %v404 = vld [vmem:[%s221 + $0x40] sm:$0xff]
        %v405 = vld [vmem:[%s221 + $0x48] sm:$0xff]
        %v406 = vld [vmem:[%s221 + $0x50] sm:$0xff]
        %v407 = vld [vmem:[%s221 + $0x58] sm:$0xff]
        %v408 = vld [vmem:[%s221 + $0x60] sm:$0xff]
        %v409 = vld [vmem:[%s221 + $0x68] sm:$0xff]
        %v410 = vld [vmem:[%s221 + $0x70] sm:$0xff]
        %v411 = vld [vmem:[%s221 + $0x78] sm:$0xff]
        %v412 = vld [vmem:[%s221 + $0x80] sm:$0xff]
        %v413 = vld [vmem:[%s221 + $0x88] sm:$0xff]
        %v414 = vld [vmem:[%s221 + $0x90] sm:$0xff]
        %v415 = vld [vmem:[%s221 + $0x98] sm:$0xff]
        %v416 = vld [vmem:[%s221 + $0xa0] sm:$0xff]
        %v417 = vld [vmem:[%s221 + $0xa8] sm:$0xff]
        %v418 = vld [vmem:[%s221 + $0xb0] sm:$0xff]
        %v419 = vld [vmem:[%s221 + $0xb8] sm:$0xff]
        %v420 = vld [vmem:[%s221 + $0xc0] sm:$0xff]
        %v421 = vld [vmem:[%s221 + $0xc8] sm:$0xff]
        %v422 = vld [vmem:[%s221 + $0xd0] sm:$0xff]
        %v423 = vld [vmem:[%s221 + $0xd8] sm:$0xff]
        %v424 = vld [vmem:[%s221 + $0xe0] sm:$0xff]
        %v425 = vld [vmem:[%s221 + $0xe8] sm:$0xff]
        %v426 = vld [vmem:[%s221 + $0xf0] sm:$0xff]
        %v427 = vld [vmem:[%s221 + $0xf8] sm:$0xff]
        %v428 = vunpack.c.l.s8.bf16 %v396
        %v429 = vunpack.c.l.s8.bf16 %v397
        %v430 = vunpack.c.l.s8.bf16 %v398
        %v431 = vunpack.c.l.s8.bf16 %v399
        %v432 = vunpack.c.h.s8.bf16 %v396
        %v433 = vunpack.c.h.s8.bf16 %v397
        %v434 = vunpack.c.h.s8.bf16 %v398
        %v435 = vunpack.c.h.s8.bf16 %v399
        %v436 = vunpack.c.l.s8.bf16 %v400
        %v437 = vunpack.c.l.s8.bf16 %v401
        %v438 = vunpack.c.l.s8.bf16 %v402
        %v439 = vunpack.c.l.s8.bf16 %v403
        %v440 = vunpack.c.h.s8.bf16 %v400
        %v441 = vunpack.c.h.s8.bf16 %v401
        %v442 = vunpack.c.h.s8.bf16 %v402
        %v443 = vunpack.c.h.s8.bf16 %v403
        %v444 = vunpack.c.l.s8.bf16 %v404
        %v445 = vunpack.c.l.s8.bf16 %v405
        %v446 = vunpack.c.l.s8.bf16 %v406
        %v447 = vunpack.c.l.s8.bf16 %v407
        %v448 = vunpack.c.h.s8.bf16 %v404
        %v449 = vunpack.c.h.s8.bf16 %v405
        %v450 = vunpack.c.h.s8.bf16 %v406
        %v451 = vunpack.c.h.s8.bf16 %v407
        %v452 = vunpack.c.l.s8.bf16 %v408
        %v453 = vunpack.c.l.s8.bf16 %v409
        %v454 = vunpack.c.l.s8.bf16 %v410
        %v455 = vunpack.c.l.s8.bf16 %v411
        %v456 = vunpack.c.h.s8.bf16 %v408
        %v457 = vunpack.c.h.s8.bf16 %v409
        %v458 = vunpack.c.h.s8.bf16 %v410
        %v459 = vunpack.c.h.s8.bf16 %v411
        %v460 = vunpack.c.l.s8.bf16 %v412
        %v461 = vunpack.c.l.s8.bf16 %v413
        %v462 = vunpack.c.l.s8.bf16 %v414
        %v463 = vunpack.c.l.s8.bf16 %v415
        %v464 = vunpack.c.h.s8.bf16 %v412
        %v465 = vunpack.c.h.s8.bf16 %v413
        %v466 = vunpack.c.h.s8.bf16 %v414
        %v467 = vunpack.c.h.s8.bf16 %v415
        %v468 = vunpack.c.l.s8.bf16 %v416
        %v469 = vunpack.c.l.s8.bf16 %v417
        %v470 = vunpack.c.l.s8.bf16 %v418
        %v471 = vunpack.c.l.s8.bf16 %v419
        %v472 = vunpack.c.h.s8.bf16 %v416
        %v473 = vunpack.c.h.s8.bf16 %v417
        %v474 = vunpack.c.h.s8.bf16 %v418
        %v475 = vunpack.c.h.s8.bf16 %v419
        %v476 = vunpack.c.l.s8.bf16 %v420
        %v477 = vunpack.c.l.s8.bf16 %v421
        %v478 = vunpack.c.l.s8.bf16 %v422
        %v479 = vunpack.c.l.s8.bf16 %v423
        %v480 = vunpack.c.h.s8.bf16 %v420
        %v481 = vunpack.c.h.s8.bf16 %v421
        %v482 = vunpack.c.h.s8.bf16 %v422
        %v483 = vunpack.c.h.s8.bf16 %v423
        %v484 = vunpack.c.l.s8.bf16 %v424
        %v485 = vunpack.c.l.s8.bf16 %v425
        %v486 = vunpack.c.l.s8.bf16 %v426
        %v487 = vunpack.c.l.s8.bf16 %v427
        %v488 = vunpack.c.h.s8.bf16 %v424
        %v489 = vunpack.c.h.s8.bf16 %v425
        %v490 = vunpack.c.h.s8.bf16 %v426
        %v491 = vunpack.c.h.s8.bf16 %v427
        %492 = vmatprep.subr.bf16.mxu0 0
        %493 = vmatpush1.bf16.msra.mxu0 1065369472
        %494 = vmatprep.subr.bf16.mxu0 0
        %495 = vmatpush1.bf16.msra.mxu0 1065369472
        %496 = vmatprep.subr.bf16.mxu0 0
        %497 = vmatpush1.bf16.msra.mxu0 1065369472
        %498 = vmatprep.subr.bf16.mxu0 0
        %499 = vmatpush1.bf16.msra.mxu0 1065369472
        %500 = vmatprep.subr.bf16.mxu0 0
        %501 = vmatpush1.bf16.msra.mxu0 1065369472
        %502 = vmatprep.subr.bf16.mxu0 0
        %503 = vmatpush1.bf16.msra.mxu0 1065369472
        %504 = vmatprep.subr.bf16.mxu0 0
        %505 = vmatpush1.bf16.msra.mxu0 1065369472
        %506 = vmatprep.subr.bf16.mxu0 0
        %507 = vmatpush1.bf16.msra.mxu0 1065369472
        %508 = vmatprep.subr.bf16.mxu0 0
        %509 = vmatpush2.bf16.msra.mxu0 1065369472
        %510 = vmatprep.subr.bf16.mxu0 0
        %511 = vmatpush2.bf16.msra.mxu0 1065369472
        %512 = vmatprep.subr.bf16.mxu0 0
        %513 = vmatpush2.bf16.msra.mxu0 1065369472
        %514 = vmatprep.subr.bf16.mxu0 0
        %515 = vmatpush2.bf16.msra.mxu0 1065369472
        %516 = vmatprep.subr.bf16.mxu0 0
        %517 = vmatpush2.bf16.msra.mxu0 1065369472
        %518 = vmatprep.subr.bf16.mxu0 0
        %519 = vmatpush2.bf16.msra.mxu0 1065369472
        %520 = vmatprep.subr.bf16.mxu0 0
        %521 = vmatpush2.bf16.msra.mxu0 1065369472
        %522 = vmatprep.subr.bf16.mxu0 0
        %523 = vmatpush2.bf16.msra.mxu0 1065369472
        %524 = vmatprep.mubr.bf16.mxu0 %v429
        %525 = vmatmul.mubr.bf16.gmra.mxu0 %v428
        %v526 = vpop.f32.mrf.mxu0
        %v527 = vadd.f32 0.0, %v526
        %v528 = vpop.f32.mrf.mxu0
        %v529 = vpop.f32.mrf.mxu0
        %v530 = vadd.f32 0.0, %v529
        %v531 = vpop.f32.mrf.mxu0
        %532 = vmatprep.mubr.bf16.mxu0 %v433
        %533 = vmatmul.mubr.bf16.gmra.mxu0 %v432
        %v534 = vpop.f32.mrf.mxu0
        %v535 = vadd.f32 0.0, %v534
        %v536 = vpop.f32.mrf.mxu0
        %v537 = vpop.f32.mrf.mxu0
        %v538 = vadd.f32 0.0, %v537
        %v539 = vpop.f32.mrf.mxu0
        %540 = vmatprep.mubr.bf16.mxu0 %v437
        %541 = vmatmul.mubr.bf16.gmra.mxu0 %v436
        %v542 = vpop.f32.mrf.mxu0
        %v543 = vadd.f32 0.0, %v542
        %v544 = vpop.f32.mrf.mxu0
        %v545 = vpop.f32.mrf.mxu0
        %v546 = vadd.f32 0.0, %v545
        %v547 = vpop.f32.mrf.mxu0
        %548 = vmatprep.mubr.bf16.mxu0 %v441
        %549 = vmatmul.mubr.bf16.gmra.mxu0 %v440
        %v550 = vpop.f32.mrf.mxu0
        %v551 = vadd.f32 0.0, %v550
        %v552 = vpop.f32.mrf.mxu0
        %v553 = vpop.f32.mrf.mxu0
        %v554 = vadd.f32 0.0, %v553
        %v555 = vpop.f32.mrf.mxu0
        %556 = vmatprep.mubr.bf16.mxu0 %v445
        %557 = vmatmul.mubr.bf16.gmra.mxu0 %v444
        %v558 = vpop.f32.mrf.mxu0
        %v559 = vadd.f32 0.0, %v558
        %v560 = vpop.f32.mrf.mxu0
        %v561 = vpop.f32.mrf.mxu0
        %v562 = vadd.f32 0.0, %v561
        %v563 = vpop.f32.mrf.mxu0
        %564 = vmatprep.mubr.bf16.mxu0 %v449
        %565 = vmatmul.mubr.bf16.gmra.mxu0 %v448
        %v566 = vpop.f32.mrf.mxu0
        %v567 = vadd.f32 0.0, %v566
        %v568 = vpop.f32.mrf.mxu0
        %v569 = vpop.f32.mrf.mxu0
        %v570 = vadd.f32 0.0, %v569
        %v571 = vpop.f32.mrf.mxu0
        %572 = vmatprep.mubr.bf16.mxu0 %v453
        %573 = vmatmul.mubr.bf16.gmra.mxu0 %v452
        %v574 = vpop.f32.mrf.mxu0
        %v575 = vadd.f32 0.0, %v574
        %v576 = vpop.f32.mrf.mxu0
        %v577 = vpop.f32.mrf.mxu0
        %v578 = vadd.f32 0.0, %v577
        %v579 = vpop.f32.mrf.mxu0
        %580 = vmatprep.mubr.bf16.mxu0 %v457
        %581 = vmatmul.mubr.bf16.gmra.mxu0 %v456
        %v582 = vpop.f32.mrf.mxu0
        %v583 = vadd.f32 0.0, %v582
        %v584 = vpop.f32.mrf.mxu0
        %v585 = vpop.f32.mrf.mxu0
        %v586 = vadd.f32 0.0, %v585
        %v587 = vpop.f32.mrf.mxu0
        %588 = vmatprep.mubr.bf16.mxu0 %v461
        %589 = vmatmul.mubr.bf16.gmra.mxu0 %v460
        %v590 = vpop.f32.mrf.mxu0
        %v591 = vadd.f32 0.0, %v590
        %v592 = vpop.f32.mrf.mxu0
        %v593 = vpop.f32.mrf.mxu0
        %v594 = vadd.f32 0.0, %v593
        %v595 = vpop.f32.mrf.mxu0
        %596 = vmatprep.mubr.bf16.mxu0 %v465
        %597 = vmatmul.mubr.bf16.gmra.mxu0 %v464
        %v598 = vpop.f32.mrf.mxu0
        %v599 = vadd.f32 0.0, %v598
        %v600 = vpop.f32.mrf.mxu0
        %v601 = vpop.f32.mrf.mxu0
        %v602 = vadd.f32 0.0, %v601
        %v603 = vpop.f32.mrf.mxu0
        %604 = vmatprep.mubr.bf16.mxu0 %v469
        %605 = vmatmul.mubr.bf16.gmra.mxu0 %v468
        %v606 = vpop.f32.mrf.mxu0
        %v607 = vadd.f32 0.0, %v606
        %v608 = vpop.f32.mrf.mxu0
        %v609 = vpop.f32.mrf.mxu0
        %v610 = vadd.f32 0.0, %v609
        %v611 = vpop.f32.mrf.mxu0
        %612 = vmatprep.mubr.bf16.mxu0 %v473
        %613 = vmatmul.mubr.bf16.gmra.mxu0 %v472
        %v614 = vpop.f32.mrf.mxu0
        %v615 = vadd.f32 0.0, %v614
        %v616 = vpop.f32.mrf.mxu0
        %v617 = vpop.f32.mrf.mxu0
        %v618 = vadd.f32 0.0, %v617
        %v619 = vpop.f32.mrf.mxu0
        %620 = vmatprep.mubr.bf16.mxu0 %v477
        %621 = vmatmul.mubr.bf16.gmra.mxu0 %v476
        %v622 = vpop.f32.mrf.mxu0
        %v623 = vadd.f32 0.0, %v622
        %v624 = vpop.f32.mrf.mxu0
        %v625 = vpop.f32.mrf.mxu0
        %v626 = vadd.f32 0.0, %v625
        %v627 = vpop.f32.mrf.mxu0
        %628 = vmatprep.mubr.bf16.mxu0 %v481
        %629 = vmatmul.mubr.bf16.gmra.mxu0 %v480
        %v630 = vpop.f32.mrf.mxu0
        %v631 = vadd.f32 0.0, %v630
        %v632 = vpop.f32.mrf.mxu0
        %v633 = vpop.f32.mrf.mxu0
        %v634 = vadd.f32 0.0, %v633
        %v635 = vpop.f32.mrf.mxu0
        %636 = vmatprep.mubr.bf16.mxu0 %v485
        %637 = vmatmul.mubr.bf16.gmra.mxu0 %v484
        %v638 = vpop.f32.mrf.mxu0
        %v639 = vadd.f32 0.0, %v638
        %v640 = vpop.f32.mrf.mxu0
        %v641 = vpop.f32.mrf.mxu0
        %v642 = vadd.f32 0.0, %v641
        %v643 = vpop.f32.mrf.mxu0
        %644 = vmatprep.mubr.bf16.mxu0 %v489
        %645 = vmatmul.mubr.bf16.gmra.mxu0 %v488
        %v646 = vpop.f32.mrf.mxu0
        %v647 = vadd.f32 0.0, %v646
        %v648 = vpop.f32.mrf.mxu0
        %v649 = vpop.f32.mrf.mxu0
        %v650 = vadd.f32 0.0, %v649
        %v651 = vpop.f32.mrf.mxu0
        %652 = vdwg.mxu0
        %653 = vmatprep.subr.bf16.mxu0 0
        %654 = vmatpush1.bf16.msra.mxu0 1065369472
        %655 = vmatprep.subr.bf16.mxu0 0
        %656 = vmatpush1.bf16.msra.mxu0 1065369472
        %657 = vmatprep.subr.bf16.mxu0 0
        %658 = vmatpush1.bf16.msra.mxu0 1065369472
        %659 = vmatprep.subr.bf16.mxu0 0
        %660 = vmatpush1.bf16.msra.mxu0 1065369472
        %661 = vmatprep.subr.bf16.mxu0 0
        %662 = vmatpush1.bf16.msra.mxu0 1065369472
        %663 = vmatprep.subr.bf16.mxu0 0
        %664 = vmatpush1.bf16.msra.mxu0 1065369472
        %665 = vmatprep.subr.bf16.mxu0 0
        %666 = vmatpush1.bf16.msra.mxu0 1065369472
        %667 = vmatprep.subr.bf16.mxu0 0
        %668 = vmatpush1.bf16.msra.mxu0 1065369472
        %669 = vmatprep.subr.bf16.mxu0 0
        %670 = vmatpush2.bf16.msra.mxu0 1065369472
        %671 = vmatprep.subr.bf16.mxu0 0
        %672 = vmatpush2.bf16.msra.mxu0 1065369472
        %673 = vmatprep.subr.bf16.mxu0 0
        %674 = vmatpush2.bf16.msra.mxu0 1065369472
        %675 = vmatprep.subr.bf16.mxu0 0
        %676 = vmatpush2.bf16.msra.mxu0 1065369472
        %677 = vmatprep.subr.bf16.mxu0 0
        %678 = vmatpush2.bf16.msra.mxu0 1065369472
        %679 = vmatprep.subr.bf16.mxu0 0
        %680 = vmatpush2.bf16.msra.mxu0 1065369472
        %681 = vmatprep.subr.bf16.mxu0 0
        %682 = vmatpush2.bf16.msra.mxu0 1065369472
        %683 = vmatprep.subr.bf16.mxu0 0
        %684 = vmatpush2.bf16.msra.mxu0 1065369472
        %685 = vmatprep.mubr.bf16.mxu0 %v431
        %686 = vmatmul.mubr.bf16.gmra.mxu0 %v430
        %v687 = vpop.f32.mrf.mxu0
        %v688 = vadd.f32 %v527, %v687
        %v689 = vpop.f32.mrf.mxu0
        %v690 = vpop.f32.mrf.mxu0
        %v691 = vadd.f32 %v530, %v690
        %v692 = vpop.f32.mrf.mxu0
        %693 = vmatprep.mubr.bf16.mxu0 %v435
        %694 = vmatmul.mubr.bf16.gmra.mxu0 %v434
        %v695 = vpop.f32.mrf.mxu0
        %v696 = vadd.f32 %v535, %v695
        %v697 = vpop.f32.mrf.mxu0
        %v698 = vpop.f32.mrf.mxu0
        %v699 = vadd.f32 %v538, %v698
        %v700 = vpop.f32.mrf.mxu0
        %701 = vmatprep.mubr.bf16.mxu0 %v439
        %702 = vmatmul.mubr.bf16.gmra.mxu0 %v438
        %v703 = vpop.f32.mrf.mxu0
        %v704 = vadd.f32 %v543, %v703
        %v705 = vpop.f32.mrf.mxu0
        %v706 = vpop.f32.mrf.mxu0
        %v707 = vadd.f32 %v546, %v706
        %v708 = vpop.f32.mrf.mxu0
        %709 = vmatprep.mubr.bf16.mxu0 %v443
        %710 = vmatmul.mubr.bf16.gmra.mxu0 %v442
        %v711 = vpop.f32.mrf.mxu0
        %v712 = vadd.f32 %v551, %v711
        %v713 = vpop.f32.mrf.mxu0
        %v714 = vpop.f32.mrf.mxu0
        %v715 = vadd.f32 %v554, %v714
        %v716 = vpop.f32.mrf.mxu0
        %717 = vmatprep.mubr.bf16.mxu0 %v447
        %718 = vmatmul.mubr.bf16.gmra.mxu0 %v446
        %v719 = vpop.f32.mrf.mxu0
        %v720 = vadd.f32 %v559, %v719
        %v721 = vpop.f32.mrf.mxu0
        %v722 = vpop.f32.mrf.mxu0
        %v723 = vadd.f32 %v562, %v722
        %v724 = vpop.f32.mrf.mxu0
        %725 = vmatprep.mubr.bf16.mxu0 %v451
        %726 = vmatmul.mubr.bf16.gmra.mxu0 %v450
        %v727 = vpop.f32.mrf.mxu0
        %v728 = vadd.f32 %v567, %v727
        %v729 = vpop.f32.mrf.mxu0
        %v730 = vpop.f32.mrf.mxu0
        %v731 = vadd.f32 %v570, %v730
        %v732 = vpop.f32.mrf.mxu0
        %733 = vmatprep.mubr.bf16.mxu0 %v455
        %734 = vmatmul.mubr.bf16.gmra.mxu0 %v454
        %v735 = vpop.f32.mrf.mxu0
        %v736 = vadd.f32 %v575, %v735
        %v737 = vpop.f32.mrf.mxu0
        %v738 = vpop.f32.mrf.mxu0
        %v739 = vadd.f32 %v578, %v738
        %v740 = vpop.f32.mrf.mxu0
        %741 = vmatprep.mubr.bf16.mxu0 %v459
        %742 = vmatmul.mubr.bf16.gmra.mxu0 %v458
        %v743 = vpop.f32.mrf.mxu0
        %v744 = vadd.f32 %v583, %v743
        %v745 = vpop.f32.mrf.mxu0
        %v746 = vpop.f32.mrf.mxu0
        %v747 = vadd.f32 %v586, %v746
        %v748 = vpop.f32.mrf.mxu0
        %749 = vmatprep.mubr.bf16.mxu0 %v463
        %750 = vmatmul.mubr.bf16.gmra.mxu0 %v462
        %v751 = vpop.f32.mrf.mxu0
        %v752 = vadd.f32 %v591, %v751
        %v753 = vpop.f32.mrf.mxu0
        %v754 = vpop.f32.mrf.mxu0
        %v755 = vadd.f32 %v594, %v754
        %v756 = vpop.f32.mrf.mxu0
        %757 = vmatprep.mubr.bf16.mxu0 %v467
        %758 = vmatmul.mubr.bf16.gmra.mxu0 %v466
        %v759 = vpop.f32.mrf.mxu0
        %v760 = vadd.f32 %v599, %v759
        %v761 = vpop.f32.mrf.mxu0
        %v762 = vpop.f32.mrf.mxu0
        %v763 = vadd.f32 %v602, %v762
        %v764 = vpop.f32.mrf.mxu0
        %765 = vmatprep.mubr.bf16.mxu0 %v471
        %766 = vmatmul.mubr.bf16.gmra.mxu0 %v470
        %v767 = vpop.f32.mrf.mxu0
        %v768 = vadd.f32 %v607, %v767
        %v769 = vpop.f32.mrf.mxu0
        %v770 = vpop.f32.mrf.mxu0
        %v771 = vadd.f32 %v610, %v770
        %v772 = vpop.f32.mrf.mxu0
        %773 = vmatprep.mubr.bf16.mxu0 %v475
        %774 = vmatmul.mubr.bf16.gmra.mxu0 %v474
        %v775 = vpop.f32.mrf.mxu0
        %v776 = vadd.f32 %v615, %v775
        %v777 = vpop.f32.mrf.mxu0
        %v778 = vpop.f32.mrf.mxu0
        %v779 = vadd.f32 %v618, %v778
        %v780 = vpop.f32.mrf.mxu0
        %781 = vmatprep.mubr.bf16.mxu0 %v479
        %782 = vmatmul.mubr.bf16.gmra.mxu0 %v478
        %v783 = vpop.f32.mrf.mxu0
        %v784 = vadd.f32 %v623, %v783
        %v785 = vpop.f32.mrf.mxu0
        %v786 = vpop.f32.mrf.mxu0
        %v787 = vadd.f32 %v626, %v786
        %v788 = vpop.f32.mrf.mxu0
        %789 = vmatprep.mubr.bf16.mxu0 %v483
        %790 = vmatmul.mubr.bf16.gmra.mxu0 %v482
        %v791 = vpop.f32.mrf.mxu0
        %v792 = vadd.f32 %v631, %v791
        %v793 = vpop.f32.mrf.mxu0
        %v794 = vpop.f32.mrf.mxu0
        %v795 = vadd.f32 %v634, %v794
        %v796 = vpop.f32.mrf.mxu0
        %797 = vmatprep.mubr.bf16.mxu0 %v487
        %798 = vmatmul.mubr.bf16.gmra.mxu0 %v486
        %v799 = vpop.f32.mrf.mxu0
        %v800 = vadd.f32 %v639, %v799
        %v801 = vpop.f32.mrf.mxu0
        %v802 = vpop.f32.mrf.mxu0
        %v803 = vadd.f32 %v642, %v802
        %v804 = vpop.f32.mrf.mxu0
        %805 = vmatprep.mubr.bf16.mxu0 %v491
        %806 = vmatmul.mubr.bf16.gmra.mxu0 %v490
        %v807 = vpop.f32.mrf.mxu0
        %v808 = vadd.f32 %v647, %v807
        %v809 = vpop.f32.mrf.mxu0
        %v810 = vpop.f32.mrf.mxu0
        %v811 = vadd.f32 %v650, %v810
        %v812 = vpop.f32.mrf.mxu0
        %813 = vdwg.mxu0
        %v814 = vmax.f32 %v688, 1.0
        %v815 = vmax.f32 %v691, 1.0
        %v816 = vmax.f32 %v696, 1.0
        %v817 = vmax.f32 %v699, 1.0
        %v818 = vmax.f32 %v704, 1.0
        %v819 = vmax.f32 %v707, 1.0
        %v820 = vmax.f32 %v712, 1.0
        %v821 = vmax.f32 %v715, 1.0
        %v822 = vmax.f32 %v720, 1.0
        %v823 = vmax.f32 %v723, 1.0
        %v824 = vmax.f32 %v728, 1.0
        %v825 = vmax.f32 %v731, 1.0
        %v826 = vmax.f32 %v736, 1.0
        %v827 = vmax.f32 %v739, 1.0
        %v828 = vmax.f32 %v744, 1.0
        %v829 = vmax.f32 %v747, 1.0
        %v830 = vmax.f32 %v752, 1.0
        %v831 = vmax.f32 %v755, 1.0
        %v832 = vmax.f32 %v760, 1.0
        %v833 = vmax.f32 %v763, 1.0
        %v834 = vmax.f32 %v768, 1.0
        %v835 = vmax.f32 %v771, 1.0
        %v836 = vmax.f32 %v776, 1.0
        %v837 = vmax.f32 %v779, 1.0
        %v838 = vmax.f32 %v784, 1.0
        %v839 = vmax.f32 %v787, 1.0
        %v840 = vmax.f32 %v792, 1.0
        %v841 = vmax.f32 %v795, 1.0
        %v842 = vmax.f32 %v800, 1.0
        %v843 = vmax.f32 %v803, 1.0
        %v844 = vmax.f32 %v808, 1.0
        %v845 = vmax.f32 %v811, 1.0
        %v846 = vrsqrt.pop %v814
        %v847 = vrsqrt.pop %v815
        %v848 = vrsqrt.pop %v816
        %v849 = vrsqrt.pop %v817
        %v850 = vrsqrt.pop %v818
        %v851 = vrsqrt.pop %v819
        %v852 = vrsqrt.pop %v820
        %v853 = vrsqrt.pop %v821
        %v854 = vrsqrt.pop %v822
        %v855 = vrsqrt.pop %v823
        %v856 = vrsqrt.pop %v824
        %v857 = vrsqrt.pop %v825
        %v858 = vrsqrt.pop %v826
        %v859 = vrsqrt.pop %v827
        %v860 = vrsqrt.pop %v828
        %v861 = vrsqrt.pop %v829
        %v862 = vrsqrt.pop %v830
        %v863 = vrsqrt.pop %v831
        %v864 = vrsqrt.pop %v832
        %v865 = vrsqrt.pop %v833
        %v866 = vrsqrt.pop %v834
        %v867 = vrsqrt.pop %v835
        %v868 = vrsqrt.pop %v836
        %v869 = vrsqrt.pop %v837
        %v870 = vrsqrt.pop %v838
        %v871 = vrsqrt.pop %v839
        %v872 = vrsqrt.pop %v840
        %v873 = vrsqrt.pop %v841
        %v874 = vrsqrt.pop %v842
        %v875 = vrsqrt.pop %v843
        %v876 = vrsqrt.pop %v844
        %v877 = vrsqrt.pop %v845
        %v878 = vld [vmem:[%s230] sm:$0xff]
        %v879 = vld [vmem:[%s230 + $0x8] sm:$0xff]
        %v880 = vld [vmem:[%s230 + $0x10] sm:$0xff]
        %v881 = vld [vmem:[%s230 + $0x18] sm:$0xff]
        %v882 = vld [vmem:[%s230 + $0x20] sm:$0xff]
        %v883 = vld [vmem:[%s230 + $0x28] sm:$0xff]
        %v884 = vld [vmem:[%s230 + $0x30] sm:$0xff]
        %v885 = vld [vmem:[%s230 + $0x38] sm:$0xff]
        %v886 = vld [vmem:[%s230 + $0x40] sm:$0xff]
        %v887 = vld [vmem:[%s230 + $0x48] sm:$0xff]
        %v888 = vld [vmem:[%s230 + $0x50] sm:$0xff]
        %v889 = vld [vmem:[%s230 + $0x58] sm:$0xff]
        %v890 = vld [vmem:[%s230 + $0x60] sm:$0xff]
        %v891 = vld [vmem:[%s230 + $0x68] sm:$0xff]
        %v892 = vld [vmem:[%s230 + $0x70] sm:$0xff]
        %v893 = vld [vmem:[%s230 + $0x78] sm:$0xff]
        %v894 = vld [vmem:[%s230 + $0x80] sm:$0xff]
        %v895 = vld [vmem:[%s230 + $0x88] sm:$0xff]
        %v896 = vld [vmem:[%s230 + $0x90] sm:$0xff]
        %v897 = vld [vmem:[%s230 + $0x98] sm:$0xff]
        %v898 = vld [vmem:[%s230 + $0xa0] sm:$0xff]
        %v899 = vld [vmem:[%s230 + $0xa8] sm:$0xff]
        %v900 = vld [vmem:[%s230 + $0xb0] sm:$0xff]
        %v901 = vld [vmem:[%s230 + $0xb8] sm:$0xff]
        %v902 = vld [vmem:[%s230 + $0xc0] sm:$0xff]
        %v903 = vld [vmem:[%s230 + $0xc8] sm:$0xff]
        %v904 = vld [vmem:[%s230 + $0xd0] sm:$0xff]
        %v905 = vld [vmem:[%s230 + $0xd8] sm:$0xff]
        %v906 = vld [vmem:[%s230 + $0xe0] sm:$0xff]
        %v907 = vld [vmem:[%s230 + $0xe8] sm:$0xff]
        %v908 = vld [vmem:[%s230 + $0xf0] sm:$0xff]
        %v909 = vld [vmem:[%s230 + $0xf8] sm:$0xff]
        %911 = vset.pattern.permute.xlu0 0
        %912 = vperm.xlu0 %911, %v846
        %v913 = vpop.permute.xlu0 %912
        %916 = vset.pattern.permute.xlu0 0
        %917 = vperm.xlu0 %916, %v847
        %v918 = vpop.permute.xlu0 %917
        %921 = vset.pattern.permute.xlu0 0
        %922 = vperm.xlu0 %921, %v848
        %v923 = vpop.permute.xlu0 %922
        %926 = vset.pattern.permute.xlu0 0
        %927 = vperm.xlu0 %926, %v849
        %v928 = vpop.permute.xlu0 %927
        %931 = vset.pattern.permute.xlu0 0
        %932 = vperm.xlu0 %931, %v850
        %v933 = vpop.permute.xlu0 %932
        %936 = vset.pattern.permute.xlu0 0
        %937 = vperm.xlu0 %936, %v851
        %v938 = vpop.permute.xlu0 %937
        %941 = vset.pattern.permute.xlu0 0
        %942 = vperm.xlu0 %941, %v852
        %v943 = vpop.permute.xlu0 %942
        %946 = vset.pattern.permute.xlu0 0
        %947 = vperm.xlu0 %946, %v853
        %v948 = vpop.permute.xlu0 %947
        %951 = vset.pattern.permute.xlu0 0
        %952 = vperm.xlu0 %951, %v854
        %v953 = vpop.permute.xlu0 %952
        %956 = vset.pattern.permute.xlu0 0
        %957 = vperm.xlu0 %956, %v855
        %v958 = vpop.permute.xlu0 %957
        %961 = vset.pattern.permute.xlu0 0
        %962 = vperm.xlu0 %961, %v856
        %v963 = vpop.permute.xlu0 %962
        %966 = vset.pattern.permute.xlu0 0
        %967 = vperm.xlu0 %966, %v857
        %v968 = vpop.permute.xlu0 %967
        %971 = vset.pattern.permute.xlu0 0
        %972 = vperm.xlu0 %971, %v858
        %v973 = vpop.permute.xlu0 %972
        %976 = vset.pattern.permute.xlu0 0
        %977 = vperm.xlu0 %976, %v859
        %v978 = vpop.permute.xlu0 %977
        %981 = vset.pattern.permute.xlu0 0
        %982 = vperm.xlu0 %981, %v860
        %v983 = vpop.permute.xlu0 %982
        %986 = vset.pattern.permute.xlu0 0
        %987 = vperm.xlu0 %986, %v861
        %v988 = vpop.permute.xlu0 %987
        %991 = vset.pattern.permute.xlu0 0
        %992 = vperm.xlu0 %991, %v862
        %v993 = vpop.permute.xlu0 %992
        %996 = vset.pattern.permute.xlu0 0
        %997 = vperm.xlu0 %996, %v863
        %v998 = vpop.permute.xlu0 %997
        %1001 = vset.pattern.permute.xlu0 0
        %1002 = vperm.xlu0 %1001, %v864
        %v1003 = vpop.permute.xlu0 %1002
        %1006 = vset.pattern.permute.xlu0 0
        %1007 = vperm.xlu0 %1006, %v865
        %v1008 = vpop.permute.xlu0 %1007
        %1011 = vset.pattern.permute.xlu0 0
        %1012 = vperm.xlu0 %1011, %v866
        %v1013 = vpop.permute.xlu0 %1012
        %1016 = vset.pattern.permute.xlu0 0
        %1017 = vperm.xlu0 %1016, %v867
        %v1018 = vpop.permute.xlu0 %1017
        %1021 = vset.pattern.permute.xlu0 0
        %1022 = vperm.xlu0 %1021, %v868
        %v1023 = vpop.permute.xlu0 %1022
        %1026 = vset.pattern.permute.xlu0 0
        %1027 = vperm.xlu0 %1026, %v869
        %v1028 = vpop.permute.xlu0 %1027
        %1031 = vset.pattern.permute.xlu0 0
        %1032 = vperm.xlu0 %1031, %v870
        %v1033 = vpop.permute.xlu0 %1032
        %1036 = vset.pattern.permute.xlu0 0
        %1037 = vperm.xlu0 %1036, %v871
        %v1038 = vpop.permute.xlu0 %1037
        %1041 = vset.pattern.permute.xlu0 0
        %1042 = vperm.xlu0 %1041, %v872
        %v1043 = vpop.permute.xlu0 %1042
        %1046 = vset.pattern.permute.xlu0 0
        %1047 = vperm.xlu0 %1046, %v873
        %v1048 = vpop.permute.xlu0 %1047
        %1051 = vset.pattern.permute.xlu0 0
        %1052 = vperm.xlu0 %1051, %v874
        %v1053 = vpop.permute.xlu0 %1052
        %1056 = vset.pattern.permute.xlu0 0
        %1057 = vperm.xlu0 %1056, %v875
        %v1058 = vpop.permute.xlu0 %1057
        %1061 = vset.pattern.permute.xlu0 0
        %1062 = vperm.xlu0 %1061, %v876
        %v1063 = vpop.permute.xlu0 %1062
        %1066 = vset.pattern.permute.xlu0 0
        %1067 = vperm.xlu0 %1066, %v877
        %v1068 = vpop.permute.xlu0 %1067
        %v1070 = vmul.f32 %v878, %v913
        %v1071 = vmul.f32 %v879, %v918
        %v1072 = vmul.f32 %v880, %v923
        %v1073 = vmul.f32 %v881, %v928
        %v1074 = vmul.f32 %v882, %v933
        %v1075 = vmul.f32 %v883, %v938
        %v1076 = vmul.f32 %v884, %v943
        %v1077 = vmul.f32 %v885, %v948
        %v1078 = vmul.f32 %v886, %v953
        %v1079 = vmul.f32 %v887, %v958
        %v1080 = vmul.f32 %v888, %v963
        %v1081 = vmul.f32 %v889, %v968
        %v1082 = vmul.f32 %v890, %v973
        %v1083 = vmul.f32 %v891, %v978
        %v1084 = vmul.f32 %v892, %v983
        %v1085 = vmul.f32 %v893, %v988
        %v1086 = vmul.f32 %v894, %v993
        %v1087 = vmul.f32 %v895, %v998
        %v1088 = vmul.f32 %v896, %v1003
        %v1089 = vmul.f32 %v897, %v1008
        %v1090 = vmul.f32 %v898, %v1013
        %v1091 = vmul.f32 %v899, %v1018
        %v1092 = vmul.f32 %v900, %v1023
        %v1093 = vmul.f32 %v901, %v1028
        %v1094 = vmul.f32 %v902, %v1033
        %v1095 = vmul.f32 %v903, %v1038
        %v1096 = vmul.f32 %v904, %v1043
        %v1097 = vmul.f32 %v905, %v1048
        %v1098 = vmul.f32 %v906, %v1053
        %v1099 = vmul.f32 %v907, %v1058
        %v1100 = vmul.f32 %v908, %v1063
        %v1101 = vmul.f32 %v909, %v1068
        %v1102 = vpack.c.bf16 %v1071, %v1070
        %v1103 = vpack.c.bf16 %v1073, %v1072
        %v1104 = vpack.c.bf16 %v1075, %v1074
        %v1105 = vpack.c.bf16 %v1077, %v1076
        %v1106 = vpack.c.bf16 %v1079, %v1078
        %v1107 = vpack.c.bf16 %v1081, %v1080
        %v1108 = vpack.c.bf16 %v1083, %v1082
        %v1109 = vpack.c.bf16 %v1085, %v1084
        %v1110 = vpack.c.bf16 %v1087, %v1086
        %v1111 = vpack.c.bf16 %v1089, %v1088
        %v1112 = vpack.c.bf16 %v1091, %v1090
        %v1113 = vpack.c.bf16 %v1093, %v1092
        %v1114 = vpack.c.bf16 %v1095, %v1094
        %v1115 = vpack.c.bf16 %v1097, %v1096
        %v1116 = vpack.c.bf16 %v1099, %v1098
        %v1117 = vpack.c.bf16 %v1101, %v1100
        %v1118 = vld [vmem:[#allocation2] sm:$0xff]
        %v1119 = vld [vmem:[#allocation2 + $0x8] sm:$0xff]
        %v1120 = vld [vmem:[#allocation2 + $0x10] sm:$0xff]
        %v1121 = vld [vmem:[#allocation2 + $0x18] sm:$0xff]
        %v1122 = vld [vmem:[#allocation2 + $0x20] sm:$0xff]
        %v1123 = vld [vmem:[#allocation2 + $0x28] sm:$0xff]
        %v1124 = vld [vmem:[#allocation2 + $0x30] sm:$0xff]
        %v1125 = vld [vmem:[#allocation2 + $0x38] sm:$0xff]
        %v1126 = vld [vmem:[#allocation2 + $0x40] sm:$0xff]
        %v1127 = vld [vmem:[#allocation2 + $0x48] sm:$0xff]
        %v1128 = vld [vmem:[#allocation2 + $0x50] sm:$0xff]
        %v1129 = vld [vmem:[#allocation2 + $0x58] sm:$0xff]
        %v1130 = vld [vmem:[#allocation2 + $0x60] sm:$0xff]
        %v1131 = vld [vmem:[#allocation2 + $0x68] sm:$0xff]
        %v1132 = vld [vmem:[#allocation2 + $0x70] sm:$0xff]
        %v1133 = vld [vmem:[#allocation2 + $0x78] sm:$0xff]
        %v1134 = vld [vmem:[#allocation2 + $0x80] sm:$0xff]
        %v1135 = vld [vmem:[#allocation2 + $0x88] sm:$0xff]
        %v1136 = vld [vmem:[#allocation2 + $0x90] sm:$0xff]
        %v1137 = vld [vmem:[#allocation2 + $0x98] sm:$0xff]
        %v1138 = vld [vmem:[#allocation2 + $0xa0] sm:$0xff]
        %v1139 = vld [vmem:[#allocation2 + $0xa8] sm:$0xff]
        %v1140 = vld [vmem:[#allocation2 + $0xb0] sm:$0xff]
        %v1141 = vld [vmem:[#allocation2 + $0xb8] sm:$0xff]
        %v1142 = vld [vmem:[#allocation2 + $0xc0] sm:$0xff]
        %v1143 = vld [vmem:[#allocation2 + $0xc8] sm:$0xff]
        %v1144 = vld [vmem:[#allocation2 + $0xd0] sm:$0xff]
        %v1145 = vld [vmem:[#allocation2 + $0xd8] sm:$0xff]
        %v1146 = vld [vmem:[#allocation2 + $0xe0] sm:$0xff]
        %v1147 = vld [vmem:[#allocation2 + $0xe8] sm:$0xff]
        %v1148 = vld [vmem:[#allocation2 + $0xf0] sm:$0xff]
        %v1149 = vld [vmem:[#allocation2 + $0xf8] sm:$0xff]
        %v1150 = vld [vmem:[#allocation2 + $0x100] sm:$0xff]
        %v1151 = vld [vmem:[#allocation2 + $0x108] sm:$0xff]
        %v1152 = vld [vmem:[#allocation2 + $0x110] sm:$0xff]
        %v1153 = vld [vmem:[#allocation2 + $0x118] sm:$0xff]
        %v1154 = vld [vmem:[#allocation2 + $0x120] sm:$0xff]
        %v1155 = vld [vmem:[#allocation2 + $0x128] sm:$0xff]
        %v1156 = vld [vmem:[#allocation2 + $0x130] sm:$0xff]
        %v1157 = vld [vmem:[#allocation2 + $0x138] sm:$0xff]
        %v1158 = vld [vmem:[#allocation2 + $0x140] sm:$0xff]
        %v1159 = vld [vmem:[#allocation2 + $0x148] sm:$0xff]
        %v1160 = vld [vmem:[#allocation2 + $0x150] sm:$0xff]
        %v1161 = vld [vmem:[#allocation2 + $0x158] sm:$0xff]
        %v1162 = vld [vmem:[#allocation2 + $0x160] sm:$0xff]
        %v1163 = vld [vmem:[#allocation2 + $0x168] sm:$0xff]
        %v1164 = vld [vmem:[#allocation2 + $0x170] sm:$0xff]
        %v1165 = vld [vmem:[#allocation2 + $0x178] sm:$0xff]
        %v1166 = vld [vmem:[#allocation2 + $0x180] sm:$0xff]
        %v1167 = vld [vmem:[#allocation2 + $0x188] sm:$0xff]
        %v1168 = vld [vmem:[#allocation2 + $0x190] sm:$0xff]
        %v1169 = vld [vmem:[#allocation2 + $0x198] sm:$0xff]
        %v1170 = vld [vmem:[#allocation2 + $0x1a0] sm:$0xff]
        %v1171 = vld [vmem:[#allocation2 + $0x1a8] sm:$0xff]
        %v1172 = vld [vmem:[#allocation2 + $0x1b0] sm:$0xff]
        %v1173 = vld [vmem:[#allocation2 + $0x1b8] sm:$0xff]
        %v1174 = vld [vmem:[#allocation2 + $0x1c0] sm:$0xff]
        %v1175 = vld [vmem:[#allocation2 + $0x1c8] sm:$0xff]
        %v1176 = vld [vmem:[#allocation2 + $0x1d0] sm:$0xff]
        %v1177 = vld [vmem:[#allocation2 + $0x1d8] sm:$0xff]
        %v1178 = vld [vmem:[#allocation2 + $0x1e0] sm:$0xff]
        %v1179 = vld [vmem:[#allocation2 + $0x1e8] sm:$0xff]
        %v1180 = vld [vmem:[#allocation2 + $0x1f0] sm:$0xff]
        %v1181 = vld [vmem:[#allocation2 + $0x1f8] sm:$0xff]
        %1182 = vxpose.xlu0.c.b16.start [1/8] %v428, 128
        %1183 = vxpose.xlu0.c.b16.cont [2/8] %v432, 128
        %1184 = vxpose.xlu0.c.b16.cont [3/8] %v436, 128
        %1185 = vxpose.xlu0.c.b16.cont [4/8] %v440, 128
        %1186 = vxpose.xlu0.c.b16.cont [5/8] %v444, 128
        %1187 = vxpose.xlu0.c.b16.cont [6/8] %v448, 128
        %1188 = vxpose.xlu0.c.b16.cont [7/8] %v452, 128
        %1189 = vxpose.xlu0.c.b16.end [8/8] %v456, 128
        %v1190 = vpop.trf.xlu0
        %v1191 = vpop.trf.xlu0
        %v1192 = vpop.trf.xlu0
        %v1193 = vpop.trf.xlu0
        %v1194 = vpop.trf.xlu0
        %v1195 = vpop.trf.xlu0
        %v1196 = vpop.trf.xlu0
        %v1197 = vpop.trf.xlu0
        %1198 = vxpose.xlu0.c.b16.start [1/8] %v429, 128
        %1199 = vxpose.xlu0.c.b16.cont [2/8] %v433, 128
        %1200 = vxpose.xlu0.c.b16.cont [3/8] %v437, 128
        %1201 = vxpose.xlu0.c.b16.cont [4/8] %v441, 128
        %1202 = vxpose.xlu0.c.b16.cont [5/8] %v445, 128
        %1203 = vxpose.xlu0.c.b16.cont [6/8] %v449, 128
        %1204 = vxpose.xlu0.c.b16.cont [7/8] %v453, 128
        %1205 = vxpose.xlu0.c.b16.end [8/8] %v457, 128
        %v1206 = vpop.trf.xlu0
        %v1207 = vpop.trf.xlu0
        %v1208 = vpop.trf.xlu0
        %v1209 = vpop.trf.xlu0
        %v1210 = vpop.trf.xlu0
        %v1211 = vpop.trf.xlu0
        %v1212 = vpop.trf.xlu0
        %v1213 = vpop.trf.xlu0
        %1214 = vxpose.xlu0.c.b16.start [1/8] %v430, 128
        %1215 = vxpose.xlu0.c.b16.cont [2/8] %v434, 128
        %1216 = vxpose.xlu0.c.b16.cont [3/8] %v438, 128
        %1217 = vxpose.xlu0.c.b16.cont [4/8] %v442, 128
        %1218 = vxpose.xlu0.c.b16.cont [5/8] %v446, 128
        %1219 = vxpose.xlu0.c.b16.cont [6/8] %v450, 128
        %1220 = vxpose.xlu0.c.b16.cont [7/8] %v454, 128
        %1221 = vxpose.xlu0.c.b16.end [8/8] %v458, 128
        %v1222 = vpop.trf.xlu0
        %v1223 = vpop.trf.xlu0
        %v1224 = vpop.trf.xlu0
        %v1225 = vpop.trf.xlu0
        %v1226 = vpop.trf.xlu0
        %v1227 = vpop.trf.xlu0
        %v1228 = vpop.trf.xlu0
        %v1229 = vpop.trf.xlu0
        %1230 = vxpose.xlu0.c.b16.start [1/8] %v431, 128
        %1231 = vxpose.xlu0.c.b16.cont [2/8] %v435, 128
        %1232 = vxpose.xlu0.c.b16.cont [3/8] %v439, 128
        %1233 = vxpose.xlu0.c.b16.cont [4/8] %v443, 128
        %1234 = vxpose.xlu0.c.b16.cont [5/8] %v447, 128
        %1235 = vxpose.xlu0.c.b16.cont [6/8] %v451, 128
        %1236 = vxpose.xlu0.c.b16.cont [7/8] %v455, 128
        %1237 = vxpose.xlu0.c.b16.end [8/8] %v459, 128
        %v1238 = vpop.trf.xlu0
        %v1239 = vpop.trf.xlu0
        %v1240 = vpop.trf.xlu0
        %v1241 = vpop.trf.xlu0
        %v1242 = vpop.trf.xlu0
        %v1243 = vpop.trf.xlu0
        %v1244 = vpop.trf.xlu0
        %v1245 = vpop.trf.xlu0
        %1246 = vxpose.xlu0.c.b16.start [1/8] %v460, 128
        %1247 = vxpose.xlu0.c.b16.cont [2/8] %v464, 128
        %1248 = vxpose.xlu0.c.b16.cont [3/8] %v468, 128
        %1249 = vxpose.xlu0.c.b16.cont [4/8] %v472, 128
        %1250 = vxpose.xlu0.c.b16.cont [5/8] %v476, 128
        %1251 = vxpose.xlu0.c.b16.cont [6/8] %v480, 128
        %1252 = vxpose.xlu0.c.b16.cont [7/8] %v484, 128
        %1253 = vxpose.xlu0.c.b16.end [8/8] %v488, 128
        %v1254 = vpop.trf.xlu0
        %v1255 = vpop.trf.xlu0
        %v1256 = vpop.trf.xlu0
        %v1257 = vpop.trf.xlu0
        %v1258 = vpop.trf.xlu0
        %v1259 = vpop.trf.xlu0
        %v1260 = vpop.trf.xlu0
        %v1261 = vpop.trf.xlu0
        %1262 = vxpose.xlu0.c.b16.start [1/8] %v461, 128
        %1263 = vxpose.xlu0.c.b16.cont [2/8] %v465, 128
        %1264 = vxpose.xlu0.c.b16.cont [3/8] %v469, 128
        %1265 = vxpose.xlu0.c.b16.cont [4/8] %v473, 128
        %1266 = vxpose.xlu0.c.b16.cont [5/8] %v477, 128
        %1267 = vxpose.xlu0.c.b16.cont [6/8] %v481, 128
        %1268 = vxpose.xlu0.c.b16.cont [7/8] %v485, 128
        %1269 = vxpose.xlu0.c.b16.end [8/8] %v489, 128
        %v1270 = vpop.trf.xlu0
        %v1271 = vpop.trf.xlu0
        %v1272 = vpop.trf.xlu0
        %v1273 = vpop.trf.xlu0
        %v1274 = vpop.trf.xlu0
        %v1275 = vpop.trf.xlu0
        %v1276 = vpop.trf.xlu0
        %v1277 = vpop.trf.xlu0
        %1278 = vxpose.xlu0.c.b16.start [1/8] %v462, 128
        %1279 = vxpose.xlu0.c.b16.cont [2/8] %v466, 128
        %1280 = vxpose.xlu0.c.b16.cont [3/8] %v470, 128
        %1281 = vxpose.xlu0.c.b16.cont [4/8] %v474, 128
        %1282 = vxpose.xlu0.c.b16.cont [5/8] %v478, 128
        %1283 = vxpose.xlu0.c.b16.cont [6/8] %v482, 128
        %1284 = vxpose.xlu0.c.b16.cont [7/8] %v486, 128
        %1285 = vxpose.xlu0.c.b16.end [8/8] %v490, 128
        %v1286 = vpop.trf.xlu0
        %v1287 = vpop.trf.xlu0
        %v1288 = vpop.trf.xlu0
        %v1289 = vpop.trf.xlu0
        %v1290 = vpop.trf.xlu0
        %v1291 = vpop.trf.xlu0
        %v1292 = vpop.trf.xlu0
        %v1293 = vpop.trf.xlu0
        %1294 = vxpose.xlu0.c.b16.start [1/8] %v463, 128
        %1295 = vxpose.xlu0.c.b16.cont [2/8] %v467, 128
        %1296 = vxpose.xlu0.c.b16.cont [3/8] %v471, 128
        %1297 = vxpose.xlu0.c.b16.cont [4/8] %v475, 128
        %1298 = vxpose.xlu0.c.b16.cont [5/8] %v479, 128
        %1299 = vxpose.xlu0.c.b16.cont [6/8] %v483, 128
        %1300 = vxpose.xlu0.c.b16.cont [7/8] %v487, 128
        %1301 = vxpose.xlu0.c.b16.end [8/8] %v491, 128
        %v1302 = vpop.trf.xlu0
        %v1303 = vpop.trf.xlu0
        %v1304 = vpop.trf.xlu0
        %v1305 = vpop.trf.xlu0
        %v1306 = vpop.trf.xlu0
        %v1307 = vpop.trf.xlu0
        %v1308 = vpop.trf.xlu0
        %v1309 = vpop.trf.xlu0
        %1310 = vmatprep.subr.bf16.mxu0 0
        %1311 = vmatpush1.bf16.msra.mxu0 %v1109
        %1312 = vmatprep.subr.bf16.mxu0 0
        %1313 = vmatpush1.bf16.msra.mxu0 %v1108
        %1314 = vmatprep.subr.bf16.mxu0 0
        %1315 = vmatpush1.bf16.msra.mxu0 %v1107
        %1316 = vmatprep.subr.bf16.mxu0 0
        %1317 = vmatpush1.bf16.msra.mxu0 %v1106
        %1318 = vmatprep.subr.bf16.mxu0 0
        %1319 = vmatpush1.bf16.msra.mxu0 %v1105
        %1320 = vmatprep.subr.bf16.mxu0 0
        %1321 = vmatpush1.bf16.msra.mxu0 %v1104
        %1322 = vmatprep.subr.bf16.mxu0 0
        %1323 = vmatpush1.bf16.msra.mxu0 %v1103
        %1324 = vmatprep.subr.bf16.mxu0 0
        %1325 = vmatpush1.bf16.msra.mxu0 %v1102
        %1326 = vmatprep.subr.bf16.mxu0 0
        %1327 = vmatpush2.bf16.msra.mxu0 %v1117
        %1328 = vmatprep.subr.bf16.mxu0 0
        %1329 = vmatpush2.bf16.msra.mxu0 %v1116
        %1330 = vmatprep.subr.bf16.mxu0 0
        %1331 = vmatpush2.bf16.msra.mxu0 %v1115
        %1332 = vmatprep.subr.bf16.mxu0 0
        %1333 = vmatpush2.bf16.msra.mxu0 %v1114
        %1334 = vmatprep.subr.bf16.mxu0 0
        %1335 = vmatpush2.bf16.msra.mxu0 %v1113
        %1336 = vmatprep.subr.bf16.mxu0 0
        %1337 = vmatpush2.bf16.msra.mxu0 %v1112
        %1338 = vmatprep.subr.bf16.mxu0 0
        %1339 = vmatpush2.bf16.msra.mxu0 %v1111
        %1340 = vmatprep.subr.bf16.mxu0 0
        %1341 = vmatpush2.bf16.msra.mxu0 %v1110
        %1342 = vmatprep.mubr.bf16.mxu0 %v1254
        %1343 = vmatmul.mubr.bf16.gmra.mxu0 %v1190
        %v1344 = vpop.f32.mrf.mxu0
        %v1345 = vadd.f32 0.0, %v1344
        %v1346 = vpop.f32.mrf.mxu0
        %v1347 = vpop.f32.mrf.mxu0
        %v1348 = vadd.f32 0.0, %v1347
        %v1349 = vpop.f32.mrf.mxu0
        %1350 = vmatprep.mubr.bf16.mxu0 %v1255
        %1351 = vmatmul.mubr.bf16.gmra.mxu0 %v1191
        %v1352 = vpop.f32.mrf.mxu0
        %v1353 = vadd.f32 0.0, %v1352
        %v1354 = vpop.f32.mrf.mxu0
        %v1355 = vpop.f32.mrf.mxu0
        %v1356 = vadd.f32 0.0, %v1355
        %v1357 = vpop.f32.mrf.mxu0
        %1358 = vmatprep.mubr.bf16.mxu0 %v1256
        %1359 = vmatmul.mubr.bf16.gmra.mxu0 %v1192
        %v1360 = vpop.f32.mrf.mxu0
        %v1361 = vadd.f32 0.0, %v1360
        %v1362 = vpop.f32.mrf.mxu0
        %v1363 = vpop.f32.mrf.mxu0
        %v1364 = vadd.f32 0.0, %v1363
        %v1365 = vpop.f32.mrf.mxu0
        %1366 = vmatprep.mubr.bf16.mxu0 %v1257
        %1367 = vmatmul.mubr.bf16.gmra.mxu0 %v1193
        %v1368 = vpop.f32.mrf.mxu0
        %v1369 = vadd.f32 0.0, %v1368
        %v1370 = vpop.f32.mrf.mxu0
        %v1371 = vpop.f32.mrf.mxu0
        %v1372 = vadd.f32 0.0, %v1371
        %v1373 = vpop.f32.mrf.mxu0
        %1374 = vmatprep.mubr.bf16.mxu0 %v1258
        %1375 = vmatmul.mubr.bf16.gmra.mxu0 %v1194
        %v1376 = vpop.f32.mrf.mxu0
        %v1377 = vadd.f32 0.0, %v1376
        %v1378 = vpop.f32.mrf.mxu0
        %v1379 = vpop.f32.mrf.mxu0
        %v1380 = vadd.f32 0.0, %v1379
        %v1381 = vpop.f32.mrf.mxu0
        %1382 = vmatprep.mubr.bf16.mxu0 %v1259
        %1383 = vmatmul.mubr.bf16.gmra.mxu0 %v1195
        %v1384 = vpop.f32.mrf.mxu0
        %v1385 = vadd.f32 0.0, %v1384
        %v1386 = vpop.f32.mrf.mxu0
        %v1387 = vpop.f32.mrf.mxu0
        %v1388 = vadd.f32 0.0, %v1387
        %v1389 = vpop.f32.mrf.mxu0
        %1390 = vmatprep.mubr.bf16.mxu0 %v1260
        %1391 = vmatmul.mubr.bf16.gmra.mxu0 %v1196
        %v1392 = vpop.f32.mrf.mxu0
        %v1393 = vadd.f32 0.0, %v1392
        %v1394 = vpop.f32.mrf.mxu0
        %v1395 = vpop.f32.mrf.mxu0
        %v1396 = vadd.f32 0.0, %v1395
        %v1397 = vpop.f32.mrf.mxu0
        %1398 = vmatprep.mubr.bf16.mxu0 %v1261
        %1399 = vmatmul.mubr.bf16.gmra.mxu0 %v1197
        %v1400 = vpop.f32.mrf.mxu0
        %v1401 = vadd.f32 0.0, %v1400
        %v1402 = vpop.f32.mrf.mxu0
        %v1403 = vpop.f32.mrf.mxu0
        %v1404 = vadd.f32 0.0, %v1403
        %v1405 = vpop.f32.mrf.mxu0
        %1406 = vmatprep.mubr.bf16.mxu0 %v1270
        %1407 = vmatmul.mubr.bf16.gmra.mxu0 %v1206
        %v1408 = vpop.f32.mrf.mxu0
        %v1409 = vadd.f32 0.0, %v1408
        %v1410 = vpop.f32.mrf.mxu0
        %v1411 = vpop.f32.mrf.mxu0
        %v1412 = vadd.f32 0.0, %v1411
        %v1413 = vpop.f32.mrf.mxu0
        %1414 = vmatprep.mubr.bf16.mxu0 %v1271
        %1415 = vmatmul.mubr.bf16.gmra.mxu0 %v1207
        %v1416 = vpop.f32.mrf.mxu0
        %v1417 = vadd.f32 0.0, %v1416
        %v1418 = vpop.f32.mrf.mxu0
        %v1419 = vpop.f32.mrf.mxu0
        %v1420 = vadd.f32 0.0, %v1419
        %v1421 = vpop.f32.mrf.mxu0
        %1422 = vmatprep.mubr.bf16.mxu0 %v1272
        %1423 = vmatmul.mubr.bf16.gmra.mxu0 %v1208
        %v1424 = vpop.f32.mrf.mxu0
        %v1425 = vadd.f32 0.0, %v1424
        %v1426 = vpop.f32.mrf.mxu0
        %v1427 = vpop.f32.mrf.mxu0
        %v1428 = vadd.f32 0.0, %v1427
        %v1429 = vpop.f32.mrf.mxu0
        %1430 = vmatprep.mubr.bf16.mxu0 %v1273
        %1431 = vmatmul.mubr.bf16.gmra.mxu0 %v1209
        %v1432 = vpop.f32.mrf.mxu0
        %v1433 = vadd.f32 0.0, %v1432
        %v1434 = vpop.f32.mrf.mxu0
        %v1435 = vpop.f32.mrf.mxu0
        %v1436 = vadd.f32 0.0, %v1435
        %v1437 = vpop.f32.mrf.mxu0
        %1438 = vmatprep.mubr.bf16.mxu0 %v1274
        %1439 = vmatmul.mubr.bf16.gmra.mxu0 %v1210
        %v1440 = vpop.f32.mrf.mxu0
        %v1441 = vadd.f32 0.0, %v1440
        %v1442 = vpop.f32.mrf.mxu0
        %v1443 = vpop.f32.mrf.mxu0
        %v1444 = vadd.f32 0.0, %v1443
        %v1445 = vpop.f32.mrf.mxu0
        %1446 = vmatprep.mubr.bf16.mxu0 %v1275
        %1447 = vmatmul.mubr.bf16.gmra.mxu0 %v1211
        %v1448 = vpop.f32.mrf.mxu0
        %v1449 = vadd.f32 0.0, %v1448
        %v1450 = vpop.f32.mrf.mxu0
        %v1451 = vpop.f32.mrf.mxu0
        %v1452 = vadd.f32 0.0, %v1451
        %v1453 = vpop.f32.mrf.mxu0
        %1454 = vmatprep.mubr.bf16.mxu0 %v1276
        %1455 = vmatmul.mubr.bf16.gmra.mxu0 %v1212
        %v1456 = vpop.f32.mrf.mxu0
        %v1457 = vadd.f32 0.0, %v1456
        %v1458 = vpop.f32.mrf.mxu0
        %v1459 = vpop.f32.mrf.mxu0
        %v1460 = vadd.f32 0.0, %v1459
        %v1461 = vpop.f32.mrf.mxu0
        %1462 = vmatprep.mubr.bf16.mxu0 %v1277
        %1463 = vmatmul.mubr.bf16.gmra.mxu0 %v1213
        %v1464 = vpop.f32.mrf.mxu0
        %v1465 = vadd.f32 0.0, %v1464
        %v1466 = vpop.f32.mrf.mxu0
        %v1467 = vpop.f32.mrf.mxu0
        %v1468 = vadd.f32 0.0, %v1467
        %v1469 = vpop.f32.mrf.mxu0
        %1470 = vmatprep.mubr.bf16.mxu0 %v1286
        %1471 = vmatmul.mubr.bf16.gmra.mxu0 %v1222
        %v1472 = vpop.f32.mrf.mxu0
        %v1473 = vadd.f32 0.0, %v1472
        %v1474 = vpop.f32.mrf.mxu0
        %v1475 = vpop.f32.mrf.mxu0
        %v1476 = vadd.f32 0.0, %v1475
        %v1477 = vpop.f32.mrf.mxu0
        %1478 = vmatprep.mubr.bf16.mxu0 %v1287
        %1479 = vmatmul.mubr.bf16.gmra.mxu0 %v1223
        %v1480 = vpop.f32.mrf.mxu0
        %v1481 = vadd.f32 0.0, %v1480
        %v1482 = vpop.f32.mrf.mxu0
        %v1483 = vpop.f32.mrf.mxu0
        %v1484 = vadd.f32 0.0, %v1483
        %v1485 = vpop.f32.mrf.mxu0
        %1486 = vmatprep.mubr.bf16.mxu0 %v1288
        %1487 = vmatmul.mubr.bf16.gmra.mxu0 %v1224
        %v1488 = vpop.f32.mrf.mxu0
        %v1489 = vadd.f32 0.0, %v1488
        %v1490 = vpop.f32.mrf.mxu0
        %v1491 = vpop.f32.mrf.mxu0
        %v1492 = vadd.f32 0.0, %v1491
        %v1493 = vpop.f32.mrf.mxu0
        %1494 = vmatprep.mubr.bf16.mxu0 %v1289
        %1495 = vmatmul.mubr.bf16.gmra.mxu0 %v1225
        %v1496 = vpop.f32.mrf.mxu0
        %v1497 = vadd.f32 0.0, %v1496
        %v1498 = vpop.f32.mrf.mxu0
        %v1499 = vpop.f32.mrf.mxu0
        %v1500 = vadd.f32 0.0, %v1499
        %v1501 = vpop.f32.mrf.mxu0
        %1502 = vmatprep.mubr.bf16.mxu0 %v1290
        %1503 = vmatmul.mubr.bf16.gmra.mxu0 %v1226
        %v1504 = vpop.f32.mrf.mxu0
        %v1505 = vadd.f32 0.0, %v1504
        %v1506 = vpop.f32.mrf.mxu0
        %v1507 = vpop.f32.mrf.mxu0
        %v1508 = vadd.f32 0.0, %v1507
        %v1509 = vpop.f32.mrf.mxu0
        %1510 = vmatprep.mubr.bf16.mxu0 %v1291
        %1511 = vmatmul.mubr.bf16.gmra.mxu0 %v1227
        %v1512 = vpop.f32.mrf.mxu0
        %v1513 = vadd.f32 0.0, %v1512
        %v1514 = vpop.f32.mrf.mxu0
        %v1515 = vpop.f32.mrf.mxu0
        %v1516 = vadd.f32 0.0, %v1515
        %v1517 = vpop.f32.mrf.mxu0
        %1518 = vmatprep.mubr.bf16.mxu0 %v1292
        %1519 = vmatmul.mubr.bf16.gmra.mxu0 %v1228
        %v1520 = vpop.f32.mrf.mxu0
        %v1521 = vadd.f32 0.0, %v1520
        %v1522 = vpop.f32.mrf.mxu0
        %v1523 = vpop.f32.mrf.mxu0
        %v1524 = vadd.f32 0.0, %v1523
        %v1525 = vpop.f32.mrf.mxu0
        %1526 = vmatprep.mubr.bf16.mxu0 %v1293
        %1527 = vmatmul.mubr.bf16.gmra.mxu0 %v1229
        %v1528 = vpop.f32.mrf.mxu0
        %v1529 = vadd.f32 0.0, %v1528
        %v1530 = vpop.f32.mrf.mxu0
        %v1531 = vpop.f32.mrf.mxu0
        %v1532 = vadd.f32 0.0, %v1531
        %v1533 = vpop.f32.mrf.mxu0
        %1534 = vmatprep.mubr.bf16.mxu0 %v1302
        %1535 = vmatmul.mubr.bf16.gmra.mxu0 %v1238
        %v1536 = vpop.f32.mrf.mxu0
        %v1537 = vadd.f32 0.0, %v1536
        %v1538 = vpop.f32.mrf.mxu0
        %v1539 = vpop.f32.mrf.mxu0
        %v1540 = vadd.f32 0.0, %v1539
        %v1541 = vpop.f32.mrf.mxu0
        %1542 = vmatprep.mubr.bf16.mxu0 %v1303
        %1543 = vmatmul.mubr.bf16.gmra.mxu0 %v1239
        %v1544 = vpop.f32.mrf.mxu0
        %v1545 = vadd.f32 0.0, %v1544
        %v1546 = vpop.f32.mrf.mxu0
        %v1547 = vpop.f32.mrf.mxu0
        %v1548 = vadd.f32 0.0, %v1547
        %v1549 = vpop.f32.mrf.mxu0
        %1550 = vmatprep.mubr.bf16.mxu0 %v1304
        %1551 = vmatmul.mubr.bf16.gmra.mxu0 %v1240
        %v1552 = vpop.f32.mrf.mxu0
        %v1553 = vadd.f32 0.0, %v1552
        %v1554 = vpop.f32.mrf.mxu0
        %v1555 = vpop.f32.mrf.mxu0
        %v1556 = vadd.f32 0.0, %v1555
        %v1557 = vpop.f32.mrf.mxu0
        %1558 = vmatprep.mubr.bf16.mxu0 %v1305
        %1559 = vmatmul.mubr.bf16.gmra.mxu0 %v1241
        %v1560 = vpop.f32.mrf.mxu0
        %v1561 = vadd.f32 0.0, %v1560
        %v1562 = vpop.f32.mrf.mxu0
        %v1563 = vpop.f32.mrf.mxu0
        %v1564 = vadd.f32 0.0, %v1563
        %v1565 = vpop.f32.mrf.mxu0
        %1566 = vmatprep.mubr.bf16.mxu0 %v1306
        %1567 = vmatmul.mubr.bf16.gmra.mxu0 %v1242
        %v1568 = vpop.f32.mrf.mxu0
        %v1569 = vadd.f32 0.0, %v1568
        %v1570 = vpop.f32.mrf.mxu0
        %v1571 = vpop.f32.mrf.mxu0
        %v1572 = vadd.f32 0.0, %v1571
        %v1573 = vpop.f32.mrf.mxu0
        %1574 = vmatprep.mubr.bf16.mxu0 %v1307
        %1575 = vmatmul.mubr.bf16.gmra.mxu0 %v1243
        %v1576 = vpop.f32.mrf.mxu0
        %v1577 = vadd.f32 0.0, %v1576
        %v1578 = vpop.f32.mrf.mxu0
        %v1579 = vpop.f32.mrf.mxu0
        %v1580 = vadd.f32 0.0, %v1579
        %v1581 = vpop.f32.mrf.mxu0
        %1582 = vmatprep.mubr.bf16.mxu0 %v1308
        %1583 = vmatmul.mubr.bf16.gmra.mxu0 %v1244
        %v1584 = vpop.f32.mrf.mxu0
        %v1585 = vadd.f32 0.0, %v1584
        %v1586 = vpop.f32.mrf.mxu0
        %v1587 = vpop.f32.mrf.mxu0
        %v1588 = vadd.f32 0.0, %v1587
        %v1589 = vpop.f32.mrf.mxu0
        %1590 = vmatprep.mubr.bf16.mxu0 %v1309
        %1591 = vmatmul.mubr.bf16.gmra.mxu0 %v1245
        %v1592 = vpop.f32.mrf.mxu0
        %v1593 = vadd.f32 0.0, %v1592
        %v1594 = vpop.f32.mrf.mxu0
        %v1595 = vpop.f32.mrf.mxu0
        %v1596 = vadd.f32 0.0, %v1595
        %v1597 = vpop.f32.mrf.mxu0
        %1598 = vdwg.mxu0
        %v1599 = vadd.f32 %v1118, %v1345
        %v1600 = vadd.f32 %v1119, %v1348
        %v1601 = vadd.f32 %v1120, %v1353
        %v1602 = vadd.f32 %v1121, %v1356
        %v1603 = vadd.f32 %v1122, %v1361
        %v1604 = vadd.f32 %v1123, %v1364
        %v1605 = vadd.f32 %v1124, %v1369
        %v1606 = vadd.f32 %v1125, %v1372
        %v1607 = vadd.f32 %v1126, %v1377
        %v1608 = vadd.f32 %v1127, %v1380
        %v1609 = vadd.f32 %v1128, %v1385
        %v1610 = vadd.f32 %v1129, %v1388
        %v1611 = vadd.f32 %v1130, %v1393
        %v1612 = vadd.f32 %v1131, %v1396
        %v1613 = vadd.f32 %v1132, %v1401
        %v1614 = vadd.f32 %v1133, %v1404
        %v1615 = vadd.f32 %v1134, %v1409
        %v1616 = vadd.f32 %v1135, %v1412
        %v1617 = vadd.f32 %v1136, %v1417
        %v1618 = vadd.f32 %v1137, %v1420
        %v1619 = vadd.f32 %v1138, %v1425
        %v1620 = vadd.f32 %v1139, %v1428
        %v1621 = vadd.f32 %v1140, %v1433
        %v1622 = vadd.f32 %v1141, %v1436
        %v1623 = vadd.f32 %v1142, %v1441
        %v1624 = vadd.f32 %v1143, %v1444
        %v1625 = vadd.f32 %v1144, %v1449
        %v1626 = vadd.f32 %v1145, %v1452
        %v1627 = vadd.f32 %v1146, %v1457
        %v1628 = vadd.f32 %v1147, %v1460
        %v1629 = vadd.f32 %v1148, %v1465
        %v1630 = vadd.f32 %v1149, %v1468
        %v1631 = vadd.f32 %v1150, %v1473
        %v1632 = vadd.f32 %v1151, %v1476
        %v1633 = vadd.f32 %v1152, %v1481
        %v1634 = vadd.f32 %v1153, %v1484
        %v1635 = vadd.f32 %v1154, %v1489
        %v1636 = vadd.f32 %v1155, %v1492
        %v1637 = vadd.f32 %v1156, %v1497
        %v1638 = vadd.f32 %v1157, %v1500
        %v1639 = vadd.f32 %v1158, %v1505
        %v1640 = vadd.f32 %v1159, %v1508
        %v1641 = vadd.f32 %v1160, %v1513
        %v1642 = vadd.f32 %v1161, %v1516
        %v1643 = vadd.f32 %v1162, %v1521
        %v1644 = vadd.f32 %v1163, %v1524
        %v1645 = vadd.f32 %v1164, %v1529
        %v1646 = vadd.f32 %v1165, %v1532
        %v1647 = vadd.f32 %v1166, %v1537
        %v1648 = vadd.f32 %v1167, %v1540
        %v1649 = vadd.f32 %v1168, %v1545
        %v1650 = vadd.f32 %v1169, %v1548
        %v1651 = vadd.f32 %v1170, %v1553
        %v1652 = vadd.f32 %v1171, %v1556
        %v1653 = vadd.f32 %v1172, %v1561
        %v1654 = vadd.f32 %v1173, %v1564
        %v1655 = vadd.f32 %v1174, %v1569
        %v1656 = vadd.f32 %v1175, %v1572
        %v1657 = vadd.f32 %v1176, %v1577
        %v1658 = vadd.f32 %v1177, %v1580
        %v1659 = vadd.f32 %v1178, %v1585
        %v1660 = vadd.f32 %v1179, %v1588
        %v1661 = vadd.f32 %v1180, %v1593
        %v1662 = vadd.f32 %v1181, %v1596
        %1663 = vst [vmem:[#allocation2] sm:$0xff] %v1599
        %1664 = vst [vmem:[#allocation2 + $0x8] sm:$0xff] %v1600
        %1665 = vst [vmem:[#allocation2 + $0x10] sm:$0xff] %v1601
        %1666 = vst [vmem:[#allocation2 + $0x18] sm:$0xff] %v1602
        %1667 = vst [vmem:[#allocation2 + $0x20] sm:$0xff] %v1603
        %1668 = vst [vmem:[#allocation2 + $0x28] sm:$0xff] %v1604
        %1669 = vst [vmem:[#allocation2 + $0x30] sm:$0xff] %v1605
        %1670 = vst [vmem:[#allocation2 + $0x38] sm:$0xff] %v1606
        %1671 = vst [vmem:[#allocation2 + $0x40] sm:$0xff] %v1607
        %1672 = vst [vmem:[#allocation2 + $0x48] sm:$0xff] %v1608
        %1673 = vst [vmem:[#allocation2 + $0x50] sm:$0xff] %v1609
        %1674 = vst [vmem:[#allocation2 + $0x58] sm:$0xff] %v1610
        %1675 = vst [vmem:[#allocation2 + $0x60] sm:$0xff] %v1611
        %1676 = vst [vmem:[#allocation2 + $0x68] sm:$0xff] %v1612
        %1677 = vst [vmem:[#allocation2 + $0x70] sm:$0xff] %v1613
        %1678 = vst [vmem:[#allocation2 + $0x78] sm:$0xff] %v1614
        %1679 = vst [vmem:[#allocation2 + $0x80] sm:$0xff] %v1615
        %1680 = vst [vmem:[#allocation2 + $0x88] sm:$0xff] %v1616
        %1681 = vst [vmem:[#allocation2 + $0x90] sm:$0xff] %v1617
        %1682 = vst [vmem:[#allocation2 + $0x98] sm:$0xff] %v1618
        %1683 = vst [vmem:[#allocation2 + $0xa0] sm:$0xff] %v1619
        %1684 = vst [vmem:[#allocation2 + $0xa8] sm:$0xff] %v1620
        %1685 = vst [vmem:[#allocation2 + $0xb0] sm:$0xff] %v1621
        %1686 = vst [vmem:[#allocation2 + $0xb8] sm:$0xff] %v1622
        %1687 = vst [vmem:[#allocation2 + $0xc0] sm:$0xff] %v1623
        %1688 = vst [vmem:[#allocation2 + $0xc8] sm:$0xff] %v1624
        %1689 = vst [vmem:[#allocation2 + $0xd0] sm:$0xff] %v1625
        %1690 = vst [vmem:[#allocation2 + $0xd8] sm:$0xff] %v1626
        %1691 = vst [vmem:[#allocation2 + $0xe0] sm:$0xff] %v1627
        %1692 = vst [vmem:[#allocation2 + $0xe8] sm:$0xff] %v1628
        %1693 = vst [vmem:[#allocation2 + $0xf0] sm:$0xff] %v1629
        %1694 = vst [vmem:[#allocation2 + $0xf8] sm:$0xff] %v1630
        %1695 = vst [vmem:[#allocation2 + $0x100] sm:$0xff] %v1631
        %1696 = vst [vmem:[#allocation2 + $0x108] sm:$0xff] %v1632
        %1697 = vst [vmem:[#allocation2 + $0x110] sm:$0xff] %v1633
        %1698 = vst [vmem:[#allocation2 + $0x118] sm:$0xff] %v1634
        %1699 = vst [vmem:[#allocation2 + $0x120] sm:$0xff] %v1635
        %1700 = vst [vmem:[#allocation2 + $0x128] sm:$0xff] %v1636
        %1701 = vst [vmem:[#allocation2 + $0x130] sm:$0xff] %v1637
        %1702 = vst [vmem:[#allocation2 + $0x138] sm:$0xff] %v1638
        %1703 = vst [vmem:[#allocation2 + $0x140] sm:$0xff] %v1639
        %1704 = vst [vmem:[#allocation2 + $0x148] sm:$0xff] %v1640
        %1705 = vst [vmem:[#allocation2 + $0x150] sm:$0xff] %v1641
        %1706 = vst [vmem:[#allocation2 + $0x158] sm:$0xff] %v1642
        %1707 = vst [vmem:[#allocation2 + $0x160] sm:$0xff] %v1643
        %1708 = vst [vmem:[#allocation2 + $0x168] sm:$0xff] %v1644
        %1709 = vst [vmem:[#allocation2 + $0x170] sm:$0xff] %v1645
        %1710 = vst [vmem:[#allocation2 + $0x178] sm:$0xff] %v1646
        %1711 = vst [vmem:[#allocation2 + $0x180] sm:$0xff] %v1647
        %1712 = vst [vmem:[#allocation2 + $0x188] sm:$0xff] %v1648
        %1713 = vst [vmem:[#allocation2 + $0x190] sm:$0xff] %v1649
        %1714 = vst [vmem:[#allocation2 + $0x198] sm:$0xff] %v1650
        %1715 = vst [vmem:[#allocation2 + $0x1a0] sm:$0xff] %v1651
        %1716 = vst [vmem:[#allocation2 + $0x1a8] sm:$0xff] %v1652
        %1717 = vst [vmem:[#allocation2 + $0x1b0] sm:$0xff] %v1653
        %1718 = vst [vmem:[#allocation2 + $0x1b8] sm:$0xff] %v1654
        %1719 = vst [vmem:[#allocation2 + $0x1c0] sm:$0xff] %v1655
        %1720 = vst [vmem:[#allocation2 + $0x1c8] sm:$0xff] %v1656
        %1721 = vst [vmem:[#allocation2 + $0x1d0] sm:$0xff] %v1657
        %1722 = vst [vmem:[#allocation2 + $0x1d8] sm:$0xff] %v1658
        %1723 = vst [vmem:[#allocation2 + $0x1e0] sm:$0xff] %v1659
        %1724 = vst [vmem:[#allocation2 + $0x1e8] sm:$0xff] %v1660
        %1725 = vst [vmem:[#allocation2 + $0x1f0] sm:$0xff] %v1661
        %1726 = vst [vmem:[#allocation2 + $0x1f8] sm:$0xff] %v1662
        %v1727 = vld [vmem:[#allocation3] sm:$0xff]
        %v1728 = vld [vmem:[#allocation3 + $0x8] sm:$0xff]
        %v1729 = vld [vmem:[#allocation3 + $0x10] sm:$0xff]
        %v1730 = vld [vmem:[#allocation3 + $0x18] sm:$0xff]
        %v1731 = vld [vmem:[#allocation3 + $0x20] sm:$0xff]
        %v1732 = vld [vmem:[#allocation3 + $0x28] sm:$0xff]
        %v1733 = vld [vmem:[#allocation3 + $0x30] sm:$0xff]
        %v1734 = vld [vmem:[#allocation3 + $0x38] sm:$0xff]
        %v1735 = vld [vmem:[#allocation3 + $0x40] sm:$0xff]
        %v1736 = vld [vmem:[#allocation3 + $0x48] sm:$0xff]
        %v1737 = vld [vmem:[#allocation3 + $0x50] sm:$0xff]
        %v1738 = vld [vmem:[#allocation3 + $0x58] sm:$0xff]
        %v1739 = vld [vmem:[#allocation3 + $0x60] sm:$0xff]
        %v1740 = vld [vmem:[#allocation3 + $0x68] sm:$0xff]
        %v1741 = vld [vmem:[#allocation3 + $0x70] sm:$0xff]
        %v1742 = vld [vmem:[#allocation3 + $0x78] sm:$0xff]
        %v1743 = vld [vmem:[#allocation3 + $0x80] sm:$0xff]
        %v1744 = vld [vmem:[#allocation3 + $0x88] sm:$0xff]
        %v1745 = vld [vmem:[#allocation3 + $0x90] sm:$0xff]
        %v1746 = vld [vmem:[#allocation3 + $0x98] sm:$0xff]
        %v1747 = vld [vmem:[#allocation3 + $0xa0] sm:$0xff]
        %v1748 = vld [vmem:[#allocation3 + $0xa8] sm:$0xff]
        %v1749 = vld [vmem:[#allocation3 + $0xb0] sm:$0xff]
        %v1750 = vld [vmem:[#allocation3 + $0xb8] sm:$0xff]
        %v1751 = vld [vmem:[#allocation3 + $0xc0] sm:$0xff]
        %v1752 = vld [vmem:[#allocation3 + $0xc8] sm:$0xff]
        %v1753 = vld [vmem:[#allocation3 + $0xd0] sm:$0xff]
        %v1754 = vld [vmem:[#allocation3 + $0xd8] sm:$0xff]
        %v1755 = vld [vmem:[#allocation3 + $0xe0] sm:$0xff]
        %v1756 = vld [vmem:[#allocation3 + $0xe8] sm:$0xff]
        %v1757 = vld [vmem:[#allocation3 + $0xf0] sm:$0xff]
        %v1758 = vld [vmem:[#allocation3 + $0xf8] sm:$0xff]
        %v1759 = vld [vmem:[#allocation3 + $0x100] sm:$0xff]
        %v1760 = vld [vmem:[#allocation3 + $0x108] sm:$0xff]
        %v1761 = vld [vmem:[#allocation3 + $0x110] sm:$0xff]
        %v1762 = vld [vmem:[#allocation3 + $0x118] sm:$0xff]
        %v1763 = vld [vmem:[#allocation3 + $0x120] sm:$0xff]
        %v1764 = vld [vmem:[#allocation3 + $0x128] sm:$0xff]
        %v1765 = vld [vmem:[#allocation3 + $0x130] sm:$0xff]
        %v1766 = vld [vmem:[#allocation3 + $0x138] sm:$0xff]
        %v1767 = vld [vmem:[#allocation3 + $0x140] sm:$0xff]
        %v1768 = vld [vmem:[#allocation3 + $0x148] sm:$0xff]
        %v1769 = vld [vmem:[#allocation3 + $0x150] sm:$0xff]
        %v1770 = vld [vmem:[#allocation3 + $0x158] sm:$0xff]
        %v1771 = vld [vmem:[#allocation3 + $0x160] sm:$0xff]
        %v1772 = vld [vmem:[#allocation3 + $0x168] sm:$0xff]
        %v1773 = vld [vmem:[#allocation3 + $0x170] sm:$0xff]
        %v1774 = vld [vmem:[#allocation3 + $0x178] sm:$0xff]
        %v1775 = vld [vmem:[#allocation3 + $0x180] sm:$0xff]
        %v1776 = vld [vmem:[#allocation3 + $0x188] sm:$0xff]
        %v1777 = vld [vmem:[#allocation3 + $0x190] sm:$0xff]
        %v1778 = vld [vmem:[#allocation3 + $0x198] sm:$0xff]
        %v1779 = vld [vmem:[#allocation3 + $0x1a0] sm:$0xff]
        %v1780 = vld [vmem:[#allocation3 + $0x1a8] sm:$0xff]
        %v1781 = vld [vmem:[#allocation3 + $0x1b0] sm:$0xff]
        %v1782 = vld [vmem:[#allocation3 + $0x1b8] sm:$0xff]
        %v1783 = vld [vmem:[#allocation3 + $0x1c0] sm:$0xff]
        %v1784 = vld [vmem:[#allocation3 + $0x1c8] sm:$0xff]
        %v1785 = vld [vmem:[#allocation3 + $0x1d0] sm:$0xff]
        %v1786 = vld [vmem:[#allocation3 + $0x1d8] sm:$0xff]
        %v1787 = vld [vmem:[#allocation3 + $0x1e0] sm:$0xff]
        %v1788 = vld [vmem:[#allocation3 + $0x1e8] sm:$0xff]
        %v1789 = vld [vmem:[#allocation3 + $0x1f0] sm:$0xff]
        %v1790 = vld [vmem:[#allocation3 + $0x1f8] sm:$0xff]
        %1791 = vmatprep.subr.bf16.mxu0 0
        %1792 = vmatpush1.bf16.msra.mxu0 1065369472
        %1793 = vmatprep.subr.bf16.mxu0 0
        %1794 = vmatpush1.bf16.msra.mxu0 1065369472
        %1795 = vmatprep.subr.bf16.mxu0 0
        %1796 = vmatpush1.bf16.msra.mxu0 1065369472
        %1797 = vmatprep.subr.bf16.mxu0 0
        %1798 = vmatpush1.bf16.msra.mxu0 1065369472
        %1799 = vmatprep.subr.bf16.mxu0 0
        %1800 = vmatpush1.bf16.msra.mxu0 1065369472
        %1801 = vmatprep.subr.bf16.mxu0 0
        %1802 = vmatpush1.bf16.msra.mxu0 1065369472
        %1803 = vmatprep.subr.bf16.mxu0 0
        %1804 = vmatpush1.bf16.msra.mxu0 1065369472
        %1805 = vmatprep.subr.bf16.mxu0 0
        %1806 = vmatpush1.bf16.msra.mxu0 1065369472
        %1807 = vmatprep.subr.bf16.mxu0 0
        %1808 = vmatpush2.bf16.msra.mxu0 1065369472
        %1809 = vmatprep.subr.bf16.mxu0 0
        %1810 = vmatpush2.bf16.msra.mxu0 1065369472
        %1811 = vmatprep.subr.bf16.mxu0 0
        %1812 = vmatpush2.bf16.msra.mxu0 1065369472
        %1813 = vmatprep.subr.bf16.mxu0 0
        %1814 = vmatpush2.bf16.msra.mxu0 1065369472
        %1815 = vmatprep.subr.bf16.mxu0 0
        %1816 = vmatpush2.bf16.msra.mxu0 1065369472
        %1817 = vmatprep.subr.bf16.mxu0 0
        %1818 = vmatpush2.bf16.msra.mxu0 1065369472
        %1819 = vmatprep.subr.bf16.mxu0 0
        %1820 = vmatpush2.bf16.msra.mxu0 1065369472
        %1821 = vmatprep.subr.bf16.mxu0 0
        %1822 = vmatpush2.bf16.msra.mxu0 1065369472
        %1823 = vmatprep.mubr.bf16.mxu0 %v1254
        %1824 = vmatmul.mubr.bf16.gmra.mxu0 %v1190
        %v1825 = vpop.f32.mrf.mxu0
        %v1826 = vadd.f32 0.0, %v1825
        %v1827 = vpop.f32.mrf.mxu0
        %v1828 = vpop.f32.mrf.mxu0
        %v1829 = vadd.f32 0.0, %v1828
        %v1830 = vpop.f32.mrf.mxu0
        %1831 = vmatprep.mubr.bf16.mxu0 %v1255
        %1832 = vmatmul.mubr.bf16.gmra.mxu0 %v1191
        %v1833 = vpop.f32.mrf.mxu0
        %v1834 = vadd.f32 0.0, %v1833
        %v1835 = vpop.f32.mrf.mxu0
        %v1836 = vpop.f32.mrf.mxu0
        %v1837 = vadd.f32 0.0, %v1836
        %v1838 = vpop.f32.mrf.mxu0
        %1839 = vmatprep.mubr.bf16.mxu0 %v1256
        %1840 = vmatmul.mubr.bf16.gmra.mxu0 %v1192
        %v1841 = vpop.f32.mrf.mxu0
        %v1842 = vadd.f32 0.0, %v1841
        %v1843 = vpop.f32.mrf.mxu0
        %v1844 = vpop.f32.mrf.mxu0
        %v1845 = vadd.f32 0.0, %v1844
        %v1846 = vpop.f32.mrf.mxu0
        %1847 = vmatprep.mubr.bf16.mxu0 %v1257
        %1848 = vmatmul.mubr.bf16.gmra.mxu0 %v1193
        %v1849 = vpop.f32.mrf.mxu0
        %v1850 = vadd.f32 0.0, %v1849
        %v1851 = vpop.f32.mrf.mxu0
        %v1852 = vpop.f32.mrf.mxu0
        %v1853 = vadd.f32 0.0, %v1852
        %v1854 = vpop.f32.mrf.mxu0
        %1855 = vmatprep.mubr.bf16.mxu0 %v1258
        %1856 = vmatmul.mubr.bf16.gmra.mxu0 %v1194
        %v1857 = vpop.f32.mrf.mxu0
        %v1858 = vadd.f32 0.0, %v1857
        %v1859 = vpop.f32.mrf.mxu0
        %v1860 = vpop.f32.mrf.mxu0
        %v1861 = vadd.f32 0.0, %v1860
        %v1862 = vpop.f32.mrf.mxu0
        %1863 = vmatprep.mubr.bf16.mxu0 %v1259
        %1864 = vmatmul.mubr.bf16.gmra.mxu0 %v1195
        %v1865 = vpop.f32.mrf.mxu0
        %v1866 = vadd.f32 0.0, %v1865
        %v1867 = vpop.f32.mrf.mxu0
        %v1868 = vpop.f32.mrf.mxu0
        %v1869 = vadd.f32 0.0, %v1868
        %v1870 = vpop.f32.mrf.mxu0
        %1871 = vmatprep.mubr.bf16.mxu0 %v1260
        %1872 = vmatmul.mubr.bf16.gmra.mxu0 %v1196
        %v1873 = vpop.f32.mrf.mxu0
        %v1874 = vadd.f32 0.0, %v1873
        %v1875 = vpop.f32.mrf.mxu0
        %v1876 = vpop.f32.mrf.mxu0
        %v1877 = vadd.f32 0.0, %v1876
        %v1878 = vpop.f32.mrf.mxu0
        %1879 = vmatprep.mubr.bf16.mxu0 %v1261
        %1880 = vmatmul.mubr.bf16.gmra.mxu0 %v1197
        %v1881 = vpop.f32.mrf.mxu0
        %v1882 = vadd.f32 0.0, %v1881
        %v1883 = vpop.f32.mrf.mxu0
        %v1884 = vpop.f32.mrf.mxu0
        %v1885 = vadd.f32 0.0, %v1884
        %v1886 = vpop.f32.mrf.mxu0
        %1887 = vmatprep.mubr.bf16.mxu0 %v1270
        %1888 = vmatmul.mubr.bf16.gmra.mxu0 %v1206
        %v1889 = vpop.f32.mrf.mxu0
        %v1890 = vadd.f32 0.0, %v1889
        %v1891 = vpop.f32.mrf.mxu0
        %v1892 = vpop.f32.mrf.mxu0
        %v1893 = vadd.f32 0.0, %v1892
        %v1894 = vpop.f32.mrf.mxu0
        %1895 = vmatprep.mubr.bf16.mxu0 %v1271
        %1896 = vmatmul.mubr.bf16.gmra.mxu0 %v1207
        %v1897 = vpop.f32.mrf.mxu0
        %v1898 = vadd.f32 0.0, %v1897
        %v1899 = vpop.f32.mrf.mxu0
        %v1900 = vpop.f32.mrf.mxu0
        %v1901 = vadd.f32 0.0, %v1900
        %v1902 = vpop.f32.mrf.mxu0
        %1903 = vmatprep.mubr.bf16.mxu0 %v1272
        %1904 = vmatmul.mubr.bf16.gmra.mxu0 %v1208
        %v1905 = vpop.f32.mrf.mxu0
        %v1906 = vadd.f32 0.0, %v1905
        %v1907 = vpop.f32.mrf.mxu0
        %v1908 = vpop.f32.mrf.mxu0
        %v1909 = vadd.f32 0.0, %v1908
        %v1910 = vpop.f32.mrf.mxu0
        %1911 = vmatprep.mubr.bf16.mxu0 %v1273
        %1912 = vmatmul.mubr.bf16.gmra.mxu0 %v1209
        %v1913 = vpop.f32.mrf.mxu0
        %v1914 = vadd.f32 0.0, %v1913
        %v1915 = vpop.f32.mrf.mxu0
        %v1916 = vpop.f32.mrf.mxu0
        %v1917 = vadd.f32 0.0, %v1916
        %v1918 = vpop.f32.mrf.mxu0
        %1919 = vmatprep.mubr.bf16.mxu0 %v1274
        %1920 = vmatmul.mubr.bf16.gmra.mxu0 %v1210
        %v1921 = vpop.f32.mrf.mxu0
        %v1922 = vadd.f32 0.0, %v1921
        %v1923 = vpop.f32.mrf.mxu0
        %v1924 = vpop.f32.mrf.mxu0
        %v1925 = vadd.f32 0.0, %v1924
        %v1926 = vpop.f32.mrf.mxu0
        %1927 = vmatprep.mubr.bf16.mxu0 %v1275
        %1928 = vmatmul.mubr.bf16.gmra.mxu0 %v1211
        %v1929 = vpop.f32.mrf.mxu0
        %v1930 = vadd.f32 0.0, %v1929
        %v1931 = vpop.f32.mrf.mxu0
        %v1932 = vpop.f32.mrf.mxu0
        %v1933 = vadd.f32 0.0, %v1932
        %v1934 = vpop.f32.mrf.mxu0
        %1935 = vmatprep.mubr.bf16.mxu0 %v1276
        %1936 = vmatmul.mubr.bf16.gmra.mxu0 %v1212
        %v1937 = vpop.f32.mrf.mxu0
        %v1938 = vadd.f32 0.0, %v1937
        %v1939 = vpop.f32.mrf.mxu0
        %v1940 = vpop.f32.mrf.mxu0
        %v1941 = vadd.f32 0.0, %v1940
        %v1942 = vpop.f32.mrf.mxu0
        %1943 = vmatprep.mubr.bf16.mxu0 %v1277
        %1944 = vmatmul.mubr.bf16.gmra.mxu0 %v1213
        %v1945 = vpop.f32.mrf.mxu0
        %v1946 = vadd.f32 0.0, %v1945
        %v1947 = vpop.f32.mrf.mxu0
        %v1948 = vpop.f32.mrf.mxu0
        %v1949 = vadd.f32 0.0, %v1948
        %v1950 = vpop.f32.mrf.mxu0
        %1951 = vmatprep.mubr.bf16.mxu0 %v1286
        %1952 = vmatmul.mubr.bf16.gmra.mxu0 %v1222
        %v1953 = vpop.f32.mrf.mxu0
        %v1954 = vadd.f32 0.0, %v1953
        %v1955 = vpop.f32.mrf.mxu0
        %v1956 = vpop.f32.mrf.mxu0
        %v1957 = vadd.f32 0.0, %v1956
        %v1958 = vpop.f32.mrf.mxu0
        %1959 = vmatprep.mubr.bf16.mxu0 %v1287
        %1960 = vmatmul.mubr.bf16.gmra.mxu0 %v1223
        %v1961 = vpop.f32.mrf.mxu0
        %v1962 = vadd.f32 0.0, %v1961
        %v1963 = vpop.f32.mrf.mxu0
        %v1964 = vpop.f32.mrf.mxu0
        %v1965 = vadd.f32 0.0, %v1964
        %v1966 = vpop.f32.mrf.mxu0
        %1967 = vmatprep.mubr.bf16.mxu0 %v1288
        %1968 = vmatmul.mubr.bf16.gmra.mxu0 %v1224
        %v1969 = vpop.f32.mrf.mxu0
        %v1970 = vadd.f32 0.0, %v1969
        %v1971 = vpop.f32.mrf.mxu0
        %v1972 = vpop.f32.mrf.mxu0
        %v1973 = vadd.f32 0.0, %v1972
        %v1974 = vpop.f32.mrf.mxu0
        %1975 = vmatprep.mubr.bf16.mxu0 %v1289
        %1976 = vmatmul.mubr.bf16.gmra.mxu0 %v1225
        %v1977 = vpop.f32.mrf.mxu0
        %v1978 = vadd.f32 0.0, %v1977
        %v1979 = vpop.f32.mrf.mxu0
        %v1980 = vpop.f32.mrf.mxu0
        %v1981 = vadd.f32 0.0, %v1980
        %v1982 = vpop.f32.mrf.mxu0
        %1983 = vmatprep.mubr.bf16.mxu0 %v1290
        %1984 = vmatmul.mubr.bf16.gmra.mxu0 %v1226
        %v1985 = vpop.f32.mrf.mxu0
        %v1986 = vadd.f32 0.0, %v1985
        %v1987 = vpop.f32.mrf.mxu0
        %v1988 = vpop.f32.mrf.mxu0
        %v1989 = vadd.f32 0.0, %v1988
        %v1990 = vpop.f32.mrf.mxu0
        %1991 = vmatprep.mubr.bf16.mxu0 %v1291
        %1992 = vmatmul.mubr.bf16.gmra.mxu0 %v1227
        %v1993 = vpop.f32.mrf.mxu0
        %v1994 = vadd.f32 0.0, %v1993
        %v1995 = vpop.f32.mrf.mxu0
        %v1996 = vpop.f32.mrf.mxu0
        %v1997 = vadd.f32 0.0, %v1996
        %v1998 = vpop.f32.mrf.mxu0
        %1999 = vmatprep.mubr.bf16.mxu0 %v1292
        %2000 = vmatmul.mubr.bf16.gmra.mxu0 %v1228
        %v2001 = vpop.f32.mrf.mxu0
        %v2002 = vadd.f32 0.0, %v2001
        %v2003 = vpop.f32.mrf.mxu0
        %v2004 = vpop.f32.mrf.mxu0
        %v2005 = vadd.f32 0.0, %v2004
        %v2006 = vpop.f32.mrf.mxu0
        %2007 = vmatprep.mubr.bf16.mxu0 %v1293
        %2008 = vmatmul.mubr.bf16.gmra.mxu0 %v1229
        %v2009 = vpop.f32.mrf.mxu0
        %v2010 = vadd.f32 0.0, %v2009
        %v2011 = vpop.f32.mrf.mxu0
        %v2012 = vpop.f32.mrf.mxu0
        %v2013 = vadd.f32 0.0, %v2012
        %v2014 = vpop.f32.mrf.mxu0
        %2015 = vmatprep.mubr.bf16.mxu0 %v1302
        %2016 = vmatmul.mubr.bf16.gmra.mxu0 %v1238
        %v2017 = vpop.f32.mrf.mxu0
        %v2018 = vadd.f32 0.0, %v2017
        %v2019 = vpop.f32.mrf.mxu0
        %v2020 = vpop.f32.mrf.mxu0
        %v2021 = vadd.f32 0.0, %v2020
        %v2022 = vpop.f32.mrf.mxu0
        %2023 = vmatprep.mubr.bf16.mxu0 %v1303
        %2024 = vmatmul.mubr.bf16.gmra.mxu0 %v1239
        %v2025 = vpop.f32.mrf.mxu0
        %v2026 = vadd.f32 0.0, %v2025
        %v2027 = vpop.f32.mrf.mxu0
        %v2028 = vpop.f32.mrf.mxu0
        %v2029 = vadd.f32 0.0, %v2028
        %v2030 = vpop.f32.mrf.mxu0
        %2031 = vmatprep.mubr.bf16.mxu0 %v1304
        %2032 = vmatmul.mubr.bf16.gmra.mxu0 %v1240
        %v2033 = vpop.f32.mrf.mxu0
        %v2034 = vadd.f32 0.0, %v2033
        %v2035 = vpop.f32.mrf.mxu0
        %v2036 = vpop.f32.mrf.mxu0
        %v2037 = vadd.f32 0.0, %v2036
        %v2038 = vpop.f32.mrf.mxu0
        %2039 = vmatprep.mubr.bf16.mxu0 %v1305
        %2040 = vmatmul.mubr.bf16.gmra.mxu0 %v1241
        %v2041 = vpop.f32.mrf.mxu0
        %v2042 = vadd.f32 0.0, %v2041
        %v2043 = vpop.f32.mrf.mxu0
        %v2044 = vpop.f32.mrf.mxu0
        %v2045 = vadd.f32 0.0, %v2044
        %v2046 = vpop.f32.mrf.mxu0
        %2047 = vmatprep.mubr.bf16.mxu0 %v1306
        %2048 = vmatmul.mubr.bf16.gmra.mxu0 %v1242
        %v2049 = vpop.f32.mrf.mxu0
        %v2050 = vadd.f32 0.0, %v2049
        %v2051 = vpop.f32.mrf.mxu0
        %v2052 = vpop.f32.mrf.mxu0
        %v2053 = vadd.f32 0.0, %v2052
        %v2054 = vpop.f32.mrf.mxu0
        %2055 = vmatprep.mubr.bf16.mxu0 %v1307
        %2056 = vmatmul.mubr.bf16.gmra.mxu0 %v1243
        %v2057 = vpop.f32.mrf.mxu0
        %v2058 = vadd.f32 0.0, %v2057
        %v2059 = vpop.f32.mrf.mxu0
        %v2060 = vpop.f32.mrf.mxu0
        %v2061 = vadd.f32 0.0, %v2060
        %v2062 = vpop.f32.mrf.mxu0
        %2063 = vmatprep.mubr.bf16.mxu0 %v1308
        %2064 = vmatmul.mubr.bf16.gmra.mxu0 %v1244
        %v2065 = vpop.f32.mrf.mxu0
        %v2066 = vadd.f32 0.0, %v2065
        %v2067 = vpop.f32.mrf.mxu0
        %v2068 = vpop.f32.mrf.mxu0
        %v2069 = vadd.f32 0.0, %v2068
        %v2070 = vpop.f32.mrf.mxu0
        %2071 = vmatprep.mubr.bf16.mxu0 %v1309
        %2072 = vmatmul.mubr.bf16.gmra.mxu0 %v1245
        %v2073 = vpop.f32.mrf.mxu0
        %v2074 = vadd.f32 0.0, %v2073
        %v2075 = vpop.f32.mrf.mxu0
        %v2076 = vpop.f32.mrf.mxu0
        %v2077 = vadd.f32 0.0, %v2076
        %v2078 = vpop.f32.mrf.mxu0
        %2079 = vdwg.mxu0
        %v2080 = vadd.f32 %v1727, %v1826
        %v2081 = vadd.f32 %v1728, %v1829
        %v2082 = vadd.f32 %v1729, %v1834
        %v2083 = vadd.f32 %v1730, %v1837
        %v2084 = vadd.f32 %v1731, %v1842
        %v2085 = vadd.f32 %v1732, %v1845
        %v2086 = vadd.f32 %v1733, %v1850
        %v2087 = vadd.f32 %v1734, %v1853
        %v2088 = vadd.f32 %v1735, %v1858
        %v2089 = vadd.f32 %v1736, %v1861
        %v2090 = vadd.f32 %v1737, %v1866
        %v2091 = vadd.f32 %v1738, %v1869
        %v2092 = vadd.f32 %v1739, %v1874
        %v2093 = vadd.f32 %v1740, %v1877
        %v2094 = vadd.f32 %v1741, %v1882
        %v2095 = vadd.f32 %v1742, %v1885
        %v2096 = vadd.f32 %v1743, %v1890
        %v2097 = vadd.f32 %v1744, %v1893
        %v2098 = vadd.f32 %v1745, %v1898
        %v2099 = vadd.f32 %v1746, %v1901
        %v2100 = vadd.f32 %v1747, %v1906
        %v2101 = vadd.f32 %v1748, %v1909
        %v2102 = vadd.f32 %v1749, %v1914
        %v2103 = vadd.f32 %v1750, %v1917
        %v2104 = vadd.f32 %v1751, %v1922
        %v2105 = vadd.f32 %v1752, %v1925
        %v2106 = vadd.f32 %v1753, %v1930
        %v2107 = vadd.f32 %v1754, %v1933
        %v2108 = vadd.f32 %v1755, %v1938
        %v2109 = vadd.f32 %v1756, %v1941
        %v2110 = vadd.f32 %v1757, %v1946
        %v2111 = vadd.f32 %v1758, %v1949
        %v2112 = vadd.f32 %v1759, %v1954
        %v2113 = vadd.f32 %v1760, %v1957
        %v2114 = vadd.f32 %v1761, %v1962
        %v2115 = vadd.f32 %v1762, %v1965
        %v2116 = vadd.f32 %v1763, %v1970
        %v2117 = vadd.f32 %v1764, %v1973
        %v2118 = vadd.f32 %v1765, %v1978
        %v2119 = vadd.f32 %v1766, %v1981
        %v2120 = vadd.f32 %v1767, %v1986
        %v2121 = vadd.f32 %v1768, %v1989
        %v2122 = vadd.f32 %v1769, %v1994
        %v2123 = vadd.f32 %v1770, %v1997
        %v2124 = vadd.f32 %v1771, %v2002
        %v2125 = vadd.f32 %v1772, %v2005
        %v2126 = vadd.f32 %v1773, %v2010
        %v2127 = vadd.f32 %v1774, %v2013
        %v2128 = vadd.f32 %v1775, %v2018
        %v2129 = vadd.f32 %v1776, %v2021
        %v2130 = vadd.f32 %v1777, %v2026
        %v2131 = vadd.f32 %v1778, %v2029
        %v2132 = vadd.f32 %v1779, %v2034
        %v2133 = vadd.f32 %v1780, %v2037
        %v2134 = vadd.f32 %v1781, %v2042
        %v2135 = vadd.f32 %v1782, %v2045
        %v2136 = vadd.f32 %v1783, %v2050
        %v2137 = vadd.f32 %v1784, %v2053
        %v2138 = vadd.f32 %v1785, %v2058
        %v2139 = vadd.f32 %v1786, %v2061
        %v2140 = vadd.f32 %v1787, %v2066
        %v2141 = vadd.f32 %v1788, %v2069
        %v2142 = vadd.f32 %v1789, %v2074
        %v2143 = vadd.f32 %v1790, %v2077
        %vm2144 = vcmask 7168
        %2145 = vst.msk [vmem:[#allocation3] sm:$0xff] %vm2144, %v2080
        %2146 = vst.msk [vmem:[#allocation3 + $0x8] sm:$0xff] %vm2144, %v2081
        %2147 = vst.msk [vmem:[#allocation3 + $0x10] sm:$0xff] %vm2144, %v2082
        %2148 = vst.msk [vmem:[#allocation3 + $0x18] sm:$0xff] %vm2144, %v2083
        %2149 = vst.msk [vmem:[#allocation3 + $0x20] sm:$0xff] %vm2144, %v2084
        %2150 = vst.msk [vmem:[#allocation3 + $0x28] sm:$0xff] %vm2144, %v2085
        %2151 = vst.msk [vmem:[#allocation3 + $0x30] sm:$0xff] %vm2144, %v2086
        %2152 = vst.msk [vmem:[#allocation3 + $0x38] sm:$0xff] %vm2144, %v2087
        %2153 = vst.msk [vmem:[#allocation3 + $0x40] sm:$0xff] %vm2144, %v2088
        %2154 = vst.msk [vmem:[#allocation3 + $0x48] sm:$0xff] %vm2144, %v2089
        %2155 = vst.msk [vmem:[#allocation3 + $0x50] sm:$0xff] %vm2144, %v2090
        %2156 = vst.msk [vmem:[#allocation3 + $0x58] sm:$0xff] %vm2144, %v2091
        %2157 = vst.msk [vmem:[#allocation3 + $0x60] sm:$0xff] %vm2144, %v2092
        %2158 = vst.msk [vmem:[#allocation3 + $0x68] sm:$0xff] %vm2144, %v2093
        %2159 = vst.msk [vmem:[#allocation3 + $0x70] sm:$0xff] %vm2144, %v2094
        %2160 = vst.msk [vmem:[#allocation3 + $0x78] sm:$0xff] %vm2144, %v2095
        %2161 = vst.msk [vmem:[#allocation3 + $0x80] sm:$0xff] %vm2144, %v2096
        %2162 = vst.msk [vmem:[#allocation3 + $0x88] sm:$0xff] %vm2144, %v2097
        %2163 = vst.msk [vmem:[#allocation3 + $0x90] sm:$0xff] %vm2144, %v2098
        %2164 = vst.msk [vmem:[#allocation3 + $0x98] sm:$0xff] %vm2144, %v2099
        %2165 = vst.msk [vmem:[#allocation3 + $0xa0] sm:$0xff] %vm2144, %v2100
        %2166 = vst.msk [vmem:[#allocation3 + $0xa8] sm:$0xff] %vm2144, %v2101
        %2167 = vst.msk [vmem:[#allocation3 + $0xb0] sm:$0xff] %vm2144, %v2102
        %2168 = vst.msk [vmem:[#allocation3 + $0xb8] sm:$0xff] %vm2144, %v2103
        %2169 = vst.msk [vmem:[#allocation3 + $0xc0] sm:$0xff] %vm2144, %v2104
        %2170 = vst.msk [vmem:[#allocation3 + $0xc8] sm:$0xff] %vm2144, %v2105
        %2171 = vst.msk [vmem:[#allocation3 + $0xd0] sm:$0xff] %vm2144, %v2106
        %2172 = vst.msk [vmem:[#allocation3 + $0xd8] sm:$0xff] %vm2144, %v2107
        %2173 = vst.msk [vmem:[#allocation3 + $0xe0] sm:$0xff] %vm2144, %v2108
        %2174 = vst.msk [vmem:[#allocation3 + $0xe8] sm:$0xff] %vm2144, %v2109
        %2175 = vst.msk [vmem:[#allocation3 + $0xf0] sm:$0xff] %vm2144, %v2110
        %2176 = vst.msk [vmem:[#allocation3 + $0xf8] sm:$0xff] %vm2144, %v2111
        %2177 = vst.msk [vmem:[#allocation3 + $0x100] sm:$0xff] %vm2144, %v2112
        %2178 = vst.msk [vmem:[#allocation3 + $0x108] sm:$0xff] %vm2144, %v2113
        %2179 = vst.msk [vmem:[#allocation3 + $0x110] sm:$0xff] %vm2144, %v2114
        %2180 = vst.msk [vmem:[#allocation3 + $0x118] sm:$0xff] %vm2144, %v2115
        %2181 = vst.msk [vmem:[#allocation3 + $0x120] sm:$0xff] %vm2144, %v2116
        %2182 = vst.msk [vmem:[#allocation3 + $0x128] sm:$0xff] %vm2144, %v2117
        %2183 = vst.msk [vmem:[#allocation3 + $0x130] sm:$0xff] %vm2144, %v2118
        %2184 = vst.msk [vmem:[#allocation3 + $0x138] sm:$0xff] %vm2144, %v2119
        %2185 = vst.msk [vmem:[#allocation3 + $0x140] sm:$0xff] %vm2144, %v2120
        %2186 = vst.msk [vmem:[#allocation3 + $0x148] sm:$0xff] %vm2144, %v2121
        %2187 = vst.msk [vmem:[#allocation3 + $0x150] sm:$0xff] %vm2144, %v2122
        %2188 = vst.msk [vmem:[#allocation3 + $0x158] sm:$0xff] %vm2144, %v2123
        %2189 = vst.msk [vmem:[#allocation3 + $0x160] sm:$0xff] %vm2144, %v2124
        %2190 = vst.msk [vmem:[#allocation3 + $0x168] sm:$0xff] %vm2144, %v2125
        %2191 = vst.msk [vmem:[#allocation3 + $0x170] sm:$0xff] %vm2144, %v2126
        %2192 = vst.msk [vmem:[#allocation3 + $0x178] sm:$0xff] %vm2144, %v2127
        %2193 = vst.msk [vmem:[#allocation3 + $0x180] sm:$0xff] %vm2144, %v2128
        %2194 = vst.msk [vmem:[#allocation3 + $0x188] sm:$0xff] %vm2144, %v2129
        %2195 = vst.msk [vmem:[#allocation3 + $0x190] sm:$0xff] %vm2144, %v2130
        %2196 = vst.msk [vmem:[#allocation3 + $0x198] sm:$0xff] %vm2144, %v2131
        %2197 = vst.msk [vmem:[#allocation3 + $0x1a0] sm:$0xff] %vm2144, %v2132
        %2198 = vst.msk [vmem:[#allocation3 + $0x1a8] sm:$0xff] %vm2144, %v2133
        %2199 = vst.msk [vmem:[#allocation3 + $0x1b0] sm:$0xff] %vm2144, %v2134
        %2200 = vst.msk [vmem:[#allocation3 + $0x1b8] sm:$0xff] %vm2144, %v2135
        %2201 = vst.msk [vmem:[#allocation3 + $0x1c0] sm:$0xff] %vm2144, %v2136
        %2202 = vst.msk [vmem:[#allocation3 + $0x1c8] sm:$0xff] %vm2144, %v2137
        %2203 = vst.msk [vmem:[#allocation3 + $0x1d0] sm:$0xff] %vm2144, %v2138
        %2204 = vst.msk [vmem:[#allocation3 + $0x1d8] sm:$0xff] %vm2144, %v2139
        %2205 = vst.msk [vmem:[#allocation3 + $0x1e0] sm:$0xff] %vm2144, %v2140
        %2206 = vst.msk [vmem:[#allocation3 + $0x1e8] sm:$0xff] %vm2144, %v2141
        %2207 = vst.msk [vmem:[#allocation3 + $0x1f0] sm:$0xff] %vm2144, %v2142
        %2208 = vst.msk [vmem:[#allocation3 + $0x1f8] sm:$0xff] %vm2144, %v2143
        %p2209 = scmp.eq.s32.totalorder %s22, 1
        // Predicated region
        $region53: #{tpu_custom_call.1} parent=35 // pred_check
          %p2210 = pneg %p2209
        $region54: #{tpu_custom_call.1} parent=35 // pred_check_branch
          %2212 = sbr.rel (%p2210) target = $region56
        $region55: #{tpu_custom_call.1} parent=35 // pred_region
          %v2213 = vld [vmem:[#allocation2] sm:$0xff]
          %v2214 = vld [vmem:[#allocation2 + $0x8] sm:$0xff]
          %v2215 = vld [vmem:[#allocation2 + $0x10] sm:$0xff]
          %v2216 = vld [vmem:[#allocation2 + $0x18] sm:$0xff]
          %v2217 = vld [vmem:[#allocation2 + $0x20] sm:$0xff]
          %v2218 = vld [vmem:[#allocation2 + $0x28] sm:$0xff]
          %v2219 = vld [vmem:[#allocation2 + $0x30] sm:$0xff]
          %v2220 = vld [vmem:[#allocation2 + $0x38] sm:$0xff]
          %v2221 = vld [vmem:[#allocation2 + $0x40] sm:$0xff]
          %v2222 = vld [vmem:[#allocation2 + $0x48] sm:$0xff]
          %v2223 = vld [vmem:[#allocation2 + $0x50] sm:$0xff]
          %v2224 = vld [vmem:[#allocation2 + $0x58] sm:$0xff]
          %v2225 = vld [vmem:[#allocation2 + $0x60] sm:$0xff]
          %v2226 = vld [vmem:[#allocation2 + $0x68] sm:$0xff]
          %v2227 = vld [vmem:[#allocation2 + $0x70] sm:$0xff]
          %v2228 = vld [vmem:[#allocation2 + $0x78] sm:$0xff]
          %v2229 = vld [vmem:[#allocation2 + $0x80] sm:$0xff]
          %v2230 = vld [vmem:[#allocation2 + $0x88] sm:$0xff]
          %v2231 = vld [vmem:[#allocation2 + $0x90] sm:$0xff]
          %v2232 = vld [vmem:[#allocation2 + $0x98] sm:$0xff]
          %v2233 = vld [vmem:[#allocation2 + $0xa0] sm:$0xff]
          %v2234 = vld [vmem:[#allocation2 + $0xa8] sm:$0xff]
          %v2235 = vld [vmem:[#allocation2 + $0xb0] sm:$0xff]
          %v2236 = vld [vmem:[#allocation2 + $0xb8] sm:$0xff]
          %v2237 = vld [vmem:[#allocation2 + $0xc0] sm:$0xff]
          %v2238 = vld [vmem:[#allocation2 + $0xc8] sm:$0xff]
          %v2239 = vld [vmem:[#allocation2 + $0xd0] sm:$0xff]
          %v2240 = vld [vmem:[#allocation2 + $0xd8] sm:$0xff]
          %v2241 = vld [vmem:[#allocation2 + $0xe0] sm:$0xff]
          %v2242 = vld [vmem:[#allocation2 + $0xe8] sm:$0xff]
          %v2243 = vld [vmem:[#allocation2 + $0xf0] sm:$0xff]
          %v2244 = vld [vmem:[#allocation2 + $0xf8] sm:$0xff]
          %v2245 = vld [vmem:[#allocation2 + $0x100] sm:$0xff]
          %v2246 = vld [vmem:[#allocation2 + $0x108] sm:$0xff]
          %v2247 = vld [vmem:[#allocation2 + $0x110] sm:$0xff]
          %v2248 = vld [vmem:[#allocation2 + $0x118] sm:$0xff]
          %v2249 = vld [vmem:[#allocation2 + $0x120] sm:$0xff]
          %v2250 = vld [vmem:[#allocation2 + $0x128] sm:$0xff]
          %v2251 = vld [vmem:[#allocation2 + $0x130] sm:$0xff]
          %v2252 = vld [vmem:[#allocation2 + $0x138] sm:$0xff]
          %v2253 = vld [vmem:[#allocation2 + $0x140] sm:$0xff]
          %v2254 = vld [vmem:[#allocation2 + $0x148] sm:$0xff]
          %v2255 = vld [vmem:[#allocation2 + $0x150] sm:$0xff]
          %v2256 = vld [vmem:[#allocation2 + $0x158] sm:$0xff]
          %v2257 = vld [vmem:[#allocation2 + $0x160] sm:$0xff]
          %v2258 = vld [vmem:[#allocation2 + $0x168] sm:$0xff]
          %v2259 = vld [vmem:[#allocation2 + $0x170] sm:$0xff]
          %v2260 = vld [vmem:[#allocation2 + $0x178] sm:$0xff]
          %v2261 = vld [vmem:[#allocation2 + $0x180] sm:$0xff]
          %v2262 = vld [vmem:[#allocation2 + $0x188] sm:$0xff]
          %v2263 = vld [vmem:[#allocation2 + $0x190] sm:$0xff]
          %v2264 = vld [vmem:[#allocation2 + $0x198] sm:$0xff]
          %v2265 = vld [vmem:[#allocation2 + $0x1a0] sm:$0xff]
          %v2266 = vld [vmem:[#allocation2 + $0x1a8] sm:$0xff]
          %v2267 = vld [vmem:[#allocation2 + $0x1b0] sm:$0xff]
          %v2268 = vld [vmem:[#allocation2 + $0x1b8] sm:$0xff]
          %v2269 = vld [vmem:[#allocation2 + $0x1c0] sm:$0xff]
          %v2270 = vld [vmem:[#allocation2 + $0x1c8] sm:$0xff]
          %v2271 = vld [vmem:[#allocation2 + $0x1d0] sm:$0xff]
          %v2272 = vld [vmem:[#allocation2 + $0x1d8] sm:$0xff]
          %v2273 = vld [vmem:[#allocation2 + $0x1e0] sm:$0xff]
          %v2274 = vld [vmem:[#allocation2 + $0x1e8] sm:$0xff]
          %v2275 = vld [vmem:[#allocation2 + $0x1f0] sm:$0xff]
          %v2276 = vld [vmem:[#allocation2 + $0x1f8] sm:$0xff]
          %v2277 = vld [vmem:[#allocation9] sm:$0xff]
          %v2278 = vld [vmem:[#allocation9 + $0x8] sm:$0xff]
          %v2279 = vld [vmem:[#allocation9 + $0x10] sm:$0xff]
          %v2280 = vld [vmem:[#allocation9 + $0x18] sm:$0xff]
          %v2281 = vld [vmem:[#allocation9 + $0x20] sm:$0xff]
          %v2282 = vld [vmem:[#allocation9 + $0x28] sm:$0xff]
          %v2283 = vld [vmem:[#allocation9 + $0x30] sm:$0xff]
          %v2284 = vld [vmem:[#allocation9 + $0x38] sm:$0xff]
          %v2285 = vld [vmem:[#allocation9 + $0x40] sm:$0xff]
          %v2286 = vld [vmem:[#allocation9 + $0x48] sm:$0xff]
          %v2287 = vld [vmem:[#allocation9 + $0x50] sm:$0xff]
          %v2288 = vld [vmem:[#allocation9 + $0x58] sm:$0xff]
          %v2289 = vld [vmem:[#allocation9 + $0x60] sm:$0xff]
          %v2290 = vld [vmem:[#allocation9 + $0x68] sm:$0xff]
          %v2291 = vld [vmem:[#allocation9 + $0x70] sm:$0xff]
          %v2292 = vld [vmem:[#allocation9 + $0x78] sm:$0xff]
          %2293 = vmatprep.subr.mxu0 0.0
          %2294 = vmatpush1.msra.mxu0 %v2292
          %2295 = vmatprep.subr.mxu0 0.0
          %2296 = vmatpush1.msra.mxu0 %v2291
          %2297 = vmatprep.subr.mxu0 0.0
          %2298 = vmatpush1.msra.mxu0 %v2290
          %2299 = vmatprep.subr.mxu0 0.0
          %2300 = vmatpush1.msra.mxu0 %v2289
          %2301 = vmatprep.subr.mxu0 0.0
          %2302 = vmatpush1.msra.mxu0 %v2288
          %2303 = vmatprep.subr.mxu0 0.0
          %2304 = vmatpush1.msra.mxu0 %v2287
          %2305 = vmatprep.subr.mxu0 0.0
          %2306 = vmatpush1.msra.mxu0 %v2286
          %2307 = vmatprep.subr.mxu0 0.0
          %2308 = vmatpush1.msra.mxu0 %v2285
          %2309 = vmatprep.subr.mxu0 0.0
          %2310 = vmatpush1.msra.mxu0 %v2284
          %2311 = vmatprep.subr.mxu0 0.0
          %2312 = vmatpush1.msra.mxu0 %v2283
          %2313 = vmatprep.subr.mxu0 0.0
          %2314 = vmatpush1.msra.mxu0 %v2282
          %2315 = vmatprep.subr.mxu0 0.0
          %2316 = vmatpush1.msra.mxu0 %v2281
          %2317 = vmatprep.subr.mxu0 0.0
          %2318 = vmatpush1.msra.mxu0 %v2280
          %2319 = vmatprep.subr.mxu0 0.0
          %2320 = vmatpush1.msra.mxu0 %v2279
          %2321 = vmatprep.subr.mxu0 0.0
          %2322 = vmatpush1.msra.mxu0 %v2278
          %2323 = vmatprep.subr.mxu0 0.0
          %2324 = vmatpush1.msra.mxu0 %v2277
          %2325 = vmatprep.subr.mxu0 0.0
          %2326 = vmatpush2.msra.mxu0 0.0
          %2327 = vmatprep.subr.mxu0 0.0
          %2328 = vmatpush2.msra.mxu0 0.0
          %2329 = vmatprep.subr.mxu0 0.0
          %2330 = vmatpush2.msra.mxu0 0.0
          %2331 = vmatprep.subr.mxu0 0.0
          %2332 = vmatpush2.msra.mxu0 0.0
          %2333 = vmatprep.subr.mxu0 0.0
          %2334 = vmatpush2.msra.mxu0 0.0
          %2335 = vmatprep.subr.mxu0 0.0
          %2336 = vmatpush2.msra.mxu0 0.0
          %2337 = vmatprep.subr.mxu0 0.0
          %2338 = vmatpush2.msra.mxu0 0.0
          %2339 = vmatprep.subr.mxu0 0.0
          %2340 = vmatpush2.msra.mxu0 0.0
          %2341 = vmatprep.subr.mxu0 0.0
          %2342 = vmatpush2.msra.mxu0 0.0
          %2343 = vmatprep.subr.mxu0 0.0
          %2344 = vmatpush2.msra.mxu0 0.0
          %2345 = vmatprep.subr.mxu0 0.0
          %2346 = vmatpush2.msra.mxu0 0.0
          %2347 = vmatprep.subr.mxu0 0.0
          %2348 = vmatpush2.msra.mxu0 0.0
          %2349 = vmatprep.subr.mxu0 0.0
          %2350 = vmatpush2.msra.mxu0 0.0
          %2351 = vmatprep.subr.mxu0 0.0
          %2352 = vmatpush2.msra.mxu0 0.0
          %2353 = vmatprep.subr.mxu0 0.0
          %2354 = vmatpush2.msra.mxu0 0.0
          %2355 = vmatprep.subr.mxu0 0.0
          %2356 = vmatpush2.msra.mxu0 0.0
          %2357 = vmatprep.mubr.f32.mxu0 0.0
          %2358 = vmatmul.mubr.f32.gmra.mxu0 %v2213
          %v2359 = vpop.f32.mrf.mxu0
          %v2360 = vadd.f32 0.0, %v2359
          %v2361 = vpop.f32.mrf.mxu0
          %2362 = vmatprep.mubr.f32.mxu0 0.0
          %2363 = vmatmul.mubr.f32.gmra.mxu0 %v2214
          %v2364 = vpop.f32.mrf.mxu0
          %v2365 = vadd.f32 0.0, %v2364
          %v2366 = vpop.f32.mrf.mxu0
          %2367 = vmatprep.mubr.f32.mxu0 0.0
          %2368 = vmatmul.mubr.f32.gmra.mxu0 %v2215
          %v2369 = vpop.f32.mrf.mxu0
          %v2370 = vadd.f32 0.0, %v2369
          %v2371 = vpop.f32.mrf.mxu0
          %2372 = vmatprep.mubr.f32.mxu0 0.0
          %2373 = vmatmul.mubr.f32.gmra.mxu0 %v2216
          %v2374 = vpop.f32.mrf.mxu0
          %v2375 = vadd.f32 0.0, %v2374
          %v2376 = vpop.f32.mrf.mxu0
          %2377 = vmatprep.mubr.f32.mxu0 0.0
          %2378 = vmatmul.mubr.f32.gmra.mxu0 %v2217
          %v2379 = vpop.f32.mrf.mxu0
          %v2380 = vadd.f32 0.0, %v2379
          %v2381 = vpop.f32.mrf.mxu0
          %2382 = vmatprep.mubr.f32.mxu0 0.0
          %2383 = vmatmul.mubr.f32.gmra.mxu0 %v2218
          %v2384 = vpop.f32.mrf.mxu0
          %v2385 = vadd.f32 0.0, %v2384
          %v2386 = vpop.f32.mrf.mxu0
          %2387 = vmatprep.mubr.f32.mxu0 0.0
          %2388 = vmatmul.mubr.f32.gmra.mxu0 %v2219
          %v2389 = vpop.f32.mrf.mxu0
          %v2390 = vadd.f32 0.0, %v2389
          %v2391 = vpop.f32.mrf.mxu0
          %2392 = vmatprep.mubr.f32.mxu0 0.0
          %2393 = vmatmul.mubr.f32.gmra.mxu0 %v2220
          %v2394 = vpop.f32.mrf.mxu0
          %v2395 = vadd.f32 0.0, %v2394
          %v2396 = vpop.f32.mrf.mxu0
          %2397 = vmatprep.mubr.f32.mxu0 0.0
          %2398 = vmatmul.mubr.f32.gmra.mxu0 %v2221
          %v2399 = vpop.f32.mrf.mxu0
          %v2400 = vadd.f32 0.0, %v2399
          %v2401 = vpop.f32.mrf.mxu0
          %2402 = vmatprep.mubr.f32.mxu0 0.0
          %2403 = vmatmul.mubr.f32.gmra.mxu0 %v2222
          %v2404 = vpop.f32.mrf.mxu0
          %v2405 = vadd.f32 0.0, %v2404
          %v2406 = vpop.f32.mrf.mxu0
          %2407 = vmatprep.mubr.f32.mxu0 0.0
          %2408 = vmatmul.mubr.f32.gmra.mxu0 %v2223
          %v2409 = vpop.f32.mrf.mxu0
          %v2410 = vadd.f32 0.0, %v2409
          %v2411 = vpop.f32.mrf.mxu0
          %2412 = vmatprep.mubr.f32.mxu0 0.0
          %2413 = vmatmul.mubr.f32.gmra.mxu0 %v2224
          %v2414 = vpop.f32.mrf.mxu0
          %v2415 = vadd.f32 0.0, %v2414
          %v2416 = vpop.f32.mrf.mxu0
          %2417 = vmatprep.mubr.f32.mxu0 0.0
          %2418 = vmatmul.mubr.f32.gmra.mxu0 %v2225
          %v2419 = vpop.f32.mrf.mxu0
          %v2420 = vadd.f32 0.0, %v2419
          %v2421 = vpop.f32.mrf.mxu0
          %2422 = vmatprep.mubr.f32.mxu0 0.0
          %2423 = vmatmul.mubr.f32.gmra.mxu0 %v2226
          %v2424 = vpop.f32.mrf.mxu0
          %v2425 = vadd.f32 0.0, %v2424
          %v2426 = vpop.f32.mrf.mxu0
          %2427 = vmatprep.mubr.f32.mxu0 0.0
          %2428 = vmatmul.mubr.f32.gmra.mxu0 %v2227
          %v2429 = vpop.f32.mrf.mxu0
          %v2430 = vadd.f32 0.0, %v2429
          %v2431 = vpop.f32.mrf.mxu0
          %2432 = vmatprep.mubr.f32.mxu0 0.0
          %2433 = vmatmul.mubr.f32.gmra.mxu0 %v2228
          %v2434 = vpop.f32.mrf.mxu0
          %v2435 = vadd.f32 0.0, %v2434
          %v2436 = vpop.f32.mrf.mxu0
          %2437 = vmatprep.mubr.f32.mxu0 0.0
          %2438 = vmatmul.mubr.f32.gmra.mxu0 %v2229
          %v2439 = vpop.f32.mrf.mxu0
          %v2440 = vadd.f32 0.0, %v2439
          %v2441 = vpop.f32.mrf.mxu0
          %2442 = vmatprep.mubr.f32.mxu0 0.0
          %2443 = vmatmul.mubr.f32.gmra.mxu0 %v2230
          %v2444 = vpop.f32.mrf.mxu0
          %v2445 = vadd.f32 0.0, %v2444
          %v2446 = vpop.f32.mrf.mxu0
          %2447 = vmatprep.mubr.f32.mxu0 0.0
          %2448 = vmatmul.mubr.f32.gmra.mxu0 %v2231
          %v2449 = vpop.f32.mrf.mxu0
          %v2450 = vadd.f32 0.0, %v2449
          %v2451 = vpop.f32.mrf.mxu0
          %2452 = vmatprep.mubr.f32.mxu0 0.0
          %2453 = vmatmul.mubr.f32.gmra.mxu0 %v2232
          %v2454 = vpop.f32.mrf.mxu0
          %v2455 = vadd.f32 0.0, %v2454
          %v2456 = vpop.f32.mrf.mxu0
          %2457 = vmatprep.mubr.f32.mxu0 0.0
          %2458 = vmatmul.mubr.f32.gmra.mxu0 %v2233
          %v2459 = vpop.f32.mrf.mxu0
          %v2460 = vadd.f32 0.0, %v2459
          %v2461 = vpop.f32.mrf.mxu0
          %2462 = vmatprep.mubr.f32.mxu0 0.0
          %2463 = vmatmul.mubr.f32.gmra.mxu0 %v2234
          %v2464 = vpop.f32.mrf.mxu0
          %v2465 = vadd.f32 0.0, %v2464
          %v2466 = vpop.f32.mrf.mxu0
          %2467 = vmatprep.mubr.f32.mxu0 0.0
          %2468 = vmatmul.mubr.f32.gmra.mxu0 %v2235
          %v2469 = vpop.f32.mrf.mxu0
          %v2470 = vadd.f32 0.0, %v2469
          %v2471 = vpop.f32.mrf.mxu0
          %2472 = vmatprep.mubr.f32.mxu0 0.0
          %2473 = vmatmul.mubr.f32.gmra.mxu0 %v2236
          %v2474 = vpop.f32.mrf.mxu0
          %v2475 = vadd.f32 0.0, %v2474
          %v2476 = vpop.f32.mrf.mxu0
          %2477 = vmatprep.mubr.f32.mxu0 0.0
          %2478 = vmatmul.mubr.f32.gmra.mxu0 %v2237
          %v2479 = vpop.f32.mrf.mxu0
          %v2480 = vadd.f32 0.0, %v2479
          %v2481 = vpop.f32.mrf.mxu0
          %2482 = vmatprep.mubr.f32.mxu0 0.0
          %2483 = vmatmul.mubr.f32.gmra.mxu0 %v2238
          %v2484 = vpop.f32.mrf.mxu0
          %v2485 = vadd.f32 0.0, %v2484
          %v2486 = vpop.f32.mrf.mxu0
          %2487 = vmatprep.mubr.f32.mxu0 0.0
          %2488 = vmatmul.mubr.f32.gmra.mxu0 %v2239
          %v2489 = vpop.f32.mrf.mxu0
          %v2490 = vadd.f32 0.0, %v2489
          %v2491 = vpop.f32.mrf.mxu0
          %2492 = vmatprep.mubr.f32.mxu0 0.0
          %2493 = vmatmul.mubr.f32.gmra.mxu0 %v2240
          %v2494 = vpop.f32.mrf.mxu0
          %v2495 = vadd.f32 0.0, %v2494
          %v2496 = vpop.f32.mrf.mxu0
          %2497 = vmatprep.mubr.f32.mxu0 0.0
          %2498 = vmatmul.mubr.f32.gmra.mxu0 %v2241
          %v2499 = vpop.f32.mrf.mxu0
          %v2500 = vadd.f32 0.0, %v2499
          %v2501 = vpop.f32.mrf.mxu0
          %2502 = vmatprep.mubr.f32.mxu0 0.0
          %2503 = vmatmul.mubr.f32.gmra.mxu0 %v2242
          %v2504 = vpop.f32.mrf.mxu0
          %v2505 = vadd.f32 0.0, %v2504
          %v2506 = vpop.f32.mrf.mxu0
          %2507 = vmatprep.mubr.f32.mxu0 0.0
          %2508 = vmatmul.mubr.f32.gmra.mxu0 %v2243
          %v2509 = vpop.f32.mrf.mxu0
          %v2510 = vadd.f32 0.0, %v2509
          %v2511 = vpop.f32.mrf.mxu0
          %2512 = vmatprep.mubr.f32.mxu0 0.0
          %2513 = vmatmul.mubr.f32.gmra.mxu0 %v2244
          %v2514 = vpop.f32.mrf.mxu0
          %v2515 = vadd.f32 0.0, %v2514
          %v2516 = vpop.f32.mrf.mxu0
          %2517 = vmatprep.mubr.f32.mxu0 0.0
          %2518 = vmatmul.mubr.f32.gmra.mxu0 %v2245
          %v2519 = vpop.f32.mrf.mxu0
          %v2520 = vadd.f32 0.0, %v2519
          %v2521 = vpop.f32.mrf.mxu0
          %2522 = vmatprep.mubr.f32.mxu0 0.0
          %2523 = vmatmul.mubr.f32.gmra.mxu0 %v2246
          %v2524 = vpop.f32.mrf.mxu0
          %v2525 = vadd.f32 0.0, %v2524
          %v2526 = vpop.f32.mrf.mxu0
          %2527 = vmatprep.mubr.f32.mxu0 0.0
          %2528 = vmatmul.mubr.f32.gmra.mxu0 %v2247
          %v2529 = vpop.f32.mrf.mxu0
          %v2530 = vadd.f32 0.0, %v2529
          %v2531 = vpop.f32.mrf.mxu0
          %2532 = vmatprep.mubr.f32.mxu0 0.0
          %2533 = vmatmul.mubr.f32.gmra.mxu0 %v2248
          %v2534 = vpop.f32.mrf.mxu0
          %v2535 = vadd.f32 0.0, %v2534
          %v2536 = vpop.f32.mrf.mxu0
          %2537 = vmatprep.mubr.f32.mxu0 0.0
          %2538 = vmatmul.mubr.f32.gmra.mxu0 %v2249
          %v2539 = vpop.f32.mrf.mxu0
          %v2540 = vadd.f32 0.0, %v2539
          %v2541 = vpop.f32.mrf.mxu0
          %2542 = vmatprep.mubr.f32.mxu0 0.0
          %2543 = vmatmul.mubr.f32.gmra.mxu0 %v2250
          %v2544 = vpop.f32.mrf.mxu0
          %v2545 = vadd.f32 0.0, %v2544
          %v2546 = vpop.f32.mrf.mxu0
          %2547 = vmatprep.mubr.f32.mxu0 0.0
          %2548 = vmatmul.mubr.f32.gmra.mxu0 %v2251
          %v2549 = vpop.f32.mrf.mxu0
          %v2550 = vadd.f32 0.0, %v2549
          %v2551 = vpop.f32.mrf.mxu0
          %2552 = vmatprep.mubr.f32.mxu0 0.0
          %2553 = vmatmul.mubr.f32.gmra.mxu0 %v2252
          %v2554 = vpop.f32.mrf.mxu0
          %v2555 = vadd.f32 0.0, %v2554
          %v2556 = vpop.f32.mrf.mxu0
          %2557 = vmatprep.mubr.f32.mxu0 0.0
          %2558 = vmatmul.mubr.f32.gmra.mxu0 %v2253
          %v2559 = vpop.f32.mrf.mxu0
          %v2560 = vadd.f32 0.0, %v2559
          %v2561 = vpop.f32.mrf.mxu0
          %2562 = vmatprep.mubr.f32.mxu0 0.0
          %2563 = vmatmul.mubr.f32.gmra.mxu0 %v2254
          %v2564 = vpop.f32.mrf.mxu0
          %v2565 = vadd.f32 0.0, %v2564
          %v2566 = vpop.f32.mrf.mxu0
          %2567 = vmatprep.mubr.f32.mxu0 0.0
          %2568 = vmatmul.mubr.f32.gmra.mxu0 %v2255
          %v2569 = vpop.f32.mrf.mxu0
          %v2570 = vadd.f32 0.0, %v2569
          %v2571 = vpop.f32.mrf.mxu0
          %2572 = vmatprep.mubr.f32.mxu0 0.0
          %2573 = vmatmul.mubr.f32.gmra.mxu0 %v2256
          %v2574 = vpop.f32.mrf.mxu0
          %v2575 = vadd.f32 0.0, %v2574
          %v2576 = vpop.f32.mrf.mxu0
          %2577 = vmatprep.mubr.f32.mxu0 0.0
          %2578 = vmatmul.mubr.f32.gmra.mxu0 %v2257
          %v2579 = vpop.f32.mrf.mxu0
          %v2580 = vadd.f32 0.0, %v2579
          %v2581 = vpop.f32.mrf.mxu0
          %2582 = vmatprep.mubr.f32.mxu0 0.0
          %2583 = vmatmul.mubr.f32.gmra.mxu0 %v2258
          %v2584 = vpop.f32.mrf.mxu0
          %v2585 = vadd.f32 0.0, %v2584
          %v2586 = vpop.f32.mrf.mxu0
          %2587 = vmatprep.mubr.f32.mxu0 0.0
          %2588 = vmatmul.mubr.f32.gmra.mxu0 %v2259
          %v2589 = vpop.f32.mrf.mxu0
          %v2590 = vadd.f32 0.0, %v2589
          %v2591 = vpop.f32.mrf.mxu0
          %2592 = vmatprep.mubr.f32.mxu0 0.0
          %2593 = vmatmul.mubr.f32.gmra.mxu0 %v2260
          %v2594 = vpop.f32.mrf.mxu0
          %v2595 = vadd.f32 0.0, %v2594
          %v2596 = vpop.f32.mrf.mxu0
          %2597 = vmatprep.mubr.f32.mxu0 0.0
          %2598 = vmatmul.mubr.f32.gmra.mxu0 %v2261
          %v2599 = vpop.f32.mrf.mxu0
          %v2600 = vadd.f32 0.0, %v2599
          %v2601 = vpop.f32.mrf.mxu0
          %2602 = vmatprep.mubr.f32.mxu0 0.0
          %2603 = vmatmul.mubr.f32.gmra.mxu0 %v2262
          %v2604 = vpop.f32.mrf.mxu0
          %v2605 = vadd.f32 0.0, %v2604
          %v2606 = vpop.f32.mrf.mxu0
          %2607 = vmatprep.mubr.f32.mxu0 0.0
          %2608 = vmatmul.mubr.f32.gmra.mxu0 %v2263
          %v2609 = vpop.f32.mrf.mxu0
          %v2610 = vadd.f32 0.0, %v2609
          %v2611 = vpop.f32.mrf.mxu0
          %2612 = vmatprep.mubr.f32.mxu0 0.0
          %2613 = vmatmul.mubr.f32.gmra.mxu0 %v2264
          %v2614 = vpop.f32.mrf.mxu0
          %v2615 = vadd.f32 0.0, %v2614
          %v2616 = vpop.f32.mrf.mxu0
          %2617 = vmatprep.mubr.f32.mxu0 0.0
          %2618 = vmatmul.mubr.f32.gmra.mxu0 %v2265
          %v2619 = vpop.f32.mrf.mxu0
          %v2620 = vadd.f32 0.0, %v2619
          %v2621 = vpop.f32.mrf.mxu0
          %2622 = vmatprep.mubr.f32.mxu0 0.0
          %2623 = vmatmul.mubr.f32.gmra.mxu0 %v2266
          %v2624 = vpop.f32.mrf.mxu0
          %v2625 = vadd.f32 0.0, %v2624
          %v2626 = vpop.f32.mrf.mxu0
          %2627 = vmatprep.mubr.f32.mxu0 0.0
          %2628 = vmatmul.mubr.f32.gmra.mxu0 %v2267
          %v2629 = vpop.f32.mrf.mxu0
          %v2630 = vadd.f32 0.0, %v2629
          %v2631 = vpop.f32.mrf.mxu0
          %2632 = vmatprep.mubr.f32.mxu0 0.0
          %2633 = vmatmul.mubr.f32.gmra.mxu0 %v2268
          %v2634 = vpop.f32.mrf.mxu0
          %v2635 = vadd.f32 0.0, %v2634
          %v2636 = vpop.f32.mrf.mxu0
          %2637 = vmatprep.mubr.f32.mxu0 0.0
          %2638 = vmatmul.mubr.f32.gmra.mxu0 %v2269
          %v2639 = vpop.f32.mrf.mxu0
          %v2640 = vadd.f32 0.0, %v2639
          %v2641 = vpop.f32.mrf.mxu0
          %2642 = vmatprep.mubr.f32.mxu0 0.0
          %2643 = vmatmul.mubr.f32.gmra.mxu0 %v2270
          %v2644 = vpop.f32.mrf.mxu0
          %v2645 = vadd.f32 0.0, %v2644
          %v2646 = vpop.f32.mrf.mxu0
          %2647 = vmatprep.mubr.f32.mxu0 0.0
          %2648 = vmatmul.mubr.f32.gmra.mxu0 %v2271
          %v2649 = vpop.f32.mrf.mxu0
          %v2650 = vadd.f32 0.0, %v2649
          %v2651 = vpop.f32.mrf.mxu0
          %2652 = vmatprep.mubr.f32.mxu0 0.0
          %2653 = vmatmul.mubr.f32.gmra.mxu0 %v2272
          %v2654 = vpop.f32.mrf.mxu0
          %v2655 = vadd.f32 0.0, %v2654
          %v2656 = vpop.f32.mrf.mxu0
          %2657 = vmatprep.mubr.f32.mxu0 0.0
          %2658 = vmatmul.mubr.f32.gmra.mxu0 %v2273
          %v2659 = vpop.f32.mrf.mxu0
          %v2660 = vadd.f32 0.0, %v2659
          %v2661 = vpop.f32.mrf.mxu0
          %2662 = vmatprep.mubr.f32.mxu0 0.0
          %2663 = vmatmul.mubr.f32.gmra.mxu0 %v2274
          %v2664 = vpop.f32.mrf.mxu0
          %v2665 = vadd.f32 0.0, %v2664
          %v2666 = vpop.f32.mrf.mxu0
          %2667 = vmatprep.mubr.f32.mxu0 0.0
          %2668 = vmatmul.mubr.f32.gmra.mxu0 %v2275
          %v2669 = vpop.f32.mrf.mxu0
          %v2670 = vadd.f32 0.0, %v2669
          %v2671 = vpop.f32.mrf.mxu0
          %2672 = vmatprep.mubr.f32.mxu0 0.0
          %2673 = vmatmul.mubr.f32.gmra.mxu0 %v2276
          %v2674 = vpop.f32.mrf.mxu0
          %v2675 = vadd.f32 0.0, %v2674
          %v2676 = vpop.f32.mrf.mxu0
          %2677 = vdwg.mxu0
          %v2678 = vld [vmem:[#allocation3] sm:$0xff]
          %v2679 = vld [vmem:[#allocation3 + $0x8] sm:$0xff]
          %v2680 = vld [vmem:[#allocation3 + $0x10] sm:$0xff]
          %v2681 = vld [vmem:[#allocation3 + $0x18] sm:$0xff]
          %v2682 = vld [vmem:[#allocation3 + $0x20] sm:$0xff]
          %v2683 = vld [vmem:[#allocation3 + $0x28] sm:$0xff]
          %v2684 = vld [vmem:[#allocation3 + $0x30] sm:$0xff]
          %v2685 = vld [vmem:[#allocation3 + $0x38] sm:$0xff]
          %v2686 = vld [vmem:[#allocation3 + $0x40] sm:$0xff]
          %v2687 = vld [vmem:[#allocation3 + $0x48] sm:$0xff]
          %v2688 = vld [vmem:[#allocation3 + $0x50] sm:$0xff]
          %v2689 = vld [vmem:[#allocation3 + $0x58] sm:$0xff]
          %v2690 = vld [vmem:[#allocation3 + $0x60] sm:$0xff]
          %v2691 = vld [vmem:[#allocation3 + $0x68] sm:$0xff]
          %v2692 = vld [vmem:[#allocation3 + $0x70] sm:$0xff]
          %v2693 = vld [vmem:[#allocation3 + $0x78] sm:$0xff]
          %v2694 = vld [vmem:[#allocation3 + $0x80] sm:$0xff]
          %v2695 = vld [vmem:[#allocation3 + $0x88] sm:$0xff]
          %v2696 = vld [vmem:[#allocation3 + $0x90] sm:$0xff]
          %v2697 = vld [vmem:[#allocation3 + $0x98] sm:$0xff]
          %v2698 = vld [vmem:[#allocation3 + $0xa0] sm:$0xff]
          %v2699 = vld [vmem:[#allocation3 + $0xa8] sm:$0xff]
          %v2700 = vld [vmem:[#allocation3 + $0xb0] sm:$0xff]
          %v2701 = vld [vmem:[#allocation3 + $0xb8] sm:$0xff]
          %v2702 = vld [vmem:[#allocation3 + $0xc0] sm:$0xff]
          %v2703 = vld [vmem:[#allocation3 + $0xc8] sm:$0xff]
          %v2704 = vld [vmem:[#allocation3 + $0xd0] sm:$0xff]
          %v2705 = vld [vmem:[#allocation3 + $0xd8] sm:$0xff]
          %v2706 = vld [vmem:[#allocation3 + $0xe0] sm:$0xff]
          %v2707 = vld [vmem:[#allocation3 + $0xe8] sm:$0xff]
          %v2708 = vld [vmem:[#allocation3 + $0xf0] sm:$0xff]
          %v2709 = vld [vmem:[#allocation3 + $0xf8] sm:$0xff]
          %v2710 = vld [vmem:[#allocation3 + $0x100] sm:$0xff]
          %v2711 = vld [vmem:[#allocation3 + $0x108] sm:$0xff]
          %v2712 = vld [vmem:[#allocation3 + $0x110] sm:$0xff]
          %v2713 = vld [vmem:[#allocation3 + $0x118] sm:$0xff]
          %v2714 = vld [vmem:[#allocation3 + $0x120] sm:$0xff]
          %v2715 = vld [vmem:[#allocation3 + $0x128] sm:$0xff]
          %v2716 = vld [vmem:[#allocation3 + $0x130] sm:$0xff]
          %v2717 = vld [vmem:[#allocation3 + $0x138] sm:$0xff]
          %v2718 = vld [vmem:[#allocation3 + $0x140] sm:$0xff]
          %v2719 = vld [vmem:[#allocation3 + $0x148] sm:$0xff]
          %v2720 = vld [vmem:[#allocation3 + $0x150] sm:$0xff]
          %v2721 = vld [vmem:[#allocation3 + $0x158] sm:$0xff]
          %v2722 = vld [vmem:[#allocation3 + $0x160] sm:$0xff]
          %v2723 = vld [vmem:[#allocation3 + $0x168] sm:$0xff]
          %v2724 = vld [vmem:[#allocation3 + $0x170] sm:$0xff]
          %v2725 = vld [vmem:[#allocation3 + $0x178] sm:$0xff]
          %v2726 = vld [vmem:[#allocation3 + $0x180] sm:$0xff]
          %v2727 = vld [vmem:[#allocation3 + $0x188] sm:$0xff]
          %v2728 = vld [vmem:[#allocation3 + $0x190] sm:$0xff]
          %v2729 = vld [vmem:[#allocation3 + $0x198] sm:$0xff]
          %v2730 = vld [vmem:[#allocation3 + $0x1a0] sm:$0xff]
          %v2731 = vld [vmem:[#allocation3 + $0x1a8] sm:$0xff]
          %v2732 = vld [vmem:[#allocation3 + $0x1b0] sm:$0xff]
          %v2733 = vld [vmem:[#allocation3 + $0x1b8] sm:$0xff]
          %v2734 = vld [vmem:[#allocation3 + $0x1c0] sm:$0xff]
          %v2735 = vld [vmem:[#allocation3 + $0x1c8] sm:$0xff]
          %v2736 = vld [vmem:[#allocation3 + $0x1d0] sm:$0xff]
          %v2737 = vld [vmem:[#allocation3 + $0x1d8] sm:$0xff]
          %v2738 = vld [vmem:[#allocation3 + $0x1e0] sm:$0xff]
          %v2739 = vld [vmem:[#allocation3 + $0x1e8] sm:$0xff]
          %v2740 = vld [vmem:[#allocation3 + $0x1f0] sm:$0xff]
          %v2741 = vld [vmem:[#allocation3 + $0x1f8] sm:$0xff]
          %v2742 = vmax.f32 %v2678, 1.0
          %v2743 = vmax.f32 %v2679, 1.0
          %v2744 = vmax.f32 %v2680, 1.0
          %v2745 = vmax.f32 %v2681, 1.0
          %v2746 = vmax.f32 %v2682, 1.0
          %v2747 = vmax.f32 %v2683, 1.0
          %v2748 = vmax.f32 %v2684, 1.0
          %v2749 = vmax.f32 %v2685, 1.0
          %v2750 = vmax.f32 %v2686, 1.0
          %v2751 = vmax.f32 %v2687, 1.0
          %v2752 = vmax.f32 %v2688, 1.0
          %v2753 = vmax.f32 %v2689, 1.0
          %v2754 = vmax.f32 %v2690, 1.0
          %v2755 = vmax.f32 %v2691, 1.0
          %v2756 = vmax.f32 %v2692, 1.0
          %v2757 = vmax.f32 %v2693, 1.0
          %v2758 = vmax.f32 %v2694, 1.0
          %v2759 = vmax.f32 %v2695, 1.0
          %v2760 = vmax.f32 %v2696, 1.0
          %v2761 = vmax.f32 %v2697, 1.0
          %v2762 = vmax.f32 %v2698, 1.0
          %v2763 = vmax.f32 %v2699, 1.0
          %v2764 = vmax.f32 %v2700, 1.0
          %v2765 = vmax.f32 %v2701, 1.0
          %v2766 = vmax.f32 %v2702, 1.0
          %v2767 = vmax.f32 %v2703, 1.0
          %v2768 = vmax.f32 %v2704, 1.0
          %v2769 = vmax.f32 %v2705, 1.0
          %v2770 = vmax.f32 %v2706, 1.0
          %v2771 = vmax.f32 %v2707, 1.0
          %v2772 = vmax.f32 %v2708, 1.0
          %v2773 = vmax.f32 %v2709, 1.0
          %v2774 = vmax.f32 %v2710, 1.0
          %v2775 = vmax.f32 %v2711, 1.0
          %v2776 = vmax.f32 %v2712, 1.0
          %v2777 = vmax.f32 %v2713, 1.0
          %v2778 = vmax.f32 %v2714, 1.0
          %v2779 = vmax.f32 %v2715, 1.0
          %v2780 = vmax.f32 %v2716, 1.0
          %v2781 = vmax.f32 %v2717, 1.0
          %v2782 = vmax.f32 %v2718, 1.0
          %v2783 = vmax.f32 %v2719, 1.0
          %v2784 = vmax.f32 %v2720, 1.0
          %v2785 = vmax.f32 %v2721, 1.0
          %v2786 = vmax.f32 %v2722, 1.0
          %v2787 = vmax.f32 %v2723, 1.0
          %v2788 = vmax.f32 %v2724, 1.0
          %v2789 = vmax.f32 %v2725, 1.0
          %v2790 = vmax.f32 %v2726, 1.0
          %v2791 = vmax.f32 %v2727, 1.0
          %v2792 = vmax.f32 %v2728, 1.0
          %v2793 = vmax.f32 %v2729, 1.0
          %v2794 = vmax.f32 %v2730, 1.0
          %v2795 = vmax.f32 %v2731, 1.0
          %v2796 = vmax.f32 %v2732, 1.0
          %v2797 = vmax.f32 %v2733, 1.0
          %v2798 = vmax.f32 %v2734, 1.0
          %v2799 = vmax.f32 %v2735, 1.0
          %v2800 = vmax.f32 %v2736, 1.0
          %v2801 = vmax.f32 %v2737, 1.0
          %v2802 = vmax.f32 %v2738, 1.0
          %v2803 = vmax.f32 %v2739, 1.0
          %v2804 = vmax.f32 %v2740, 1.0
          %v2805 = vmax.f32 %v2741, 1.0
          %v2806 = vrsqrt.pop %v2742
          %v2807 = vrsqrt.pop %v2743
          %v2808 = vrsqrt.pop %v2744
          %v2809 = vrsqrt.pop %v2745
          %v2810 = vrsqrt.pop %v2746
          %v2811 = vrsqrt.pop %v2747
          %v2812 = vrsqrt.pop %v2748
          %v2813 = vrsqrt.pop %v2749
          %v2814 = vrsqrt.pop %v2750
          %v2815 = vrsqrt.pop %v2751
          %v2816 = vrsqrt.pop %v2752
          %v2817 = vrsqrt.pop %v2753
          %v2818 = vrsqrt.pop %v2754
          %v2819 = vrsqrt.pop %v2755
          %v2820 = vrsqrt.pop %v2756
          %v2821 = vrsqrt.pop %v2757
          %v2822 = vrsqrt.pop %v2758
          %v2823 = vrsqrt.pop %v2759
          %v2824 = vrsqrt.pop %v2760
          %v2825 = vrsqrt.pop %v2761
          %v2826 = vrsqrt.pop %v2762
          %v2827 = vrsqrt.pop %v2763
          %v2828 = vrsqrt.pop %v2764
          %v2829 = vrsqrt.pop %v2765
          %v2830 = vrsqrt.pop %v2766
          %v2831 = vrsqrt.pop %v2767
          %v2832 = vrsqrt.pop %v2768
          %v2833 = vrsqrt.pop %v2769
          %v2834 = vrsqrt.pop %v2770
          %v2835 = vrsqrt.pop %v2771
          %v2836 = vrsqrt.pop %v2772
          %v2837 = vrsqrt.pop %v2773
          %v2838 = vrsqrt.pop %v2774
          %v2839 = vrsqrt.pop %v2775
          %v2840 = vrsqrt.pop %v2776
          %v2841 = vrsqrt.pop %v2777
          %v2842 = vrsqrt.pop %v2778
          %v2843 = vrsqrt.pop %v2779
          %v2844 = vrsqrt.pop %v2780
          %v2845 = vrsqrt.pop %v2781
          %v2846 = vrsqrt.pop %v2782
          %v2847 = vrsqrt.pop %v2783
          %v2848 = vrsqrt.pop %v2784
          %v2849 = vrsqrt.pop %v2785
          %v2850 = vrsqrt.pop %v2786
          %v2851 = vrsqrt.pop %v2787
          %v2852 = vrsqrt.pop %v2788
          %v2853 = vrsqrt.pop %v2789
          %v2854 = vrsqrt.pop %v2790
          %v2855 = vrsqrt.pop %v2791
          %v2856 = vrsqrt.pop %v2792
          %v2857 = vrsqrt.pop %v2793
          %v2858 = vrsqrt.pop %v2794
          %v2859 = vrsqrt.pop %v2795
          %v2860 = vrsqrt.pop %v2796
          %v2861 = vrsqrt.pop %v2797
          %v2862 = vrsqrt.pop %v2798
          %v2863 = vrsqrt.pop %v2799
          %v2864 = vrsqrt.pop %v2800
          %v2865 = vrsqrt.pop %v2801
          %v2866 = vrsqrt.pop %v2802
          %v2867 = vrsqrt.pop %v2803
          %v2868 = vrsqrt.pop %v2804
          %v2869 = vrsqrt.pop %v2805
          %2871 = vset.pattern.permute.xlu0 0
          %2872 = vperm.xlu0 %2871, %v2806
          %v2873 = vpop.permute.xlu0 %2872
          %2876 = vset.pattern.permute.xlu0 0
          %2877 = vperm.xlu0 %2876, %v2807
          %v2878 = vpop.permute.xlu0 %2877
          %2881 = vset.pattern.permute.xlu0 0
          %2882 = vperm.xlu0 %2881, %v2808
          %v2883 = vpop.permute.xlu0 %2882
          %2886 = vset.pattern.permute.xlu0 0
          %2887 = vperm.xlu0 %2886, %v2809
          %v2888 = vpop.permute.xlu0 %2887
          %2891 = vset.pattern.permute.xlu0 0
          %2892 = vperm.xlu0 %2891, %v2810
          %v2893 = vpop.permute.xlu0 %2892
          %2896 = vset.pattern.permute.xlu0 0
          %2897 = vperm.xlu0 %2896, %v2811
          %v2898 = vpop.permute.xlu0 %2897
          %2901 = vset.pattern.permute.xlu0 0
          %2902 = vperm.xlu0 %2901, %v2812
          %v2903 = vpop.permute.xlu0 %2902
          %2906 = vset.pattern.permute.xlu0 0
          %2907 = vperm.xlu0 %2906, %v2813
          %v2908 = vpop.permute.xlu0 %2907
          %2911 = vset.pattern.permute.xlu0 0
          %2912 = vperm.xlu0 %2911, %v2814
          %v2913 = vpop.permute.xlu0 %2912
          %2916 = vset.pattern.permute.xlu0 0
          %2917 = vperm.xlu0 %2916, %v2815
          %v2918 = vpop.permute.xlu0 %2917
          %2921 = vset.pattern.permute.xlu0 0
          %2922 = vperm.xlu0 %2921, %v2816
          %v2923 = vpop.permute.xlu0 %2922
          %2926 = vset.pattern.permute.xlu0 0
          %2927 = vperm.xlu0 %2926, %v2817
          %v2928 = vpop.permute.xlu0 %2927
          %2931 = vset.pattern.permute.xlu0 0
          %2932 = vperm.xlu0 %2931, %v2818
          %v2933 = vpop.permute.xlu0 %2932
          %2936 = vset.pattern.permute.xlu0 0
          %2937 = vperm.xlu0 %2936, %v2819
          %v2938 = vpop.permute.xlu0 %2937
          %2941 = vset.pattern.permute.xlu0 0
          %2942 = vperm.xlu0 %2941, %v2820
          %v2943 = vpop.permute.xlu0 %2942
          %2946 = vset.pattern.permute.xlu0 0
          %2947 = vperm.xlu0 %2946, %v2821
          %v2948 = vpop.permute.xlu0 %2947
          %2951 = vset.pattern.permute.xlu0 0
          %2952 = vperm.xlu0 %2951, %v2822
          %v2953 = vpop.permute.xlu0 %2952
          %2956 = vset.pattern.permute.xlu0 0
          %2957 = vperm.xlu0 %2956, %v2823
          %v2958 = vpop.permute.xlu0 %2957
          %2961 = vset.pattern.permute.xlu0 0
          %2962 = vperm.xlu0 %2961, %v2824
          %v2963 = vpop.permute.xlu0 %2962
          %2966 = vset.pattern.permute.xlu0 0
          %2967 = vperm.xlu0 %2966, %v2825
          %v2968 = vpop.permute.xlu0 %2967
          %2971 = vset.pattern.permute.xlu0 0
          %2972 = vperm.xlu0 %2971, %v2826
          %v2973 = vpop.permute.xlu0 %2972
          %2976 = vset.pattern.permute.xlu0 0
          %2977 = vperm.xlu0 %2976, %v2827
          %v2978 = vpop.permute.xlu0 %2977
          %2981 = vset.pattern.permute.xlu0 0
          %2982 = vperm.xlu0 %2981, %v2828
          %v2983 = vpop.permute.xlu0 %2982
          %2986 = vset.pattern.permute.xlu0 0
          %2987 = vperm.xlu0 %2986, %v2829
          %v2988 = vpop.permute.xlu0 %2987
          %2991 = vset.pattern.permute.xlu0 0
          %2992 = vperm.xlu0 %2991, %v2830
          %v2993 = vpop.permute.xlu0 %2992
          %2996 = vset.pattern.permute.xlu0 0
          %2997 = vperm.xlu0 %2996, %v2831
          %v2998 = vpop.permute.xlu0 %2997
          %3001 = vset.pattern.permute.xlu0 0
          %3002 = vperm.xlu0 %3001, %v2832
          %v3003 = vpop.permute.xlu0 %3002
          %3006 = vset.pattern.permute.xlu0 0
          %3007 = vperm.xlu0 %3006, %v2833
          %v3008 = vpop.permute.xlu0 %3007
          %3011 = vset.pattern.permute.xlu0 0
          %3012 = vperm.xlu0 %3011, %v2834
          %v3013 = vpop.permute.xlu0 %3012
          %3016 = vset.pattern.permute.xlu0 0
          %3017 = vperm.xlu0 %3016, %v2835
          %v3018 = vpop.permute.xlu0 %3017
          %3021 = vset.pattern.permute.xlu0 0
          %3022 = vperm.xlu0 %3021, %v2836
          %v3023 = vpop.permute.xlu0 %3022
          %3026 = vset.pattern.permute.xlu0 0
          %3027 = vperm.xlu0 %3026, %v2837
          %v3028 = vpop.permute.xlu0 %3027
          %3031 = vset.pattern.permute.xlu0 0
          %3032 = vperm.xlu0 %3031, %v2838
          %v3033 = vpop.permute.xlu0 %3032
          %3036 = vset.pattern.permute.xlu0 0
          %3037 = vperm.xlu0 %3036, %v2839
          %v3038 = vpop.permute.xlu0 %3037
          %3041 = vset.pattern.permute.xlu0 0
          %3042 = vperm.xlu0 %3041, %v2840
          %v3043 = vpop.permute.xlu0 %3042
          %3046 = vset.pattern.permute.xlu0 0
          %3047 = vperm.xlu0 %3046, %v2841
          %v3048 = vpop.permute.xlu0 %3047
          %3051 = vset.pattern.permute.xlu0 0
          %3052 = vperm.xlu0 %3051, %v2842
          %v3053 = vpop.permute.xlu0 %3052
          %3056 = vset.pattern.permute.xlu0 0
          %3057 = vperm.xlu0 %3056, %v2843
          %v3058 = vpop.permute.xlu0 %3057
          %3061 = vset.pattern.permute.xlu0 0
          %3062 = vperm.xlu0 %3061, %v2844
          %v3063 = vpop.permute.xlu0 %3062
          %3066 = vset.pattern.permute.xlu0 0
          %3067 = vperm.xlu0 %3066, %v2845
          %v3068 = vpop.permute.xlu0 %3067
          %3071 = vset.pattern.permute.xlu0 0
          %3072 = vperm.xlu0 %3071, %v2846
          %v3073 = vpop.permute.xlu0 %3072
          %3076 = vset.pattern.permute.xlu0 0
          %3077 = vperm.xlu0 %3076, %v2847
          %v3078 = vpop.permute.xlu0 %3077
          %3081 = vset.pattern.permute.xlu0 0
          %3082 = vperm.xlu0 %3081, %v2848
          %v3083 = vpop.permute.xlu0 %3082
          %3086 = vset.pattern.permute.xlu0 0
          %3087 = vperm.xlu0 %3086, %v2849
          %v3088 = vpop.permute.xlu0 %3087
          %3091 = vset.pattern.permute.xlu0 0
          %3092 = vperm.xlu0 %3091, %v2850
          %v3093 = vpop.permute.xlu0 %3092
          %3096 = vset.pattern.permute.xlu0 0
          %3097 = vperm.xlu0 %3096, %v2851
          %v3098 = vpop.permute.xlu0 %3097
          %3101 = vset.pattern.permute.xlu0 0
          %3102 = vperm.xlu0 %3101, %v2852
          %v3103 = vpop.permute.xlu0 %3102
          %3106 = vset.pattern.permute.xlu0 0
          %3107 = vperm.xlu0 %3106, %v2853
          %v3108 = vpop.permute.xlu0 %3107
          %3111 = vset.pattern.permute.xlu0 0
          %3112 = vperm.xlu0 %3111, %v2854
          %v3113 = vpop.permute.xlu0 %3112
          %3116 = vset.pattern.permute.xlu0 0
          %3117 = vperm.xlu0 %3116, %v2855
          %v3118 = vpop.permute.xlu0 %3117
          %3121 = vset.pattern.permute.xlu0 0
          %3122 = vperm.xlu0 %3121, %v2856
          %v3123 = vpop.permute.xlu0 %3122
          %3126 = vset.pattern.permute.xlu0 0
          %3127 = vperm.xlu0 %3126, %v2857
          %v3128 = vpop.permute.xlu0 %3127
          %3131 = vset.pattern.permute.xlu0 0
          %3132 = vperm.xlu0 %3131, %v2858
          %v3133 = vpop.permute.xlu0 %3132
          %3136 = vset.pattern.permute.xlu0 0
          %3137 = vperm.xlu0 %3136, %v2859
          %v3138 = vpop.permute.xlu0 %3137
          %3141 = vset.pattern.permute.xlu0 0
          %3142 = vperm.xlu0 %3141, %v2860
          %v3143 = vpop.permute.xlu0 %3142
          %3146 = vset.pattern.permute.xlu0 0
          %3147 = vperm.xlu0 %3146, %v2861
          %v3148 = vpop.permute.xlu0 %3147
          %3151 = vset.pattern.permute.xlu0 0
          %3152 = vperm.xlu0 %3151, %v2862
          %v3153 = vpop.permute.xlu0 %3152
          %3156 = vset.pattern.permute.xlu0 0
          %3157 = vperm.xlu0 %3156, %v2863
          %v3158 = vpop.permute.xlu0 %3157
          %3161 = vset.pattern.permute.xlu0 0
          %3162 = vperm.xlu0 %3161, %v2864
          %v3163 = vpop.permute.xlu0 %3162
          %3166 = vset.pattern.permute.xlu0 0
          %3167 = vperm.xlu0 %3166, %v2865
          %v3168 = vpop.permute.xlu0 %3167
          %3171 = vset.pattern.permute.xlu0 0
          %3172 = vperm.xlu0 %3171, %v2866
          %v3173 = vpop.permute.xlu0 %3172
          %3176 = vset.pattern.permute.xlu0 0
          %3177 = vperm.xlu0 %3176, %v2867
          %v3178 = vpop.permute.xlu0 %3177
          %3181 = vset.pattern.permute.xlu0 0
          %3182 = vperm.xlu0 %3181, %v2868
          %v3183 = vpop.permute.xlu0 %3182
          %3186 = vset.pattern.permute.xlu0 0
          %3187 = vperm.xlu0 %3186, %v2869
          %v3188 = vpop.permute.xlu0 %3187
          %v3190 = vmul.f32 %v2360, %v2873
          %v3191 = vmul.f32 %v2365, %v2878
          %v3192 = vmul.f32 %v2370, %v2883
          %v3193 = vmul.f32 %v2375, %v2888
          %v3194 = vmul.f32 %v2380, %v2893
          %v3195 = vmul.f32 %v2385, %v2898
          %v3196 = vmul.f32 %v2390, %v2903
          %v3197 = vmul.f32 %v2395, %v2908
          %v3198 = vmul.f32 %v2400, %v2913
          %v3199 = vmul.f32 %v2405, %v2918
          %v3200 = vmul.f32 %v2410, %v2923
          %v3201 = vmul.f32 %v2415, %v2928
          %v3202 = vmul.f32 %v2420, %v2933
          %v3203 = vmul.f32 %v2425, %v2938
          %v3204 = vmul.f32 %v2430, %v2943
          %v3205 = vmul.f32 %v2435, %v2948
          %v3206 = vmul.f32 %v2440, %v2953
          %v3207 = vmul.f32 %v2445, %v2958
          %v3208 = vmul.f32 %v2450, %v2963
          %v3209 = vmul.f32 %v2455, %v2968
          %v3210 = vmul.f32 %v2460, %v2973
          %v3211 = vmul.f32 %v2465, %v2978
          %v3212 = vmul.f32 %v2470, %v2983
          %v3213 = vmul.f32 %v2475, %v2988
          %v3214 = vmul.f32 %v2480, %v2993
          %v3215 = vmul.f32 %v2485, %v2998
          %v3216 = vmul.f32 %v2490, %v3003
          %v3217 = vmul.f32 %v2495, %v3008
          %v3218 = vmul.f32 %v2500, %v3013
          %v3219 = vmul.f32 %v2505, %v3018
          %v3220 = vmul.f32 %v2510, %v3023
          %v3221 = vmul.f32 %v2515, %v3028
          %v3222 = vmul.f32 %v2520, %v3033
          %v3223 = vmul.f32 %v2525, %v3038
          %v3224 = vmul.f32 %v2530, %v3043
          %v3225 = vmul.f32 %v2535, %v3048
          %v3226 = vmul.f32 %v2540, %v3053
          %v3227 = vmul.f32 %v2545, %v3058
          %v3228 = vmul.f32 %v2550, %v3063
          %v3229 = vmul.f32 %v2555, %v3068
          %v3230 = vmul.f32 %v2560, %v3073
          %v3231 = vmul.f32 %v2565, %v3078
          %v3232 = vmul.f32 %v2570, %v3083
          %v3233 = vmul.f32 %v2575, %v3088
          %v3234 = vmul.f32 %v2580, %v3093
          %v3235 = vmul.f32 %v2585, %v3098
          %v3236 = vmul.f32 %v2590, %v3103
          %v3237 = vmul.f32 %v2595, %v3108
          %v3238 = vmul.f32 %v2600, %v3113
          %v3239 = vmul.f32 %v2605, %v3118
          %v3240 = vmul.f32 %v2610, %v3123
          %v3241 = vmul.f32 %v2615, %v3128
          %v3242 = vmul.f32 %v2620, %v3133
          %v3243 = vmul.f32 %v2625, %v3138
          %v3244 = vmul.f32 %v2630, %v3143
          %v3245 = vmul.f32 %v2635, %v3148
          %v3246 = vmul.f32 %v2640, %v3153
          %v3247 = vmul.f32 %v2645, %v3158
          %v3248 = vmul.f32 %v2650, %v3163
          %v3249 = vmul.f32 %v2655, %v3168
          %v3250 = vmul.f32 %v2660, %v3173
          %v3251 = vmul.f32 %v2665, %v3178
          %v3252 = vmul.f32 %v2670, %v3183
          %v3253 = vmul.f32 %v2675, %v3188
          %v3254 = vld [vmem:[%s3] sm:$0x1]
          %v3256 = vlaneseq
          %v3257 = vshrl.u32 %v3256, 7
          %v3258 = vsub.s32 0, %v3257
          %v3259 = vrot.slane %v3254, %v3258
          %v3261 = vadd.f32 %v3190, %v3259
          %v3262 = vadd.f32 %v3191, %v3259
          %v3263 = vadd.f32 %v3192, %v3259
          %v3264 = vadd.f32 %v3193, %v3259
          %v3265 = vadd.f32 %v3194, %v3259
          %v3266 = vadd.f32 %v3195, %v3259
          %v3267 = vadd.f32 %v3196, %v3259
          %v3268 = vadd.f32 %v3197, %v3259
          %v3269 = vadd.f32 %v3198, %v3259
          %v3270 = vadd.f32 %v3199, %v3259
          %v3271 = vadd.f32 %v3200, %v3259
          %v3272 = vadd.f32 %v3201, %v3259
          %v3273 = vadd.f32 %v3202, %v3259
          %v3274 = vadd.f32 %v3203, %v3259
          %v3275 = vadd.f32 %v3204, %v3259
          %v3276 = vadd.f32 %v3205, %v3259
          %v3277 = vadd.f32 %v3206, %v3259
          %v3278 = vadd.f32 %v3207, %v3259
          %v3279 = vadd.f32 %v3208, %v3259
          %v3280 = vadd.f32 %v3209, %v3259
          %v3281 = vadd.f32 %v3210, %v3259
          %v3282 = vadd.f32 %v3211, %v3259
          %v3283 = vadd.f32 %v3212, %v3259
          %v3284 = vadd.f32 %v3213, %v3259
          %v3285 = vadd.f32 %v3214, %v3259
          %v3286 = vadd.f32 %v3215, %v3259
          %v3287 = vadd.f32 %v3216, %v3259
          %v3288 = vadd.f32 %v3217, %v3259
          %v3289 = vadd.f32 %v3218, %v3259
          %v3290 = vadd.f32 %v3219, %v3259
          %v3291 = vadd.f32 %v3220, %v3259
          %v3292 = vadd.f32 %v3221, %v3259
          %v3293 = vadd.f32 %v3222, %v3259
          %v3294 = vadd.f32 %v3223, %v3259
          %v3295 = vadd.f32 %v3224, %v3259
          %v3296 = vadd.f32 %v3225, %v3259
          %v3297 = vadd.f32 %v3226, %v3259
          %v3298 = vadd.f32 %v3227, %v3259
          %v3299 = vadd.f32 %v3228, %v3259
          %v3300 = vadd.f32 %v3229, %v3259
          %v3301 = vadd.f32 %v3230, %v3259
          %v3302 = vadd.f32 %v3231, %v3259
          %v3303 = vadd.f32 %v3232, %v3259
          %v3304 = vadd.f32 %v3233, %v3259
          %v3305 = vadd.f32 %v3234, %v3259
          %v3306 = vadd.f32 %v3235, %v3259
          %v3307 = vadd.f32 %v3236, %v3259
          %v3308 = vadd.f32 %v3237, %v3259
          %v3309 = vadd.f32 %v3238, %v3259
          %v3310 = vadd.f32 %v3239, %v3259
          %v3311 = vadd.f32 %v3240, %v3259
          %v3312 = vadd.f32 %v3241, %v3259
          %v3313 = vadd.f32 %v3242, %v3259
          %v3314 = vadd.f32 %v3243, %v3259
          %v3315 = vadd.f32 %v3244, %v3259
          %v3316 = vadd.f32 %v3245, %v3259
          %v3317 = vadd.f32 %v3246, %v3259
          %v3318 = vadd.f32 %v3247, %v3259
          %v3319 = vadd.f32 %v3248, %v3259
          %v3320 = vadd.f32 %v3249, %v3259
          %v3321 = vadd.f32 %v3250, %v3259
          %v3322 = vadd.f32 %v3251, %v3259
          %v3323 = vadd.f32 %v3252, %v3259
          %v3324 = vadd.f32 %v3253, %v3259
          %3325 = vst [vmem:[#allocation10] sm:$0xff] %v3261
          %3326 = vst [vmem:[#allocation10 + $0x8] sm:$0xff] %v3262
          %3327 = vst [vmem:[#allocation10 + $0x10] sm:$0xff] %v3263
          %3328 = vst [vmem:[#allocation10 + $0x18] sm:$0xff] %v3264
          %3329 = vst [vmem:[#allocation10 + $0x20] sm:$0xff] %v3265
          %3330 = vst [vmem:[#allocation10 + $0x28] sm:$0xff] %v3266
          %3331 = vst [vmem:[#allocation10 + $0x30] sm:$0xff] %v3267
          %3332 = vst [vmem:[#allocation10 + $0x38] sm:$0xff] %v3268
          %3333 = vst [vmem:[#allocation10 + $0x40] sm:$0xff] %v3269
          %3334 = vst [vmem:[#allocation10 + $0x48] sm:$0xff] %v3270
          %3335 = vst [vmem:[#allocation10 + $0x50] sm:$0xff] %v3271
          %3336 = vst [vmem:[#allocation10 + $0x58] sm:$0xff] %v3272
          %3337 = vst [vmem:[#allocation10 + $0x60] sm:$0xff] %v3273
          %3338 = vst [vmem:[#allocation10 + $0x68] sm:$0xff] %v3274
          %3339 = vst [vmem:[#allocation10 + $0x70] sm:$0xff] %v3275
          %3340 = vst [vmem:[#allocation10 + $0x78] sm:$0xff] %v3276
          %3341 = vst [vmem:[#allocation10 + $0x80] sm:$0xff] %v3277
          %3342 = vst [vmem:[#allocation10 + $0x88] sm:$0xff] %v3278
          %3343 = vst [vmem:[#allocation10 + $0x90] sm:$0xff] %v3279
          %3344 = vst [vmem:[#allocation10 + $0x98] sm:$0xff] %v3280
          %3345 = vst [vmem:[#allocation10 + $0xa0] sm:$0xff] %v3281
          %3346 = vst [vmem:[#allocation10 + $0xa8] sm:$0xff] %v3282
          %3347 = vst [vmem:[#allocation10 + $0xb0] sm:$0xff] %v3283
          %3348 = vst [vmem:[#allocation10 + $0xb8] sm:$0xff] %v3284
          %3349 = vst [vmem:[#allocation10 + $0xc0] sm:$0xff] %v3285
          %3350 = vst [vmem:[#allocation10 + $0xc8] sm:$0xff] %v3286
          %3351 = vst [vmem:[#allocation10 + $0xd0] sm:$0xff] %v3287
          %3352 = vst [vmem:[#allocation10 + $0xd8] sm:$0xff] %v3288
          %3353 = vst [vmem:[#allocation10 + $0xe0] sm:$0xff] %v3289
          %3354 = vst [vmem:[#allocation10 + $0xe8] sm:$0xff] %v3290
          %3355 = vst [vmem:[#allocation10 + $0xf0] sm:$0xff] %v3291
          %3356 = vst [vmem:[#allocation10 + $0xf8] sm:$0xff] %v3292
          %3357 = vst [vmem:[#allocation10 + $0x100] sm:$0xff] %v3293
          %3358 = vst [vmem:[#allocation10 + $0x108] sm:$0xff] %v3294
          %3359 = vst [vmem:[#allocation10 + $0x110] sm:$0xff] %v3295
          %3360 = vst [vmem:[#allocation10 + $0x118] sm:$0xff] %v3296
          %3361 = vst [vmem:[#allocation10 + $0x120] sm:$0xff] %v3297
          %3362 = vst [vmem:[#allocation10 + $0x128] sm:$0xff] %v3298
          %3363 = vst [vmem:[#allocation10 + $0x130] sm:$0xff] %v3299
          %3364 = vst [vmem:[#allocation10 + $0x138] sm:$0xff] %v3300
          %3365 = vst [vmem:[#allocation10 + $0x140] sm:$0xff] %v3301
          %3366 = vst [vmem:[#allocation10 + $0x148] sm:$0xff] %v3302
          %3367 = vst [vmem:[#allocation10 + $0x150] sm:$0xff] %v3303
          %3368 = vst [vmem:[#allocation10 + $0x158] sm:$0xff] %v3304
          %3369 = vst [vmem:[#allocation10 + $0x160] sm:$0xff] %v3305
          %3370 = vst [vmem:[#allocation10 + $0x168] sm:$0xff] %v3306
          %3371 = vst [vmem:[#allocation10 + $0x170] sm:$0xff] %v3307
          %3372 = vst [vmem:[#allocation10 + $0x178] sm:$0xff] %v3308
          %3373 = vst [vmem:[#allocation10 + $0x180] sm:$0xff] %v3309
          %3374 = vst [vmem:[#allocation10 + $0x188] sm:$0xff] %v3310
          %3375 = vst [vmem:[#allocation10 + $0x190] sm:$0xff] %v3311
          %3376 = vst [vmem:[#allocation10 + $0x198] sm:$0xff] %v3312
          %3377 = vst [vmem:[#allocation10 + $0x1a0] sm:$0xff] %v3313
          %3378 = vst [vmem:[#allocation10 + $0x1a8] sm:$0xff] %v3314
          %3379 = vst [vmem:[#allocation10 + $0x1b0] sm:$0xff] %v3315
          %3380 = vst [vmem:[#allocation10 + $0x1b8] sm:$0xff] %v3316
          %3381 = vst [vmem:[#allocation10 + $0x1c0] sm:$0xff] %v3317
          %3382 = vst [vmem:[#allocation10 + $0x1c8] sm:$0xff] %v3318
          %3383 = vst [vmem:[#allocation10 + $0x1d0] sm:$0xff] %v3319
          %3384 = vst [vmem:[#allocation10 + $0x1d8] sm:$0xff] %v3320
          %3385 = vst [vmem:[#allocation10 + $0x1e0] sm:$0xff] %v3321
          %3386 = vst [vmem:[#allocation10 + $0x1e8] sm:$0xff] %v3322
          %3387 = vst [vmem:[#allocation10 + $0x1f0] sm:$0xff] %v3323
          %3388 = vst [vmem:[#allocation10 + $0x1f8] sm:$0xff] %v3324
        $region56: #{tpu_custom_call.1} parent=35 // pred_fallthru
          _
        // Predicated region
        $region57: #{tpu_custom_call.1} parent=35 // pred_check
          %p3389 = pneg %p129
        $region58: #{tpu_custom_call.1} parent=35 // pred_check_branch
          %3391 = sbr.rel (%p3389) target = $region60
        $region59: #{tpu_custom_call.1} parent=35 // pred_region
          %s3393 = ssub.s32 8192, 8192
          %3394 = vsyncadd [#allocation6], %s3393
          %s3395 = sshll.u32 [#allocation10], 4
          %s3396 = int_to_ptr.vmem [resolvable:$true] %s3395
          %3401 = dma.vmem_to_hbm [thread:$0]  %s3396, 8192, %s4, [#allocation6], 128, 128, 8
        $region60: #{tpu_custom_call.1} parent=35 // pred_fallthru
          _
        // Predicated region
        $region61: #{tpu_custom_call.1} parent=35 // pred_check
          %p3402 = pneg %p129
        $region62: #{tpu_custom_call.1} parent=35 // pred_check_branch
          %3404 = sbr.rel (%p3402) target = $region64
        $region63: #{tpu_custom_call.1} parent=35 // pred_region
          %3405 = dma.done [#allocation6], 8192
        $region64: #{tpu_custom_call.1} parent=35 // pred_fallthru
          _
      $region36: #{tpu_custom_call.1} parent=5 // pred_fallthru
        _
      %p3406 = scmp.le.s32.totalorder 2, %s17
      // Predicated region
      $region65: #{tpu_custom_call.1} parent=5 // pred_check
        %p3407 = pneg %p3406
      $region66: #{tpu_custom_call.1} parent=5 // pred_check_branch
        %3409 = sbr.rel (%p3407) target = $region68
      $region67: #{tpu_custom_call.1} parent=5 // pred_region
        %s3410 = ssub.s32 %s17, 2
      $region68: #{tpu_custom_call.1} parent=5 // pred_fallthru
        _
    $region6: #{tpu_custom_call.1} parent=1 // loop_footer
      %s21 = sadd.s32 1, %s17
    $region7: #{tpu_custom_call.1} parent=1 // loop_footer_branch
      %16 = sbr.rel target = $region3
    $region8: #{tpu_custom_call.1} parent=1 // loop_exit
      _
    %3411 = vsyncpa [#allocation5], 1
    %s3412 = scalar_lea.sflag [#allocation5], 1
    %3413 = vsyncpa %s3412, 1
    %3414 = vsyncpa [#allocation8], 1
    %s3415 = scalar_lea.sflag [#allocation8], 1
    %3416 = vsyncpa %s3415, 1
    %3417 = vsyncpa [#allocation6], 1
    %s3418 = scalar_lea.sflag [#allocation6], 1
    %3419 = vsyncpa %s3418, 1

</llo_original>
